<compile_context>
chip_gen: v7x
topology: tpu7x:2x2x1
jax: 0.10.0
libtpu: 0.0.40
codegen_flags: <defaults>
</compile_context>

<pallas_src>
import numpy as np
import jax
import jax.numpy as jnp
from jax.experimental import pallas as pl
from jax.experimental.pallas import tpu as pltpu

STRIDE = 2
KSIZE = 5
L_IN = 85            # (85-5)//2+1 = 41 -> 19 -> 8, so conv3 emits 128*8 features
L1, L2, L3 = 41, 19, 8
C3 = 128
D_OUT = 512


def _encoder_kernel(x_ref, sel1_ref, sel2_ref, sel3_ref,
                    wc1_ref, b1_ref, wc2_ref, b2_ref, wc3_ref, b3_ref,
                    wl_ref, bl_ref, out_ref):
    """Whole Encoder forward for one batch block, fully VMEM/vreg resident.

    x_ref:    (Bb*85, 1)     input samples, batch-major flattened, Cin=1
    selN_ref: 0/1 block-diagonal stride-2 row-selection matrices
    wcN_ref:  (5*Cin, Cout)  tap-concatenated Conv1d weights
    bN_ref:   (1, Cout)      Conv1d bias rows
    wl_ref:   (1024, 512)    Linear weight, wl[t*128+c, o] = W[o, c*8+t]
    bl_ref:   (1, 512)       Linear bias row
    out_ref:  (Bb, 512)      output slab (lane-dense)
    """
    bb = out_ref.shape[0]

    def conv_relu(h, sel_ref, wcat_ref, brow_ref):
        # h: (Bb*Lin, Cin).  Build the 5-tap slab once; the selection matrix
        # only ever picks rows q = b*Lin + 2t (2t+k < Lin), so windows never
        # cross sample boundaries and the batch stays folded into M for both
        # MXU matmuls.
        n = h.shape[0] - (KSIZE - 1)
        taps = jnp.concatenate([h[k:k + n, :] for k in range(KSIZE)], axis=1)
        g = jnp.dot(sel_ref[...], taps, preferred_element_type=jnp.float32)
        y = jnp.dot(g, wcat_ref[...], preferred_element_type=jnp.float32) + brow_ref[...]
        return jnp.maximum(y, 0.0)

    h1 = conv_relu(x_ref[...], sel1_ref, wc1_ref, b1_ref)     # (Bb*41, 32)
    h2 = conv_relu(h1, sel2_ref, wc2_ref, b2_ref)             # (Bb*19, 64)
    # sel3 emits rows in t-major order (row = t*Bb + b) so the Linear input
    # below is a pure lane-concatenation of aligned 128-lane blocks.
    h3 = conv_relu(h2, sel3_ref, wc3_ref, b3_ref)             # (8*Bb, 128)

    # (Bb, 1024): column t*128 + c corresponds to PyTorch flatten index c*8+t
    # after the matching wl repack -> ONE K=1024 matmul for the Linear layer.
    y = jnp.concatenate([h3[t * bb:(t + 1) * bb, :] for t in range(L3)], axis=1)
    out_ref[...] = (jnp.dot(y, wl_ref[...], preferred_element_type=jnp.float32)
                    + bl_ref[...])


def _make_sel(bb, lout, lin, t_major=False):
    """Block-diagonal stride-2 selection matrix over a batch of bb samples.

    Shape (bb*lout, bb*lin - (KSIZE-1)); row r has a single 1 at column
    b*lin + 2t, where r = b*lout + t (or t*bb + b if t_major).
    """
    ncols = bb * lin - (KSIZE - 1)
    s = np.zeros((bb * lout, ncols), np.float32)
    for b in range(bb):
        for t in range(lout):
            r = t * bb + b if t_major else b * lout + t
            s[r, b * lin + STRIDE * t] = 1.0
    return s


def encoder_forward(x, packed, *, num_blocks=1):
    """x: (B, L) float32 -> (B, 512); matches PyTorch Encoder.forward.

    num_blocks=1: one grid step, whole batch in M (best on v5e/v6e).
    num_blocks=2: one half-batch per step ("parallel") for v7x's two cores.
    """
    (wc1, b1), (wc2, b2), (wc3, b3), (wl, bl) = packed
    B, L = x.shape
    assert L == L_IN and B % num_blocks == 0
    bb = B // num_blocks

    # Host-side constants: 0/1 stride-selection matrices (built once per shape).
    sel1 = jnp.asarray(_make_sel(bb, L1, L_IN))
    sel2 = jnp.asarray(_make_sel(bb, L2, L1))
    sel3 = jnp.asarray(_make_sel(bb, L3, L2, t_major=True))

    x_col = x.reshape(B * L, 1)        # free at XLA level (row-major contiguous)

    return pl.pallas_call(
        _encoder_kernel,
        grid=(num_blocks,),
        in_specs=[
            pl.BlockSpec((bb * L, 1), lambda i: (i, 0)),
            pl.BlockSpec(sel1.shape, lambda i: (0, 0)),
            pl.BlockSpec(sel2.shape, lambda i: (0, 0)),
            pl.BlockSpec(sel3.shape, lambda i: (0, 0)),
            pl.BlockSpec(wc1.shape, lambda i: (0, 0)),
            pl.BlockSpec(b1.shape, lambda i: (0, 0)),
            pl.BlockSpec(wc2.shape, lambda i: (0, 0)),
            pl.BlockSpec(b2.shape, lambda i: (0, 0)),
            pl.BlockSpec(wc3.shape, lambda i: (0, 0)),
            pl.BlockSpec(b3.shape, lambda i: (0, 0)),
            pl.BlockSpec(wl.shape, lambda i: (0, 0)),
            pl.BlockSpec(bl.shape, lambda i: (0, 0)),
        ],
        out_specs=pl.BlockSpec((bb, D_OUT), lambda i: (i, 0)),
        out_shape=jax.ShapeDtypeStruct((B, D_OUT), jnp.float32),
        compiler_params=pltpu.CompilerParams(
            dimension_semantics=("parallel",)),
    )(x_col, sel1, sel2, sel3, wc1, b1, wc2, b2, wc3, b3, wl, bl)


def init_encoder_params(key):
    """Deterministic synthetic params matching the nn.Module shapes."""
    conv_shapes = [(1, 32), (32, 64), (64, 128)]
    params = []
    for cin, cout in conv_shapes:
        kw, kb, key = jax.random.split(key, 3)
        bound = 1.0 / np.sqrt(cin * KSIZE)
        w = jax.random.uniform(kw, (cout, cin, KSIZE), jnp.float32, -bound, bound)
        b = jax.random.uniform(kb, (cout,), jnp.float32, -bound, bound)
        params.append((w, b))
    kw, kb, key = jax.random.split(key, 3)
    bound = 1.0 / np.sqrt(C3 * L3)
    wlin = jax.random.uniform(kw, (D_OUT, C3 * L3), jnp.float32, -bound, bound)
    blin = jax.random.uniform(kb, (D_OUT,), jnp.float32, -bound, bound)
    params.append((wlin, blin))
    return params


def pack_encoder_params(params):
    """One-time repack into the kernel's layouts (hoisted out of the forward)."""
    packed = []
    for w, b in params[:3]:
        cout, cin, k = w.shape
        # (Cout, Cin, K) -> (K, Cin, Cout) -> (K*Cin, Cout); row block k = tap k.
        wc = jnp.transpose(w, (2, 1, 0)).reshape(k * cin, cout)
        packed.append((wc, b.reshape(1, cout)))
    wlin, blin = params[3]
    # (512, 128*8) -> (1024, 512) with wl2[t*128 + c, o] = W[o, c*8 + t],
    # matching the kernel's t-major lane-concatenated Linear input.
    wl2 = jnp.transpose(wlin.reshape(D_OUT, C3, L3), (2, 1, 0)).reshape(L3 * C3, D_OUT)
    packed.append((wl2, blin.reshape(1, D_OUT)))
    return packed


def _ref_encoder_np(x, params):
    """Numpy reference of the PyTorch Encoder forward."""
    mats = [(np.asarray(w), np.asarray(b)) for w, b in params]
    (w1, b1), (w2, b2), (w3, b3), (wl, bl) = mats
    h = np.asarray(x, np.float32)[:, None, :]           # (B, 1, L)  NCL
    for w, b in ((w1, b1), (w2, b2), (w3, b3)):
        _, _, k = w.shape
        bsz, _, lin = h.shape
        lout = (lin - k) // STRIDE + 1
        out = np.zeros((bsz, w.shape[0], lout), np.float32)
        for t in range(lout):
            seg = h[:, :, STRIDE * t:STRIDE * t + k]     # (B, Cin, K)
            out[:, :, t] = np.einsum('bck,ock->bo', seg, w)
        h = np.maximum(out + b[None, :, None], 0.0)
    flat = h.reshape(h.shape[0], -1)                     # (B, 128*8), NCL order
    return flat @ wl.T + bl[None, :]


if __name__ == "__main__":
    key = jax.random.PRNGKey(0)
    kx, kp = jax.random.split(key)

    B = 2
    x = jax.random.normal(kx, (B, L_IN), jnp.float32)    # PyTorch forward input (B, 85)
    params = init_encoder_params(kp)
    packed = pack_encoder_params(params)                  # one-time weight repack

    fwd = jax.jit(lambda xx, pp: encoder_forward(xx, pp, num_blocks=1))
    out = jax.block_until_ready(fwd(x, packed))

    ref = _ref_encoder_np(x, params)
    assert out.shape == (B, D_OUT), out.shape
    np.testing.assert_allclose(np.asarray(out), ref, rtol=2e-3, atol=2e-3)
    print("KERNEL_OK")
</pallas_src>

<mosaic_0001>
module attributes {stable_mosaic.version = 11 : i64} {
  func.func @_encoder_kernel(%arg0: i32, %arg1: memref<170x1xf32, #tpu.memory_space<vmem>>, %arg2: memref<82x166xf32, #tpu.memory_space<vmem>>, %arg3: memref<38x78xf32, #tpu.memory_space<vmem>>, %arg4: memref<16x34xf32, #tpu.memory_space<vmem>>, %arg5: memref<5x32xf32, #tpu.memory_space<vmem>>, %arg6: memref<1x32xf32, #tpu.memory_space<vmem>>, %arg7: memref<160x64xf32, #tpu.memory_space<vmem>>, %arg8: memref<1x64xf32, #tpu.memory_space<vmem>>, %arg9: memref<320x128xf32, #tpu.memory_space<vmem>>, %arg10: memref<1x128xf32, #tpu.memory_space<vmem>>, %arg11: memref<1024x512xf32, #tpu.memory_space<vmem>>, %arg12: memref<1x512xf32, #tpu.memory_space<vmem>>, %arg13: memref<2x512xf32, #tpu.memory_space<vmem>>) attributes {dimension_semantics = [#tpu.dimension_semantics<parallel>], iteration_bounds = array<i64: 1>, scalar_prefetch = 0 : i64, scratch_operands = 0 : i64, tpu.core_type = #tpu.core_type<tc>, window_params = [{transform_indices = @transform_0, window_bounds = array<i64: 170, 1>}, {pipeline_mode = #tpu.pipeline_mode<synchronous>, transform_indices = @transform_1, window_bounds = array<i64: 82, 166>}, {pipeline_mode = #tpu.pipeline_mode<synchronous>, transform_indices = @transform_2, window_bounds = array<i64: 38, 78>}, {pipeline_mode = #tpu.pipeline_mode<synchronous>, transform_indices = @transform_3, window_bounds = array<i64: 16, 34>}, {pipeline_mode = #tpu.pipeline_mode<synchronous>, transform_indices = @transform_4, window_bounds = array<i64: 5, 32>}, {pipeline_mode = #tpu.pipeline_mode<synchronous>, transform_indices = @transform_5, window_bounds = array<i64: 1, 32>}, {pipeline_mode = #tpu.pipeline_mode<synchronous>, transform_indices = @transform_6, window_bounds = array<i64: 160, 64>}, {pipeline_mode = #tpu.pipeline_mode<synchronous>, transform_indices = @transform_7, window_bounds = array<i64: 1, 64>}, {pipeline_mode = #tpu.pipeline_mode<synchronous>, transform_indices = @transform_8, window_bounds = array<i64: 320, 128>}, {pipeline_mode = #tpu.pipeline_mode<synchronous>, transform_indices = @transform_9, window_bounds = array<i64: 1, 128>}, {pipeline_mode = #tpu.pipeline_mode<synchronous>, transform_indices = @transform_10, window_bounds = array<i64: 1024, 512>}, {pipeline_mode = #tpu.pipeline_mode<synchronous>, transform_indices = @transform_11, window_bounds = array<i64: 1, 512>}, {transform_indices = @transform_12, window_bounds = array<i64: 2, 512>}]} {
    %c0 = arith.constant 0 : index
    %c0_0 = arith.constant 0 : index
    %0 = vector.load %arg1[%c0, %c0_0] : memref<170x1xf32, #tpu.memory_space<vmem>>, vector<170x1xf32>
    %1 = vector.extract_strided_slice %0 {offsets = [0, 0], sizes = [166, 1], strides = [1, 1]} : vector<170x1xf32> to vector<166x1xf32>
    %2 = vector.extract_strided_slice %0 {offsets = [1, 0], sizes = [166, 1], strides = [1, 1]} : vector<170x1xf32> to vector<166x1xf32>
    %3 = vector.extract_strided_slice %0 {offsets = [2, 0], sizes = [166, 1], strides = [1, 1]} : vector<170x1xf32> to vector<166x1xf32>
    %4 = vector.extract_strided_slice %0 {offsets = [3, 0], sizes = [166, 1], strides = [1, 1]} : vector<170x1xf32> to vector<166x1xf32>
    %5 = vector.extract_strided_slice %0 {offsets = [4, 0], sizes = [166, 1], strides = [1, 1]} : vector<170x1xf32> to vector<166x1xf32>
    %6 = tpu.concatenate %1, %2, %3, %4, %5 in 1 : vector<166x1xf32>, vector<166x1xf32>, vector<166x1xf32>, vector<166x1xf32>, vector<166x1xf32> -> vector<166x5xf32>
    %c0_1 = arith.constant 0 : index
    %c0_2 = arith.constant 0 : index
    %7 = vector.load %arg2[%c0_1, %c0_2] : memref<82x166xf32, #tpu.memory_space<vmem>>, vector<82x166xf32>
    %cst = arith.constant dense<0.000000e+00> : vector<82x5xf32>
    %8 = tpu.matmul %7, %6, %cst {dimension_numbers = #tpu.dot_dimension_numbers<[1], [0], [0], [1], [0, 0, 1, 1], [], []>} : vector<82x166xf32>, vector<166x5xf32>, vector<82x5xf32> -> vector<82x5xf32>
    %c0_3 = arith.constant 0 : index
    %c0_4 = arith.constant 0 : index
    %9 = vector.load %arg5[%c0_3, %c0_4] : memref<5x32xf32, #tpu.memory_space<vmem>>, vector<5x32xf32>
    %cst_5 = arith.constant dense<0.000000e+00> : vector<82x32xf32>
    %10 = tpu.matmul %8, %9, %cst_5 {dimension_numbers = #tpu.dot_dimension_numbers<[1], [0], [0], [1], [0, 0, 1, 1], [], []>} : vector<82x5xf32>, vector<5x32xf32>, vector<82x32xf32> -> vector<82x32xf32>
    %c0_6 = arith.constant 0 : index
    %c0_7 = arith.constant 0 : index
    %11 = vector.load %arg6[%c0_6, %c0_7] : memref<1x32xf32, #tpu.memory_space<vmem>>, vector<1x32xf32>
    %12 = vector.broadcast %11 : vector<1x32xf32> to vector<82x32xf32>
    %13 = arith.addf %10, %12 : vector<82x32xf32>
    %cst_8 = arith.constant 0.000000e+00 : f32
    %14 = vector.broadcast %cst_8 : f32 to vector<82x32xf32>
    %15 = arith.maximumf %13, %14 : vector<82x32xf32>
    %16 = vector.extract_strided_slice %15 {offsets = [0, 0], sizes = [78, 32], strides = [1, 1]} : vector<82x32xf32> to vector<78x32xf32>
    %17 = vector.extract_strided_slice %15 {offsets = [1, 0], sizes = [78, 32], strides = [1, 1]} : vector<82x32xf32> to vector<78x32xf32>
    %18 = vector.extract_strided_slice %15 {offsets = [2, 0], sizes = [78, 32], strides = [1, 1]} : vector<82x32xf32> to vector<78x32xf32>
    %19 = vector.extract_strided_slice %15 {offsets = [3, 0], sizes = [78, 32], strides = [1, 1]} : vector<82x32xf32> to vector<78x32xf32>
    %20 = vector.extract_strided_slice %15 {offsets = [4, 0], sizes = [78, 32], strides = [1, 1]} : vector<82x32xf32> to vector<78x32xf32>
    %21 = tpu.concatenate %16, %17, %18, %19, %20 in 1 : vector<78x32xf32>, vector<78x32xf32>, vector<78x32xf32>, vector<78x32xf32>, vector<78x32xf32> -> vector<78x160xf32>
    %c0_9 = arith.constant 0 : index
    %c0_10 = arith.constant 0 : index
    %22 = vector.load %arg3[%c0_9, %c0_10] : memref<38x78xf32, #tpu.memory_space<vmem>>, vector<38x78xf32>
    %cst_11 = arith.constant dense<0.000000e+00> : vector<38x160xf32>
    %23 = tpu.matmul %22, %21, %cst_11 {dimension_numbers = #tpu.dot_dimension_numbers<[1], [0], [0], [1], [0, 0, 1, 1], [], []>} : vector<38x78xf32>, vector<78x160xf32>, vector<38x160xf32> -> vector<38x160xf32>
    %c0_12 = arith.constant 0 : index
    %c0_13 = arith.constant 0 : index
    %24 = vector.load %arg7[%c0_12, %c0_13] : memref<160x64xf32, #tpu.memory_space<vmem>>, vector<160x64xf32>
    %cst_14 = arith.constant dense<0.000000e+00> : vector<38x64xf32>
    %25 = tpu.matmul %23, %24, %cst_14 {dimension_numbers = #tpu.dot_dimension_numbers<[1], [0], [0], [1], [0, 0, 1, 1], [], []>} : vector<38x160xf32>, vector<160x64xf32>, vector<38x64xf32> -> vector<38x64xf32>
    %c0_15 = arith.constant 0 : index
    %c0_16 = arith.constant 0 : index
    %26 = vector.load %arg8[%c0_15, %c0_16] : memref<1x64xf32, #tpu.memory_space<vmem>>, vector<1x64xf32>
    %27 = vector.broadcast %26 : vector<1x64xf32> to vector<38x64xf32>
    %28 = arith.addf %25, %27 : vector<38x64xf32>
    %cst_17 = arith.constant 0.000000e+00 : f32
    %29 = vector.broadcast %cst_17 : f32 to vector<38x64xf32>
    %30 = arith.maximumf %28, %29 : vector<38x64xf32>
    %31 = vector.extract_strided_slice %30 {offsets = [0, 0], sizes = [34, 64], strides = [1, 1]} : vector<38x64xf32> to vector<34x64xf32>
    %32 = vector.extract_strided_slice %30 {offsets = [1, 0], sizes = [34, 64], strides = [1, 1]} : vector<38x64xf32> to vector<34x64xf32>
    %33 = vector.extract_strided_slice %30 {offsets = [2, 0], sizes = [34, 64], strides = [1, 1]} : vector<38x64xf32> to vector<34x64xf32>
    %34 = vector.extract_strided_slice %30 {offsets = [3, 0], sizes = [34, 64], strides = [1, 1]} : vector<38x64xf32> to vector<34x64xf32>
    %35 = vector.extract_strided_slice %30 {offsets = [4, 0], sizes = [34, 64], strides = [1, 1]} : vector<38x64xf32> to vector<34x64xf32>
    %36 = tpu.concatenate %31, %32, %33, %34, %35 in 1 : vector<34x64xf32>, vector<34x64xf32>, vector<34x64xf32>, vector<34x64xf32>, vector<34x64xf32> -> vector<34x320xf32>
    %c0_18 = arith.constant 0 : index
    %c0_19 = arith.constant 0 : index
    %37 = vector.load %arg4[%c0_18, %c0_19] : memref<16x34xf32, #tpu.memory_space<vmem>>, vector<16x34xf32>
    %cst_20 = arith.constant dense<0.000000e+00> : vector<16x320xf32>
    %38 = tpu.matmul %37, %36, %cst_20 {dimension_numbers = #tpu.dot_dimension_numbers<[1], [0], [0], [1], [0, 0, 1, 1], [], []>} : vector<16x34xf32>, vector<34x320xf32>, vector<16x320xf32> -> vector<16x320xf32>
    %c0_21 = arith.constant 0 : index
    %c0_22 = arith.constant 0 : index
    %39 = vector.load %arg9[%c0_21, %c0_22] : memref<320x128xf32, #tpu.memory_space<vmem>>, vector<320x128xf32>
    %cst_23 = arith.constant dense<0.000000e+00> : vector<16x128xf32>
    %40 = tpu.matmul %38, %39, %cst_23 {dimension_numbers = #tpu.dot_dimension_numbers<[1], [0], [0], [1], [0, 0, 1, 1], [], []>} : vector<16x320xf32>, vector<320x128xf32>, vector<16x128xf32> -> vector<16x128xf32>
    %c0_24 = arith.constant 0 : index
    %c0_25 = arith.constant 0 : index
    %41 = vector.load %arg10[%c0_24, %c0_25] : memref<1x128xf32, #tpu.memory_space<vmem>>, vector<1x128xf32>
    %42 = vector.broadcast %41 : vector<1x128xf32> to vector<16x128xf32>
    %43 = arith.addf %40, %42 : vector<16x128xf32>
    %cst_26 = arith.constant 0.000000e+00 : f32
    %44 = vector.broadcast %cst_26 : f32 to vector<16x128xf32>
    %45 = arith.maximumf %43, %44 : vector<16x128xf32>
    %46 = vector.extract_strided_slice %45 {offsets = [0, 0], sizes = [2, 128], strides = [1, 1]} : vector<16x128xf32> to vector<2x128xf32>
    %47 = vector.extract_strided_slice %45 {offsets = [2, 0], sizes = [2, 128], strides = [1, 1]} : vector<16x128xf32> to vector<2x128xf32>
    %48 = vector.extract_strided_slice %45 {offsets = [4, 0], sizes = [2, 128], strides = [1, 1]} : vector<16x128xf32> to vector<2x128xf32>
    %49 = vector.extract_strided_slice %45 {offsets = [6, 0], sizes = [2, 128], strides = [1, 1]} : vector<16x128xf32> to vector<2x128xf32>
    %50 = vector.extract_strided_slice %45 {offsets = [8, 0], sizes = [2, 128], strides = [1, 1]} : vector<16x128xf32> to vector<2x128xf32>
    %51 = vector.extract_strided_slice %45 {offsets = [10, 0], sizes = [2, 128], strides = [1, 1]} : vector<16x128xf32> to vector<2x128xf32>
    %52 = vector.extract_strided_slice %45 {offsets = [12, 0], sizes = [2, 128], strides = [1, 1]} : vector<16x128xf32> to vector<2x128xf32>
    %53 = vector.extract_strided_slice %45 {offsets = [14, 0], sizes = [2, 128], strides = [1, 1]} : vector<16x128xf32> to vector<2x128xf32>
    %54 = tpu.concatenate %46, %47, %48, %49, %50, %51, %52, %53 in 1 : vector<2x128xf32>, vector<2x128xf32>, vector<2x128xf32>, vector<2x128xf32>, vector<2x128xf32>, vector<2x128xf32>, vector<2x128xf32>, vector<2x128xf32> -> vector<2x1024xf32>
    %c0_27 = arith.constant 0 : index
    %c0_28 = arith.constant 0 : index
    %55 = vector.load %arg11[%c0_27, %c0_28] : memref<1024x512xf32, #tpu.memory_space<vmem>>, vector<1024x512xf32>
    %cst_29 = arith.constant dense<0.000000e+00> : vector<2x512xf32>
    %56 = tpu.matmul %54, %55, %cst_29 {dimension_numbers = #tpu.dot_dimension_numbers<[1], [0], [0], [1], [0, 0, 1, 1], [], []>} : vector<2x1024xf32>, vector<1024x512xf32>, vector<2x512xf32> -> vector<2x512xf32>
    %c0_30 = arith.constant 0 : index
    %c0_31 = arith.constant 0 : index
    %57 = vector.load %arg12[%c0_30, %c0_31] : memref<1x512xf32, #tpu.memory_space<vmem>>, vector<1x512xf32>
    %58 = vector.broadcast %57 : vector<1x512xf32> to vector<2x512xf32>
    %59 = arith.addf %56, %58 : vector<2x512xf32>
    %c0_32 = arith.constant 0 : index
    %c0_33 = arith.constant 0 : index
    %60 = vector.load %arg13[%c0_32, %c0_33] : memref<2x512xf32, #tpu.memory_space<vmem>>, vector<2x512xf32>
    tpu.vector_store %arg13[%c0_32, %c0_33], %59 {strides = array<i32>} : memref<2x512xf32, #tpu.memory_space<vmem>>, vector<2x512xf32>,
    return
  }
  func.func @transform_0(%arg0: i32) -> (i32, i32) {
    %c0_i32 = arith.constant 0 : i32
    %c0_i32_0 = arith.constant 0 : i32
    return %arg0, %c0_i32 : i32, i32
  }
  func.func @transform_1(%arg0: i32) -> (i32, i32) {
    %c0_i32 = arith.constant 0 : i32
    %c0_i32_0 = arith.constant 0 : i32
    %c0_i32_1 = arith.constant 0 : i32
    return %c0_i32, %c0_i32_0 : i32, i32
  }
  func.func @transform_2(%arg0: i32) -> (i32, i32) {
    %c0_i32 = arith.constant 0 : i32
    %c0_i32_0 = arith.constant 0 : i32
    %c0_i32_1 = arith.constant 0 : i32
    return %c0_i32, %c0_i32_0 : i32, i32
  }
  func.func @transform_3(%arg0: i32) -> (i32, i32) {
    %c0_i32 = arith.constant 0 : i32
    %c0_i32_0 = arith.constant 0 : i32
    %c0_i32_1 = arith.constant 0 : i32
    return %c0_i32, %c0_i32_0 : i32, i32
  }
  func.func @transform_4(%arg0: i32) -> (i32, i32) {
    %c0_i32 = arith.constant 0 : i32
    %c0_i32_0 = arith.constant 0 : i32
    %c0_i32_1 = arith.constant 0 : i32
    return %c0_i32, %c0_i32_0 : i32, i32
  }
  func.func @transform_5(%arg0: i32) -> (i32, i32) {
    %c0_i32 = arith.constant 0 : i32
    %c0_i32_0 = arith.constant 0 : i32
    %c0_i32_1 = arith.constant 0 : i32
    return %c0_i32, %c0_i32_0 : i32, i32
  }
  func.func @transform_6(%arg0: i32) -> (i32, i32) {
    %c0_i32 = arith.constant 0 : i32
    %c0_i32_0 = arith.constant 0 : i32
    %c0_i32_1 = arith.constant 0 : i32
    return %c0_i32, %c0_i32_0 : i32, i32
  }
  func.func @transform_7(%arg0: i32) -> (i32, i32) {
    %c0_i32 = arith.constant 0 : i32
    %c0_i32_0 = arith.constant 0 : i32
    %c0_i32_1 = arith.constant 0 : i32
    return %c0_i32, %c0_i32_0 : i32, i32
  }
  func.func @transform_8(%arg0: i32) -> (i32, i32) {
    %c0_i32 = arith.constant 0 : i32
    %c0_i32_0 = arith.constant 0 : i32
    %c0_i32_1 = arith.constant 0 : i32
    return %c0_i32, %c0_i32_0 : i32, i32
  }
  func.func @transform_9(%arg0: i32) -> (i32, i32) {
    %c0_i32 = arith.constant 0 : i32
    %c0_i32_0 = arith.constant 0 : i32
    %c0_i32_1 = arith.constant 0 : i32
    return %c0_i32, %c0_i32_0 : i32, i32
  }
  func.func @transform_10(%arg0: i32) -> (i32, i32) {
    %c0_i32 = arith.constant 0 : i32
    %c0_i32_0 = arith.constant 0 : i32
    %c0_i32_1 = arith.constant 0 : i32
    return %c0_i32, %c0_i32_0 : i32, i32
  }
  func.func @transform_11(%arg0: i32) -> (i32, i32) {
    %c0_i32 = arith.constant 0 : i32
    %c0_i32_0 = arith.constant 0 : i32
    %c0_i32_1 = arith.constant 0 : i32
    return %c0_i32, %c0_i32_0 : i32, i32
  }
  func.func @transform_12(%arg0: i32) -> (i32, i32) {
    %c0_i32 = arith.constant 0 : i32
    %c0_i32_0 = arith.constant 0 : i32
    return %arg0, %c0_i32 : i32, i32
  }
}

</mosaic_0001>

<llo_original>
// kernel: _lambda_.1
$region0: #{_lambda_.1}
  #allocation0 [shape = 'u32[]', space=smem, size = 0x4, offset = 0x4, fixed_abs, tag = 'smem constant byte address 0x4 - core index']
  #allocation1 [shape = 'u32[144,128]{1,0:T(1,128)}', space=vmem, size = 0x12000, scoped, tag = 'internal scratch']
  %s0 = inlined_call_operand.vmem [shape: f32[170,1], index: 0, kind: input, shape index: {}]
  %s1 = inlined_call_operand.hbm [shape: f32[82,166], index: 1, kind: input, shape index: {}]
  %s2 = inlined_call_operand.hbm [shape: f32[38,78], index: 2, kind: input, shape index: {}]
  %s3 = inlined_call_operand.hbm [shape: f32[16,34], index: 3, kind: input, shape index: {}]
  %s4 = inlined_call_operand.hbm [shape: f32[5,32], index: 4, kind: input, shape index: {}]
  %s5 = inlined_call_operand.hbm [shape: f32[1,32], index: 5, kind: input, shape index: {}]
  %s6 = inlined_call_operand.vmem [shape: f32[160,64], index: 6, kind: input, shape index: {}]
  %s7 = inlined_call_operand.hbm [shape: f32[1,64], index: 7, kind: input, shape index: {}]
  %s8 = inlined_call_operand.hbm [shape: f32[320,128], index: 8, kind: input, shape index: {}]
  %s9 = inlined_call_operand.hbm [shape: f32[1,128], index: 9, kind: input, shape index: {}]
  %s10 = inlined_call_operand.hbm [shape: f32[1024,512], index: 10, kind: input, shape index: {}]
  %s11 = inlined_call_operand.hbm [shape: f32[1,512], index: 11, kind: input, shape index: {}]
  %s12 = inlined_call_operand.hbm [shape: f32[2,512], index: 12, kind: output, shape index: {}]
  %s13 = sld [smem:[#allocation0]]
  $region98: #{_lambda_.1} parent=0
    _
  %s15 = ssub.s32 1, %s13
  %s16 = scalar_select 0, %s15, %s13
  $region1: #{_lambda_.1} parent=0
    #allocation2 [shape = 'u8[90112]{0}', space=vmem, size = 0x16000, scoped, tag = 'input window, operand 1, single buffered']
    #allocation3 [shape = 's32[1]{0}', space=sflag, size = 0x4, scoped, tag = 'scoped memory for _lambda_.1']
    #allocation4 [shape = 's32[1]{0}', space=sflag, size = 0x4, scoped, tag = 'scoped memory for _lambda_.1']
    #allocation5 [shape = 'u8[20480]{0}', space=vmem, size = 0x5000, scoped, tag = 'input window, operand 2, single buffered']
    #allocation6 [shape = 's32[1]{0}', space=sflag, size = 0x4, scoped, tag = 'scoped memory for _lambda_.1']
    #allocation7 [shape = 'u8[8192]{0}', space=vmem, size = 0x2000, scoped, tag = 'input window, operand 3, single buffered']
    #allocation8 [shape = 'u8[4096]{0}', space=vmem, size = 0x1000, scoped, tag = 'input window, operand 4, single buffered']
    #allocation9 [shape = 's32[1]{0}', space=sflag, size = 0x4, scoped, tag = 'scoped memory for _lambda_.1']
    #allocation10 [shape = 'u8[512]{0}', space=vmem, size = 0x400, scoped, tag = 'input window, operand 5, single buffered']
    #allocation11 [shape = 'u8[512]{0}', space=vmem, size = 0x400, scoped, tag = 'input window, operand 7, single buffered']
    #allocation12 [shape = 's32[1]{0}', space=sflag, size = 0x4, scoped, tag = 'scoped memory for _lambda_.1']
    #allocation13 [shape = 'u8[163840]{0}', space=vmem, size = 0x28000, scoped, tag = 'input window, operand 8, single buffered']
    #allocation14 [shape = 'u8[512]{0}', space=vmem, size = 0x400, scoped, tag = 'input window, operand 9, single buffered']
    #allocation15 [shape = 's32[1]{0}', space=sflag, size = 0x4, scoped, tag = 'scoped memory for _lambda_.1']
    #allocation16 [shape = 'u8[2097152]{0}', space=vmem, size = 0x200000, scoped, tag = 'input window, operand 10, single buffered']
    #allocation17 [shape = 'u8[2048]{0}', space=vmem, size = 0x800, scoped, tag = 'input window, operand 11, single buffered']
    #allocation18 [shape = 's32[1]{0}', space=sflag, size = 0x4, scoped, tag = 'scoped memory for _lambda_.1']
    #allocation19 [shape = 'u8[4096]{0}', space=vmem, size = 0x1000, scoped, tag = 'output window, operand 0, single buffered']
    %17 = vsyncpa [#allocation3], 0
    %18 = vsyncpa [#allocation6], 0
    %19 = vsyncpa [#allocation9], 0
    %20 = vsyncpa [#allocation12], 0
    %21 = vsyncpa [#allocation15], 0
    %22 = vsyncpa [#allocation18], 0
    %23 = vsyncpa [#allocation4], 0
    // Predicated region
    $region2: #{_lambda_.1} parent=1 // pred_check
      _
    $region3: #{_lambda_.1} parent=1 // pred_check_branch
      %25 = sbr.rel (0) target = $region5
    $region4: #{_lambda_.1} parent=1 // pred_region
      _
    $region5: #{_lambda_.1} parent=1 // pred_fallthru
      _
    // Predicated region
    $region6: #{_lambda_.1} parent=1 // pred_check
      _
    $region7: #{_lambda_.1} parent=1 // pred_check_branch
      %27 = sbr.rel (0) target = $region9
    $region8: #{_lambda_.1} parent=1 // pred_region
      %s29 = ssub.s32 2816, 2816
      %30 = vsyncadd [#allocation3], %s29
      %s31 = sshll.u32 [#allocation2], 4
      %s32 = int_to_ptr.vmem [resolvable:$true] %s31
      %37 = dma.hbm_to_vmem [thread:$0]  %s1, 2816, %s32, [#allocation3], 256, 256, 16
    $region9: #{_lambda_.1} parent=1 // pred_fallthru
      _
    // Predicated region
    $region10: #{_lambda_.1} parent=1 // pred_check
      _
    $region11: #{_lambda_.1} parent=1 // pred_check_branch
      %39 = sbr.rel (0) target = $region13
    $region12: #{_lambda_.1} parent=1 // pred_region
      %s41 = ssub.s32 640, 640
      %42 = vsyncadd [#allocation6], %s41
      %s43 = sshll.u32 [#allocation5], 4
      %s44 = int_to_ptr.vmem [resolvable:$true] %s43
      %49 = dma.hbm_to_vmem [thread:$0]  %s2, 640, %s44, [#allocation6], 128, 128, 8
    $region13: #{_lambda_.1} parent=1 // pred_fallthru
      _
    // Predicated region
    $region14: #{_lambda_.1} parent=1 // pred_check
      _
    $region15: #{_lambda_.1} parent=1 // pred_check_branch
      %51 = sbr.rel (0) target = $region17
    $region16: #{_lambda_.1} parent=1 // pred_region
      %s53 = ssub.s32 256, 256
      %54 = vsyncadd [#allocation6], %s53
      %s55 = sshll.u32 [#allocation7], 4
      %s56 = int_to_ptr.vmem [resolvable:$true] %s55
      %61 = dma.hbm_to_vmem [thread:$0]  %s3, 256, %s56, [#allocation6], 128, 128, 8
    $region17: #{_lambda_.1} parent=1 // pred_fallthru
      _
    // Predicated region
    $region18: #{_lambda_.1} parent=1 // pred_check
      _
    $region19: #{_lambda_.1} parent=1 // pred_check_branch
      %63 = sbr.rel (0) target = $region21
    $region20: #{_lambda_.1} parent=1 // pred_region
      %s65 = ssub.s32 128, 128
      %66 = vsyncadd [#allocation9], %s65
      %s68 = sshll.u32 [#allocation8], 4
      %s69 = int_to_ptr.vmem [resolvable:$true] %s68
      %71 = dma.hbm_to_vmem [thread:$0]  %s4, 128, %s69, [#allocation9]
    $region21: #{_lambda_.1} parent=1 // pred_fallthru
      _
    // Predicated region
    $region22: #{_lambda_.1} parent=1 // pred_check
      _
    $region23: #{_lambda_.1} parent=1 // pred_check_branch
      %73 = sbr.rel (0) target = $region25
    $region24: #{_lambda_.1} parent=1 // pred_region
      %s75 = ssub.s32 16, 16
      %76 = vsyncadd [#allocation9], %s75
      %s78 = sshll.u32 [#allocation10], 4
      %s79 = int_to_ptr.vmem [resolvable:$true] %s78
      %81 = dma.hbm_to_vmem [thread:$0]  %s5, 16, %s79, [#allocation9]
    $region25: #{_lambda_.1} parent=1 // pred_fallthru
      _
    // Predicated region
    $region26: #{_lambda_.1} parent=1 // pred_check
      _
    $region27: #{_lambda_.1} parent=1 // pred_check_branch
      %83 = sbr.rel (0) target = $region29
    $region28: #{_lambda_.1} parent=1 // pred_region
      _
    $region29: #{_lambda_.1} parent=1 // pred_fallthru
      _
    // Predicated region
    $region30: #{_lambda_.1} parent=1 // pred_check
      _
    $region31: #{_lambda_.1} parent=1 // pred_check_branch
      %85 = sbr.rel (0) target = $region33
    $region32: #{_lambda_.1} parent=1 // pred_region
      %s87 = ssub.s32 16, 16
      %88 = vsyncadd [#allocation12], %s87
      %s90 = sshll.u32 [#allocation11], 4
      %s91 = int_to_ptr.vmem [resolvable:$true] %s90
      %93 = dma.hbm_to_vmem [thread:$0]  %s7, 16, %s91, [#allocation12]
    $region33: #{_lambda_.1} parent=1 // pred_fallthru
      _
    // Predicated region
    $region34: #{_lambda_.1} parent=1 // pred_check
      _
    $region35: #{_lambda_.1} parent=1 // pred_check_branch
      %95 = sbr.rel (0) target = $region37
    $region36: #{_lambda_.1} parent=1 // pred_region
      %s97 = ssub.s32 5120, 5120
      %98 = vsyncadd [#allocation12], %s97
      %s99 = sshll.u32 [#allocation13], 4
      %s100 = int_to_ptr.vmem [resolvable:$true] %s99
      %105 = dma.hbm_to_vmem [thread:$0]  %s8, 5120, %s100, [#allocation12], 128, 128, 8
    $region37: #{_lambda_.1} parent=1 // pred_fallthru
      _
    // Predicated region
    $region38: #{_lambda_.1} parent=1 // pred_check
      _
    $region39: #{_lambda_.1} parent=1 // pred_check_branch
      %107 = sbr.rel (0) target = $region41
    $region40: #{_lambda_.1} parent=1 // pred_region
      %s109 = ssub.s32 16, 16
      %110 = vsyncadd [#allocation15], %s109
      %s112 = sshll.u32 [#allocation14], 4
      %s113 = int_to_ptr.vmem [resolvable:$true] %s112
      %115 = dma.hbm_to_vmem [thread:$0]  %s9, 16, %s113, [#allocation15]
    $region41: #{_lambda_.1} parent=1 // pred_fallthru
      _
    // Predicated region
    $region42: #{_lambda_.1} parent=1 // pred_check
      _
    $region43: #{_lambda_.1} parent=1 // pred_check_branch
      %117 = sbr.rel (0) target = $region45
    $region44: #{_lambda_.1} parent=1 // pred_region
      %s119 = ssub.s32 65536, 65536
      %120 = vsyncadd [#allocation15], %s119
      %s121 = sshll.u32 [#allocation16], 4
      %s122 = int_to_ptr.vmem [resolvable:$true] %s121
      %127 = dma.hbm_to_vmem [thread:$0]  %s10, 65536, %s122, [#allocation15], 512, 512, 32
    $region45: #{_lambda_.1} parent=1 // pred_fallthru
      _
    // Predicated region
    $region46: #{_lambda_.1} parent=1 // pred_check
      _
    $region47: #{_lambda_.1} parent=1 // pred_check_branch
      %129 = sbr.rel (0) target = $region49
    $region48: #{_lambda_.1} parent=1 // pred_region
      %s131 = ssub.s32 64, 64
      %132 = vsyncadd [#allocation18], %s131
      %s134 = sshll.u32 [#allocation17], 4
      %s135 = int_to_ptr.vmem [resolvable:$true] %s134
      %137 = dma.hbm_to_vmem [thread:$0]  %s11, 64, %s135, [#allocation18]
    $region49: #{_lambda_.1} parent=1 // pred_fallthru
      _
    // Predicated region
    $region50: #{_lambda_.1} parent=1 // pred_check
      _
    $region51: #{_lambda_.1} parent=1 // pred_check_branch
      %139 = sbr.rel (0) target = $region53
    $region52: #{_lambda_.1} parent=1 // pred_region
      %140 = dma.done [#allocation3], 2816
    $region53: #{_lambda_.1} parent=1 // pred_fallthru
      _
    // Predicated region
    $region54: #{_lambda_.1} parent=1 // pred_check
      _
    $region55: #{_lambda_.1} parent=1 // pred_check_branch
      %142 = sbr.rel (0) target = $region57
    $region56: #{_lambda_.1} parent=1 // pred_region
      %143 = dma.done [#allocation6], 640
    $region57: #{_lambda_.1} parent=1 // pred_fallthru
      _
    // Predicated region
    $region58: #{_lambda_.1} parent=1 // pred_check
      _
    $region59: #{_lambda_.1} parent=1 // pred_check_branch
      %145 = sbr.rel (0) target = $region61
    $region60: #{_lambda_.1} parent=1 // pred_region
      %146 = dma.done [#allocation6], 256
    $region61: #{_lambda_.1} parent=1 // pred_fallthru
      _
    // Predicated region
    $region62: #{_lambda_.1} parent=1 // pred_check
      _
    $region63: #{_lambda_.1} parent=1 // pred_check_branch
      %148 = sbr.rel (0) target = $region65
    $region64: #{_lambda_.1} parent=1 // pred_region
      %149 = dma.done [#allocation9], 128
    $region65: #{_lambda_.1} parent=1 // pred_fallthru
      _
    // Predicated region
    $region66: #{_lambda_.1} parent=1 // pred_check
      _
    $region67: #{_lambda_.1} parent=1 // pred_check_branch
      %151 = sbr.rel (0) target = $region69
    $region68: #{_lambda_.1} parent=1 // pred_region
      %152 = dma.done [#allocation9], 16
    $region69: #{_lambda_.1} parent=1 // pred_fallthru
      _
    // Predicated region
    $region70: #{_lambda_.1} parent=1 // pred_check
      _
    $region71: #{_lambda_.1} parent=1 // pred_check_branch
      %154 = sbr.rel (0) target = $region73
    $region72: #{_lambda_.1} parent=1 // pred_region
      %155 = dma.done [#allocation12], 16
    $region73: #{_lambda_.1} parent=1 // pred_fallthru
      _
    // Predicated region
    $region74: #{_lambda_.1} parent=1 // pred_check
      _
    $region75: #{_lambda_.1} parent=1 // pred_check_branch
      %157 = sbr.rel (0) target = $region77
    $region76: #{_lambda_.1} parent=1 // pred_region
      %158 = dma.done [#allocation12], 5120
    $region77: #{_lambda_.1} parent=1 // pred_fallthru
      _
    // Predicated region
    $region78: #{_lambda_.1} parent=1 // pred_check
      _
    $region79: #{_lambda_.1} parent=1 // pred_check_branch
      %160 = sbr.rel (0) target = $region81
    $region80: #{_lambda_.1} parent=1 // pred_region
      %161 = dma.done [#allocation15], 16
    $region81: #{_lambda_.1} parent=1 // pred_fallthru
      _
    // Predicated region
    $region82: #{_lambda_.1} parent=1 // pred_check
      _
    $region83: #{_lambda_.1} parent=1 // pred_check_branch
      %163 = sbr.rel (0) target = $region85
    $region84: #{_lambda_.1} parent=1 // pred_region
      %164 = dma.done [#allocation15], 65536
    $region85: #{_lambda_.1} parent=1 // pred_fallthru
      _
    // Predicated region
    $region86: #{_lambda_.1} parent=1 // pred_check
      _
    $region87: #{_lambda_.1} parent=1 // pred_check_branch
      %166 = sbr.rel (0) target = $region89
    $region88: #{_lambda_.1} parent=1 // pred_region
      %167 = dma.done [#allocation18], 64
    $region89: #{_lambda_.1} parent=1 // pred_fallthru
      _
    %v168 = vld [vmem:[%s0] sm:$0xff]
    %v169 = vld [vmem:[%s0 + $0x8] sm:$0xff]
    %v170 = vld [vmem:[%s0 + $0x10] sm:$0xff]
    %v171 = vld [vmem:[%s0 + $0x18] sm:$0xff]
    %v172 = vld [vmem:[%s0 + $0x20] sm:$0xff]
    %v173 = vld [vmem:[%s0 + $0x28] sm:$0xff]
    %v174 = vld [vmem:[%s0 + $0x30] sm:$0xff]
    %v175 = vld [vmem:[%s0 + $0x38] sm:$0xff]
    %v176 = vld [vmem:[%s0 + $0x40] sm:$0xff]
    %v177 = vld [vmem:[%s0 + $0x48] sm:$0xff]
    %v178 = vld [vmem:[%s0 + $0x50] sm:$0xff]
    %v179 = vld [vmem:[%s0 + $0x58] sm:$0xff]
    %v180 = vld [vmem:[%s0 + $0x60] sm:$0xff]
    %v181 = vld [vmem:[%s0 + $0x68] sm:$0xff]
    %v182 = vld [vmem:[%s0 + $0x70] sm:$0xff]
    %v183 = vld [vmem:[%s0 + $0x78] sm:$0xff]
    %v184 = vld [vmem:[%s0 + $0x80] sm:$0xff]
    %v185 = vld [vmem:[%s0 + $0x88] sm:$0xff]
    %v186 = vld [vmem:[%s0 + $0x90] sm:$0xff]
    %v187 = vld [vmem:[%s0 + $0x98] sm:$0xff]
    %v188 = vld [vmem:[%s0 + $0xa0] sm:$0xff]
    %v189 = vld [vmem:[%s0 + $0xa8] sm:$0x3]
    %vm211 = vcmask 1046528
    %v212 = vrot.slane %v168, 1
    %v213 = vrot.slane %v169, 1
    %v214 = vsel %vm211, %v212, %v213
    %v215 = vrot.slane %v170, 1
    %v216 = vsel %vm211, %v213, %v215
    %v217 = vrot.slane %v171, 1
    %v218 = vsel %vm211, %v215, %v217
    %v219 = vrot.slane %v172, 1
    %v220 = vsel %vm211, %v217, %v219
    %v221 = vrot.slane %v173, 1
    %v222 = vsel %vm211, %v219, %v221
    %v223 = vrot.slane %v174, 1
    %v224 = vsel %vm211, %v221, %v223
    %v225 = vrot.slane %v175, 1
    %v226 = vsel %vm211, %v223, %v225
    %v227 = vrot.slane %v176, 1
    %v228 = vsel %vm211, %v225, %v227
    %v229 = vrot.slane %v177, 1
    %v230 = vsel %vm211, %v227, %v229
    %v231 = vrot.slane %v178, 1
    %v232 = vsel %vm211, %v229, %v231
    %v233 = vrot.slane %v179, 1
    %v234 = vsel %vm211, %v231, %v233
    %v235 = vrot.slane %v180, 1
    %v236 = vsel %vm211, %v233, %v235
    %v237 = vrot.slane %v181, 1
    %v238 = vsel %vm211, %v235, %v237
    %v239 = vrot.slane %v182, 1
    %v240 = vsel %vm211, %v237, %v239
    %v241 = vrot.slane %v183, 1
    %v242 = vsel %vm211, %v239, %v241
    %v243 = vrot.slane %v184, 1
    %v244 = vsel %vm211, %v241, %v243
    %v245 = vrot.slane %v185, 1
    %v246 = vsel %vm211, %v243, %v245
    %v247 = vrot.slane %v186, 1
    %v248 = vsel %vm211, %v245, %v247
    %v249 = vrot.slane %v187, 1
    %v250 = vsel %vm211, %v247, %v249
    %v251 = vrot.slane %v188, 1
    %v252 = vsel %vm211, %v249, %v251
    %253 = vrot.lane.b32.xlu0 %v214, 1
    %v254 = vpop.permute.xlu0 %253
    %255 = vrot.lane.b32.xlu0 %v216, 1
    %v256 = vpop.permute.xlu0 %255
    %257 = vrot.lane.b32.xlu0 %v218, 1
    %v258 = vpop.permute.xlu0 %257
    %259 = vrot.lane.b32.xlu0 %v220, 1
    %v260 = vpop.permute.xlu0 %259
    %261 = vrot.lane.b32.xlu0 %v222, 1
    %v262 = vpop.permute.xlu0 %261
    %263 = vrot.lane.b32.xlu0 %v224, 1
    %v264 = vpop.permute.xlu0 %263
    %265 = vrot.lane.b32.xlu0 %v226, 1
    %v266 = vpop.permute.xlu0 %265
    %267 = vrot.lane.b32.xlu0 %v228, 1
    %v268 = vpop.permute.xlu0 %267
    %269 = vrot.lane.b32.xlu0 %v230, 1
    %v270 = vpop.permute.xlu0 %269
    %271 = vrot.lane.b32.xlu0 %v232, 1
    %v272 = vpop.permute.xlu0 %271
    %273 = vrot.lane.b32.xlu0 %v234, 1
    %v274 = vpop.permute.xlu0 %273
    %275 = vrot.lane.b32.xlu0 %v236, 1
    %v276 = vpop.permute.xlu0 %275
    %277 = vrot.lane.b32.xlu0 %v238, 1
    %v278 = vpop.permute.xlu0 %277
    %279 = vrot.lane.b32.xlu0 %v240, 1
    %v280 = vpop.permute.xlu0 %279
    %281 = vrot.lane.b32.xlu0 %v242, 1
    %v282 = vpop.permute.xlu0 %281
    %283 = vrot.lane.b32.xlu0 %v244, 1
    %v284 = vpop.permute.xlu0 %283
    %285 = vrot.lane.b32.xlu0 %v246, 1
    %v286 = vpop.permute.xlu0 %285
    %287 = vrot.lane.b32.xlu0 %v248, 1
    %v288 = vpop.permute.xlu0 %287
    %289 = vrot.lane.b32.xlu0 %v250, 1
    %v290 = vpop.permute.xlu0 %289
    %291 = vrot.lane.b32.xlu0 %v252, 1
    %v292 = vpop.permute.xlu0 %291
    %293 = vrot.lane.b32.xlu0 %v251, 1
    %v294 = vpop.permute.xlu0 %293
    %vm316 = vcmask 1045504
    %v317 = vrot.slane %v168, 2
    %v318 = vrot.slane %v169, 2
    %v319 = vsel %vm316, %v317, %v318
    %v320 = vrot.slane %v170, 2
    %v321 = vsel %vm316, %v318, %v320
    %v322 = vrot.slane %v171, 2
    %v323 = vsel %vm316, %v320, %v322
    %v324 = vrot.slane %v172, 2
    %v325 = vsel %vm316, %v322, %v324
    %v326 = vrot.slane %v173, 2
    %v327 = vsel %vm316, %v324, %v326
    %v328 = vrot.slane %v174, 2
    %v329 = vsel %vm316, %v326, %v328
    %v330 = vrot.slane %v175, 2
    %v331 = vsel %vm316, %v328, %v330
    %v332 = vrot.slane %v176, 2
    %v333 = vsel %vm316, %v330, %v332
    %v334 = vrot.slane %v177, 2
    %v335 = vsel %vm316, %v332, %v334
    %v336 = vrot.slane %v178, 2
    %v337 = vsel %vm316, %v334, %v336
    %v338 = vrot.slane %v179, 2
    %v339 = vsel %vm316, %v336, %v338
    %v340 = vrot.slane %v180, 2
    %v341 = vsel %vm316, %v338, %v340
    %v342 = vrot.slane %v181, 2
    %v343 = vsel %vm316, %v340, %v342
    %v344 = vrot.slane %v182, 2
    %v345 = vsel %vm316, %v342, %v344
    %v346 = vrot.slane %v183, 2
    %v347 = vsel %vm316, %v344, %v346
    %v348 = vrot.slane %v184, 2
    %v349 = vsel %vm316, %v346, %v348
    %v350 = vrot.slane %v185, 2
    %v351 = vsel %vm316, %v348, %v350
    %v352 = vrot.slane %v186, 2
    %v353 = vsel %vm316, %v350, %v352
    %v354 = vrot.slane %v187, 2
    %v355 = vsel %vm316, %v352, %v354
    %v356 = vrot.slane %v188, 2
    %v357 = vsel %vm316, %v354, %v356
    %358 = vrot.lane.b32.xlu0 %v319, 2
    %v359 = vpop.permute.xlu0 %358
    %360 = vrot.lane.b32.xlu0 %v321, 2
    %v361 = vpop.permute.xlu0 %360
    %362 = vrot.lane.b32.xlu0 %v323, 2
    %v363 = vpop.permute.xlu0 %362
    %364 = vrot.lane.b32.xlu0 %v325, 2
    %v365 = vpop.permute.xlu0 %364
    %366 = vrot.lane.b32.xlu0 %v327, 2
    %v367 = vpop.permute.xlu0 %366
    %368 = vrot.lane.b32.xlu0 %v329, 2
    %v369 = vpop.permute.xlu0 %368
    %370 = vrot.lane.b32.xlu0 %v331, 2
    %v371 = vpop.permute.xlu0 %370
    %372 = vrot.lane.b32.xlu0 %v333, 2
    %v373 = vpop.permute.xlu0 %372
    %374 = vrot.lane.b32.xlu0 %v335, 2
    %v375 = vpop.permute.xlu0 %374
    %376 = vrot.lane.b32.xlu0 %v337, 2
    %v377 = vpop.permute.xlu0 %376
    %378 = vrot.lane.b32.xlu0 %v339, 2
    %v379 = vpop.permute.xlu0 %378
    %380 = vrot.lane.b32.xlu0 %v341, 2
    %v381 = vpop.permute.xlu0 %380
    %382 = vrot.lane.b32.xlu0 %v343, 2
    %v383 = vpop.permute.xlu0 %382
    %384 = vrot.lane.b32.xlu0 %v345, 2
    %v385 = vpop.permute.xlu0 %384
    %386 = vrot.lane.b32.xlu0 %v347, 2
    %v387 = vpop.permute.xlu0 %386
    %388 = vrot.lane.b32.xlu0 %v349, 2
    %v389 = vpop.permute.xlu0 %388
    %390 = vrot.lane.b32.xlu0 %v351, 2
    %v391 = vpop.permute.xlu0 %390
    %392 = vrot.lane.b32.xlu0 %v353, 2
    %v393 = vpop.permute.xlu0 %392
    %394 = vrot.lane.b32.xlu0 %v355, 2
    %v395 = vpop.permute.xlu0 %394
    %396 = vrot.lane.b32.xlu0 %v357, 2
    %v397 = vpop.permute.xlu0 %396
    %398 = vrot.lane.b32.xlu0 %v356, 2
    %v399 = vpop.permute.xlu0 %398
    %vm422 = vcmask 1044480
    %v423 = vrot.slane %v168, 3
    %v424 = vrot.slane %v169, 3
    %v425 = vsel %vm422, %v423, %v424
    %v426 = vrot.slane %v170, 3
    %v427 = vsel %vm422, %v424, %v426
    %v428 = vrot.slane %v171, 3
    %v429 = vsel %vm422, %v426, %v428
    %v430 = vrot.slane %v172, 3
    %v431 = vsel %vm422, %v428, %v430
    %v432 = vrot.slane %v173, 3
    %v433 = vsel %vm422, %v430, %v432
    %v434 = vrot.slane %v174, 3
    %v435 = vsel %vm422, %v432, %v434
    %v436 = vrot.slane %v175, 3
    %v437 = vsel %vm422, %v434, %v436
    %v438 = vrot.slane %v176, 3
    %v439 = vsel %vm422, %v436, %v438
    %v440 = vrot.slane %v177, 3
    %v441 = vsel %vm422, %v438, %v440
    %v442 = vrot.slane %v178, 3
    %v443 = vsel %vm422, %v440, %v442
    %v444 = vrot.slane %v179, 3
    %v445 = vsel %vm422, %v442, %v444
    %v446 = vrot.slane %v180, 3
    %v447 = vsel %vm422, %v444, %v446
    %v448 = vrot.slane %v181, 3
    %v449 = vsel %vm422, %v446, %v448
    %v450 = vrot.slane %v182, 3
    %v451 = vsel %vm422, %v448, %v450
    %v452 = vrot.slane %v183, 3
    %v453 = vsel %vm422, %v450, %v452
    %v454 = vrot.slane %v184, 3
    %v455 = vsel %vm422, %v452, %v454
    %v456 = vrot.slane %v185, 3
    %v457 = vsel %vm422, %v454, %v456
    %v458 = vrot.slane %v186, 3
    %v459 = vsel %vm422, %v456, %v458
    %v460 = vrot.slane %v187, 3
    %v461 = vsel %vm422, %v458, %v460
    %v462 = vrot.slane %v188, 3
    %v463 = vsel %vm422, %v460, %v462
    %v464 = vrot.slane %v189, 3
    %v465 = vsel %vm422, %v462, %v464
    %466 = vrot.lane.b32.xlu0 %v425, 3
    %v467 = vpop.permute.xlu0 %466
    %468 = vrot.lane.b32.xlu0 %v427, 3
    %v469 = vpop.permute.xlu0 %468
    %470 = vrot.lane.b32.xlu0 %v429, 3
    %v471 = vpop.permute.xlu0 %470
    %472 = vrot.lane.b32.xlu0 %v431, 3
    %v473 = vpop.permute.xlu0 %472
    %474 = vrot.lane.b32.xlu0 %v433, 3
    %v475 = vpop.permute.xlu0 %474
    %476 = vrot.lane.b32.xlu0 %v435, 3
    %v477 = vpop.permute.xlu0 %476
    %478 = vrot.lane.b32.xlu0 %v437, 3
    %v479 = vpop.permute.xlu0 %478
    %480 = vrot.lane.b32.xlu0 %v439, 3
    %v481 = vpop.permute.xlu0 %480
    %482 = vrot.lane.b32.xlu0 %v441, 3
    %v483 = vpop.permute.xlu0 %482
    %484 = vrot.lane.b32.xlu0 %v443, 3
    %v485 = vpop.permute.xlu0 %484
    %486 = vrot.lane.b32.xlu0 %v445, 3
    %v487 = vpop.permute.xlu0 %486
    %488 = vrot.lane.b32.xlu0 %v447, 3
    %v489 = vpop.permute.xlu0 %488
    %490 = vrot.lane.b32.xlu0 %v449, 3
    %v491 = vpop.permute.xlu0 %490
    %492 = vrot.lane.b32.xlu0 %v451, 3
    %v493 = vpop.permute.xlu0 %492
    %494 = vrot.lane.b32.xlu0 %v453, 3
    %v495 = vpop.permute.xlu0 %494
    %496 = vrot.lane.b32.xlu0 %v455, 3
    %v497 = vpop.permute.xlu0 %496
    %498 = vrot.lane.b32.xlu0 %v457, 3
    %v499 = vpop.permute.xlu0 %498
    %500 = vrot.lane.b32.xlu0 %v459, 3
    %v501 = vpop.permute.xlu0 %500
    %502 = vrot.lane.b32.xlu0 %v461, 3
    %v503 = vpop.permute.xlu0 %502
    %504 = vrot.lane.b32.xlu0 %v463, 3
    %v505 = vpop.permute.xlu0 %504
    %506 = vrot.lane.b32.xlu0 %v465, 3
    %v507 = vpop.permute.xlu0 %506
    %vm529 = vcmask 1043456
    %v530 = vrot.slane %v168, 4
    %v531 = vrot.slane %v169, 4
    %v532 = vsel %vm529, %v530, %v531
    %v533 = vrot.slane %v170, 4
    %v534 = vsel %vm529, %v531, %v533
    %v535 = vrot.slane %v171, 4
    %v536 = vsel %vm529, %v533, %v535
    %v537 = vrot.slane %v172, 4
    %v538 = vsel %vm529, %v535, %v537
    %v539 = vrot.slane %v173, 4
    %v540 = vsel %vm529, %v537, %v539
    %v541 = vrot.slane %v174, 4
    %v542 = vsel %vm529, %v539, %v541
    %v543 = vrot.slane %v175, 4
    %v544 = vsel %vm529, %v541, %v543
    %v545 = vrot.slane %v176, 4
    %v546 = vsel %vm529, %v543, %v545
    %v547 = vrot.slane %v177, 4
    %v548 = vsel %vm529, %v545, %v547
    %v549 = vrot.slane %v178, 4
    %v550 = vsel %vm529, %v547, %v549
    %v551 = vrot.slane %v179, 4
    %v552 = vsel %vm529, %v549, %v551
    %v553 = vrot.slane %v180, 4
    %v554 = vsel %vm529, %v551, %v553
    %v555 = vrot.slane %v181, 4
    %v556 = vsel %vm529, %v553, %v555
    %v557 = vrot.slane %v182, 4
    %v558 = vsel %vm529, %v555, %v557
    %v559 = vrot.slane %v183, 4
    %v560 = vsel %vm529, %v557, %v559
    %v561 = vrot.slane %v184, 4
    %v562 = vsel %vm529, %v559, %v561
    %v563 = vrot.slane %v185, 4
    %v564 = vsel %vm529, %v561, %v563
    %v565 = vrot.slane %v186, 4
    %v566 = vsel %vm529, %v563, %v565
    %v567 = vrot.slane %v187, 4
    %v568 = vsel %vm529, %v565, %v567
    %v569 = vrot.slane %v188, 4
    %v570 = vsel %vm529, %v567, %v569
    %v571 = vrot.slane %v189, 4
    %v572 = vsel %vm529, %v569, %v571
    %573 = vrot.lane.b32.xlu0 %v532, 4
    %v574 = vpop.permute.xlu0 %573
    %575 = vrot.lane.b32.xlu0 %v534, 4
    %v576 = vpop.permute.xlu0 %575
    %577 = vrot.lane.b32.xlu0 %v536, 4
    %v578 = vpop.permute.xlu0 %577
    %579 = vrot.lane.b32.xlu0 %v538, 4
    %v580 = vpop.permute.xlu0 %579
    %581 = vrot.lane.b32.xlu0 %v540, 4
    %v582 = vpop.permute.xlu0 %581
    %583 = vrot.lane.b32.xlu0 %v542, 4
    %v584 = vpop.permute.xlu0 %583
    %585 = vrot.lane.b32.xlu0 %v544, 4
    %v586 = vpop.permute.xlu0 %585
    %587 = vrot.lane.b32.xlu0 %v546, 4
    %v588 = vpop.permute.xlu0 %587
    %589 = vrot.lane.b32.xlu0 %v548, 4
    %v590 = vpop.permute.xlu0 %589
    %591 = vrot.lane.b32.xlu0 %v550, 4
    %v592 = vpop.permute.xlu0 %591
    %593 = vrot.lane.b32.xlu0 %v552, 4
    %v594 = vpop.permute.xlu0 %593
    %595 = vrot.lane.b32.xlu0 %v554, 4
    %v596 = vpop.permute.xlu0 %595
    %597 = vrot.lane.b32.xlu0 %v556, 4
    %v598 = vpop.permute.xlu0 %597
    %599 = vrot.lane.b32.xlu0 %v558, 4
    %v600 = vpop.permute.xlu0 %599
    %601 = vrot.lane.b32.xlu0 %v560, 4
    %v602 = vpop.permute.xlu0 %601
    %603 = vrot.lane.b32.xlu0 %v562, 4
    %v604 = vpop.permute.xlu0 %603
    %605 = vrot.lane.b32.xlu0 %v564, 4
    %v606 = vpop.permute.xlu0 %605
    %607 = vrot.lane.b32.xlu0 %v566, 4
    %v608 = vpop.permute.xlu0 %607
    %609 = vrot.lane.b32.xlu0 %v568, 4
    %v610 = vpop.permute.xlu0 %609
    %611 = vrot.lane.b32.xlu0 %v570, 4
    %v612 = vpop.permute.xlu0 %611
    %613 = vrot.lane.b32.xlu0 %v572, 4
    %v614 = vpop.permute.xlu0 %613
    %vm636 = vcmask 7168
    %v637 = vsel %vm636, %v168, %v254
    %v638 = vsel %vm636, %v169, %v256
    %v639 = vsel %vm636, %v170, %v258
    %v640 = vsel %vm636, %v171, %v260
    %v641 = vsel %vm636, %v172, %v262
    %v642 = vsel %vm636, %v173, %v264
    %v643 = vsel %vm636, %v174, %v266
    %v644 = vsel %vm636, %v175, %v268
    %v645 = vsel %vm636, %v176, %v270
    %v646 = vsel %vm636, %v177, %v272
    %v647 = vsel %vm636, %v178, %v274
    %v648 = vsel %vm636, %v179, %v276
    %v649 = vsel %vm636, %v180, %v278
    %v650 = vsel %vm636, %v181, %v280
    %v651 = vsel %vm636, %v182, %v282
    %v652 = vsel %vm636, %v183, %v284
    %v653 = vsel %vm636, %v184, %v286
    %v654 = vsel %vm636, %v185, %v288
    %v655 = vsel %vm636, %v186, %v290
    %v656 = vsel %vm636, %v187, %v292
    %v657 = vsel %vm636, %v188, %v294
    %vm658 = vcmask 15360
    %v659 = vsel %vm658, %v637, %v359
    %v660 = vsel %vm658, %v638, %v361
    %v661 = vsel %vm658, %v639, %v363
    %v662 = vsel %vm658, %v640, %v365
    %v663 = vsel %vm658, %v641, %v367
    %v664 = vsel %vm658, %v642, %v369
    %v665 = vsel %vm658, %v643, %v371
    %v666 = vsel %vm658, %v644, %v373
    %v667 = vsel %vm658, %v645, %v375
    %v668 = vsel %vm658, %v646, %v377
    %v669 = vsel %vm658, %v647, %v379
    %v670 = vsel %vm658, %v648, %v381
    %v671 = vsel %vm658, %v649, %v383
    %v672 = vsel %vm658, %v650, %v385
    %v673 = vsel %vm658, %v651, %v387
    %v674 = vsel %vm658, %v652, %v389
    %v675 = vsel %vm658, %v653, %v391
    %v676 = vsel %vm658, %v654, %v393
    %v677 = vsel %vm658, %v655, %v395
    %v678 = vsel %vm658, %v656, %v397
    %v679 = vsel %vm658, %v657, %v399
    %vm680 = vcmask 23552
    %v681 = vsel %vm680, %v659, %v467
    %v682 = vsel %vm680, %v660, %v469
    %v683 = vsel %vm680, %v661, %v471
    %v684 = vsel %vm680, %v662, %v473
    %v685 = vsel %vm680, %v663, %v475
    %v686 = vsel %vm680, %v664, %v477
    %v687 = vsel %vm680, %v665, %v479
    %v688 = vsel %vm680, %v666, %v481
    %v689 = vsel %vm680, %v667, %v483
    %v690 = vsel %vm680, %v668, %v485
    %v691 = vsel %vm680, %v669, %v487
    %v692 = vsel %vm680, %v670, %v489
    %v693 = vsel %vm680, %v671, %v491
    %v694 = vsel %vm680, %v672, %v493
    %v695 = vsel %vm680, %v673, %v495
    %v696 = vsel %vm680, %v674, %v497
    %v697 = vsel %vm680, %v675, %v499
    %v698 = vsel %vm680, %v676, %v501
    %v699 = vsel %vm680, %v677, %v503
    %v700 = vsel %vm680, %v678, %v505
    %v701 = vsel %vm680, %v679, %v507
    %vm702 = vcmask 31744
    %v703 = vsel %vm702, %v681, %v574
    %v704 = vsel %vm702, %v682, %v576
    %v705 = vsel %vm702, %v683, %v578
    %v706 = vsel %vm702, %v684, %v580
    %v707 = vsel %vm702, %v685, %v582
    %v708 = vsel %vm702, %v686, %v584
    %v709 = vsel %vm702, %v687, %v586
    %v710 = vsel %vm702, %v688, %v588
    %v711 = vsel %vm702, %v689, %v590
    %v712 = vsel %vm702, %v690, %v592
    %v713 = vsel %vm702, %v691, %v594
    %v714 = vsel %vm702, %v692, %v596
    %v715 = vsel %vm702, %v693, %v598
    %v716 = vsel %vm702, %v694, %v600
    %v717 = vsel %vm702, %v695, %v602
    %v718 = vsel %vm702, %v696, %v604
    %v719 = vsel %vm702, %v697, %v606
    %v720 = vsel %vm702, %v698, %v608
    %v721 = vsel %vm702, %v699, %v610
    %v722 = vsel %vm702, %v700, %v612
    %v723 = vsel %vm702, %v701, %v614
    %v724 = vld [vmem:[#allocation2] sm:$0xff]
    %v725 = vld [vmem:[#allocation2 + $0x8] sm:$0xff]
    %v726 = vld [vmem:[#allocation2 + $0x10] sm:$0xff]
    %v727 = vld [vmem:[#allocation2 + $0x18] sm:$0xff]
    %v728 = vld [vmem:[#allocation2 + $0x20] sm:$0xff]
    %v729 = vld [vmem:[#allocation2 + $0x28] sm:$0xff]
    %v730 = vld [vmem:[#allocation2 + $0x30] sm:$0xff]
    %v731 = vld [vmem:[#allocation2 + $0x38] sm:$0xff]
    %v732 = vld [vmem:[#allocation2 + $0x40] sm:$0xff]
    %v733 = vld [vmem:[#allocation2 + $0x48] sm:$0xff]
    %v734 = vld [vmem:[#allocation2 + $0x50] sm:$0xff]
    %v735 = vld [vmem:[#allocation2 + $0x58] sm:$0xff]
    %v736 = vld [vmem:[#allocation2 + $0x60] sm:$0xff]
    %v737 = vld [vmem:[#allocation2 + $0x68] sm:$0xff]
    %v738 = vld [vmem:[#allocation2 + $0x70] sm:$0xff]
    %v739 = vld [vmem:[#allocation2 + $0x78] sm:$0xff]
    %v740 = vld [vmem:[#allocation2 + $0x80] sm:$0xff]
    %v741 = vld [vmem:[#allocation2 + $0x88] sm:$0xff]
    %v742 = vld [vmem:[#allocation2 + $0x90] sm:$0xff]
    %v743 = vld [vmem:[#allocation2 + $0x98] sm:$0xff]
    %v744 = vld [vmem:[#allocation2 + $0xa0] sm:$0x3]
    %v745 = vld [vmem:[#allocation2 + $0xa8] sm:$0x3]
    %vm746 = vcmask 310272
    %v748 = vsel %vm746, %v725, 0
    %v751 = vsel %vm746, %v727, 0
    %v754 = vsel %vm746, %v729, 0
    %v757 = vsel %vm746, %v731, 0
    %v760 = vsel %vm746, %v733, 0
    %v763 = vsel %vm746, %v735, 0
    %v766 = vsel %vm746, %v737, 0
    %v769 = vsel %vm746, %v739, 0
    %v772 = vsel %vm746, %v741, 0
    %v775 = vsel %vm746, %v743, 0
    %v778 = vsel %vm746, %v745, 0
    %v781 = vsel %vm316, %v723, 0
    %783 = vmatprep.subr.mxu0 0.0
    %784 = vmatpush1.msra.mxu0 %v703
    %785 = vmatprep.subr.mxu0 0.0
    %786 = vmatpush1.msra.mxu0 %v704
    %787 = vmatprep.subr.mxu0 0.0
    %788 = vmatpush1.msra.mxu0 %v705
    %789 = vmatprep.subr.mxu0 0.0
    %790 = vmatpush1.msra.mxu0 %v706
    %791 = vmatprep.subr.mxu0 0.0
    %792 = vmatpush1.msra.mxu0 %v707
    %793 = vmatprep.subr.mxu0 0.0
    %794 = vmatpush1.msra.mxu0 %v708
    %795 = vmatprep.subr.mxu0 0.0
    %796 = vmatpush1.msra.mxu0 %v709
    %797 = vmatprep.subr.mxu0 0.0
    %798 = vmatpush1.msra.mxu0 %v710
    %799 = vmatprep.subr.mxu0 0.0
    %800 = vmatpush1.msra.mxu0 %v711
    %801 = vmatprep.subr.mxu0 0.0
    %802 = vmatpush1.msra.mxu0 %v712
    %803 = vmatprep.subr.mxu0 0.0
    %804 = vmatpush1.msra.mxu0 %v713
    %805 = vmatprep.subr.mxu0 0.0
    %806 = vmatpush1.msra.mxu0 %v714
    %807 = vmatprep.subr.mxu0 0.0
    %808 = vmatpush1.msra.mxu0 %v715
    %809 = vmatprep.subr.mxu0 0.0
    %810 = vmatpush1.msra.mxu0 %v716
    %811 = vmatprep.subr.mxu0 0.0
    %812 = vmatpush1.msra.mxu0 %v717
    %813 = vmatprep.subr.mxu0 0.0
    %814 = vmatpush1.msra.mxu0 %v718
    %815 = vmatprep.subr.mxu0 0.0
    %816 = vmatpush1.msra.mxu0 %v719
    %817 = vmatprep.subr.mxu0 0.0
    %818 = vmatpush1.msra.mxu0 %v720
    %819 = vmatprep.subr.mxu0 0.0
    %820 = vmatpush1.msra.mxu0 %v721
    %821 = vmatprep.subr.mxu0 0.0
    %822 = vmatpush1.msra.mxu0 %v722
    %823 = vmatprep.subr.mxu0 0.0
    %824 = vmatpush1.msra.mxu0 %v781
    %825 = vmatprep.subr.mxu0 0.0
    %826 = vmatpush1.msra.mxu0 0.0
    %827 = vmatprep.subr.mxu0 0.0
    %828 = vmatpush1.msra.mxu0 0.0
    %829 = vmatprep.subr.mxu0 0.0
    %830 = vmatpush1.msra.mxu0 0.0
    %831 = vmatprep.subr.mxu0 0.0
    %832 = vmatpush1.msra.mxu0 0.0
    %833 = vmatprep.subr.mxu0 0.0
    %834 = vmatpush1.msra.mxu0 0.0
    %835 = vmatprep.subr.mxu0 0.0
    %836 = vmatpush1.msra.mxu0 0.0
    %837 = vmatprep.subr.mxu0 0.0
    %838 = vmatpush1.msra.mxu0 0.0
    %839 = vmatprep.subr.mxu0 0.0
    %840 = vmatpush1.msra.mxu0 0.0
    %841 = vmatprep.subr.mxu0 0.0
    %842 = vmatpush1.msra.mxu0 0.0
    %843 = vmatprep.subr.mxu0 0.0
    %844 = vmatpush1.msra.mxu0 0.0
    %845 = vmatprep.subr.mxu0 0.0
    %846 = vmatpush1.msra.mxu0 0.0
    %847 = vmatprep.mubr.f32.mxu0 %v748
    %848 = vmatmul.mubr.f32.gmra.mrb[0].mxu0 %v724
    %v849 = vpop.f32.mrb[0].mxu0
    %v850 = vadd.f32 0.0, %v849
    %v851 = vpop.f32.mrb[0].mxu0
    %852 = vmatprep.mubr.f32.mxu0 %v751
    %853 = vmatmul.mubr.f32.gmra.mrb[0].mxu0 %v726
    %v854 = vpop.f32.mrb[0].mxu0
    %v855 = vadd.f32 0.0, %v854
    %v856 = vpop.f32.mrb[0].mxu0
    %857 = vmatprep.mubr.f32.mxu0 %v754
    %858 = vmatmul.mubr.f32.gmra.mrb[0].mxu0 %v728
    %v859 = vpop.f32.mrb[0].mxu0
    %v860 = vadd.f32 0.0, %v859
    %v861 = vpop.f32.mrb[0].mxu0
    %862 = vmatprep.mubr.f32.mxu0 %v757
    %863 = vmatmul.mubr.f32.gmra.mrb[0].mxu0 %v730
    %v864 = vpop.f32.mrb[0].mxu0
    %v865 = vadd.f32 0.0, %v864
    %v866 = vpop.f32.mrb[0].mxu0
    %867 = vmatprep.mubr.f32.mxu0 %v760
    %868 = vmatmul.mubr.f32.gmra.mrb[0].mxu0 %v732
    %v869 = vpop.f32.mrb[0].mxu0
    %v870 = vadd.f32 0.0, %v869
    %v871 = vpop.f32.mrb[0].mxu0
    %872 = vmatprep.mubr.f32.mxu0 %v763
    %873 = vmatmul.mubr.f32.gmra.mrb[0].mxu0 %v734
    %v874 = vpop.f32.mrb[0].mxu0
    %v875 = vadd.f32 0.0, %v874
    %v876 = vpop.f32.mrb[0].mxu0
    %877 = vmatprep.mubr.f32.mxu0 %v766
    %878 = vmatmul.mubr.f32.gmra.mrb[0].mxu0 %v736
    %v879 = vpop.f32.mrb[0].mxu0
    %v880 = vadd.f32 0.0, %v879
    %v881 = vpop.f32.mrb[0].mxu0
    %882 = vmatprep.mubr.f32.mxu0 %v769
    %883 = vmatmul.mubr.f32.gmra.mrb[0].mxu0 %v738
    %v884 = vpop.f32.mrb[0].mxu0
    %v885 = vadd.f32 0.0, %v884
    %v886 = vpop.f32.mrb[0].mxu0
    %887 = vmatprep.mubr.f32.mxu0 %v772
    %888 = vmatmul.mubr.f32.gmra.mrb[0].mxu0 %v740
    %v889 = vpop.f32.mrb[0].mxu0
    %v890 = vadd.f32 0.0, %v889
    %v891 = vpop.f32.mrb[0].mxu0
    %892 = vmatprep.mubr.f32.mxu0 %v775
    %893 = vmatmul.mubr.f32.gmra.mrb[0].mxu0 %v742
    %v894 = vpop.f32.mrb[0].mxu0
    %v895 = vadd.f32 0.0, %v894
    %v896 = vpop.f32.mrb[0].mxu0
    %897 = vmatprep.mubr.f32.mxu0 %v778
    %898 = vmatmul.mubr.f32.gmra.mrb[0].mxu0 %v744
    %v899 = vpop.f32.mrb[0].mxu0
    %v900 = vadd.f32 0.0, %v899
    %v901 = vpop.f32.mrb[0].mxu0
    %902 = vdwg.mxu0
    %v903 = vld [vmem:[#allocation8] sm:$0x1f]
    %v904 = vld [vmem:[#allocation10] sm:$0x1]
    %v906 = vlaneseq
    %v907 = vshrl.u32 %v906, 7
    %v908 = vsub.s32 0, %v907
    %v909 = vrot.slane %v904, %v908
    %vm911 = vcmask 39936
    %v913 = vsel %vm911, %v850, 0
    %v916 = vsel %vm911, %v855, 0
    %v919 = vsel %vm911, %v860, 0
    %v922 = vsel %vm911, %v865, 0
    %v925 = vsel %vm911, %v870, 0
    %v928 = vsel %vm911, %v875, 0
    %v931 = vsel %vm911, %v880, 0
    %v934 = vsel %vm911, %v885, 0
    %v937 = vsel %vm911, %v890, 0
    %v940 = vsel %vm911, %v895, 0
    %v943 = vsel %vm911, %v900, 0
    %v946 = vsel %vm422, %v903, 0
    %948 = vmatprep.subr.mxu0 0.0
    %949 = vmatpush1.msra.mxu0 %v946
    %950 = vmatprep.subr.mxu0 0.0
    %951 = vmatpush1.msra.mxu0 0.0
    %952 = vmatprep.subr.mxu0 0.0
    %953 = vmatpush1.msra.mxu0 0.0
    %954 = vmatprep.subr.mxu0 0.0
    %955 = vmatpush1.msra.mxu0 0.0
    %956 = vmatprep.subr.mxu0 0.0
    %957 = vmatpush1.msra.mxu0 0.0
    %958 = vmatprep.subr.mxu0 0.0
    %959 = vmatpush1.msra.mxu0 0.0
    %960 = vmatprep.subr.mxu0 0.0
    %961 = vmatpush1.msra.mxu0 0.0
    %962 = vmatprep.subr.mxu0 0.0
    %963 = vmatpush1.msra.mxu0 0.0
    %964 = vmatprep.subr.mxu0 0.0
    %965 = vmatpush1.msra.mxu0 0.0
    %966 = vmatprep.subr.mxu0 0.0
    %967 = vmatpush1.msra.mxu0 0.0
    %968 = vmatprep.subr.mxu0 0.0
    %969 = vmatpush1.msra.mxu0 0.0
    %970 = vmatprep.subr.mxu0 0.0
    %971 = vmatpush1.msra.mxu0 0.0
    %972 = vmatprep.subr.mxu0 0.0
    %973 = vmatpush1.msra.mxu0 0.0
    %974 = vmatprep.subr.mxu0 0.0
    %975 = vmatpush1.msra.mxu0 0.0
    %976 = vmatprep.subr.mxu0 0.0
    %977 = vmatpush1.msra.mxu0 0.0
    %978 = vmatprep.subr.mxu0 0.0
    %979 = vmatpush1.msra.mxu0 0.0
    %980 = vmatprep.subr.mxu0 0.0
    %981 = vmatpush1.msra.mxu0 0.0
    %982 = vmatprep.subr.mxu0 0.0
    %983 = vmatpush1.msra.mxu0 0.0
    %984 = vmatprep.subr.mxu0 0.0
    %985 = vmatpush1.msra.mxu0 0.0
    %986 = vmatprep.subr.mxu0 0.0
    %987 = vmatpush1.msra.mxu0 0.0
    %988 = vmatprep.subr.mxu0 0.0
    %989 = vmatpush1.msra.mxu0 0.0
    %990 = vmatprep.subr.mxu0 0.0
    %991 = vmatpush1.msra.mxu0 0.0
    %992 = vmatprep.subr.mxu0 0.0
    %993 = vmatpush1.msra.mxu0 0.0
    %994 = vmatprep.subr.mxu0 0.0
    %995 = vmatpush1.msra.mxu0 0.0
    %996 = vmatprep.subr.mxu0 0.0
    %997 = vmatpush1.msra.mxu0 0.0
    %998 = vmatprep.subr.mxu0 0.0
    %999 = vmatpush1.msra.mxu0 0.0
    %1000 = vmatprep.subr.mxu0 0.0
    %1001 = vmatpush1.msra.mxu0 0.0
    %1002 = vmatprep.subr.mxu0 0.0
    %1003 = vmatpush1.msra.mxu0 0.0
    %1004 = vmatprep.subr.mxu0 0.0
    %1005 = vmatpush1.msra.mxu0 0.0
    %1006 = vmatprep.subr.mxu0 0.0
    %1007 = vmatpush1.msra.mxu0 0.0
    %1008 = vmatprep.subr.mxu0 0.0
    %1009 = vmatpush1.msra.mxu0 0.0
    %1010 = vmatprep.subr.mxu0 0.0
    %1011 = vmatpush1.msra.mxu0 0.0
    %1012 = vmatprep.mubr.f32.mxu0 0.0
    %1013 = vmatmul.mubr.f32.gmra.mrb[0].mxu0 %v913
    %v1014 = vpop.f32.mrb[0].mxu0
    %v1015 = vadd.f32 %v909, %v1014
    %v1016 = vpop.f32.mrb[0].mxu0
    %1017 = vmatprep.mubr.f32.mxu0 0.0
    %1018 = vmatmul.mubr.f32.gmra.mrb[0].mxu0 %v916
    %v1019 = vpop.f32.mrb[0].mxu0
    %v1020 = vadd.f32 %v909, %v1019
    %v1021 = vpop.f32.mrb[0].mxu0
    %1022 = vmatprep.mubr.f32.mxu0 0.0
    %1023 = vmatmul.mubr.f32.gmra.mrb[0].mxu0 %v919
    %v1024 = vpop.f32.mrb[0].mxu0
    %v1025 = vadd.f32 %v909, %v1024
    %v1026 = vpop.f32.mrb[0].mxu0
    %1027 = vmatprep.mubr.f32.mxu0 0.0
    %1028 = vmatmul.mubr.f32.gmra.mrb[0].mxu0 %v922
    %v1029 = vpop.f32.mrb[0].mxu0
    %v1030 = vadd.f32 %v909, %v1029
    %v1031 = vpop.f32.mrb[0].mxu0
    %1032 = vmatprep.mubr.f32.mxu0 0.0
    %1033 = vmatmul.mubr.f32.gmra.mrb[0].mxu0 %v925
    %v1034 = vpop.f32.mrb[0].mxu0
    %v1035 = vadd.f32 %v909, %v1034
    %v1036 = vpop.f32.mrb[0].mxu0
    %1037 = vmatprep.mubr.f32.mxu0 0.0
    %1038 = vmatmul.mubr.f32.gmra.mrb[0].mxu0 %v928
    %v1039 = vpop.f32.mrb[0].mxu0
    %v1040 = vadd.f32 %v909, %v1039
    %v1041 = vpop.f32.mrb[0].mxu0
    %1042 = vmatprep.mubr.f32.mxu0 0.0
    %1043 = vmatmul.mubr.f32.gmra.mrb[0].mxu0 %v931
    %v1044 = vpop.f32.mrb[0].mxu0
    %v1045 = vadd.f32 %v909, %v1044
    %v1046 = vpop.f32.mrb[0].mxu0
    %1047 = vmatprep.mubr.f32.mxu0 0.0
    %1048 = vmatmul.mubr.f32.gmra.mrb[0].mxu0 %v934
    %v1049 = vpop.f32.mrb[0].mxu0
    %v1050 = vadd.f32 %v909, %v1049
    %v1051 = vpop.f32.mrb[0].mxu0
    %1052 = vmatprep.mubr.f32.mxu0 0.0
    %1053 = vmatmul.mubr.f32.gmra.mrb[0].mxu0 %v937
    %v1054 = vpop.f32.mrb[0].mxu0
    %v1055 = vadd.f32 %v909, %v1054
    %v1056 = vpop.f32.mrb[0].mxu0
    %1057 = vmatprep.mubr.f32.mxu0 0.0
    %1058 = vmatmul.mubr.f32.gmra.mrb[0].mxu0 %v940
    %v1059 = vpop.f32.mrb[0].mxu0
    %v1060 = vadd.f32 %v909, %v1059
    %v1061 = vpop.f32.mrb[0].mxu0
    %1062 = vmatprep.mubr.f32.mxu0 0.0
    %1063 = vmatmul.mubr.f32.gmra.mrb[0].mxu0 %v943
    %v1064 = vpop.f32.mrb[0].mxu0
    %v1065 = vadd.f32 %v909, %v1064
    %v1066 = vpop.f32.mrb[0].mxu0
    %1067 = vdwg.mxu0
    %v1068 = vmax.f32 %v1015, 0.0
    %v1069 = vmax.f32 %v1020, 0.0
    %v1070 = vmax.f32 %v1025, 0.0
    %v1071 = vmax.f32 %v1030, 0.0
    %v1072 = vmax.f32 %v1035, 0.0
    %v1073 = vmax.f32 %v1040, 0.0
    %v1074 = vmax.f32 %v1045, 0.0
    %v1075 = vmax.f32 %v1050, 0.0
    %v1076 = vmax.f32 %v1055, 0.0
    %v1077 = vmax.f32 %v1060, 0.0
    %v1078 = vmax.f32 %v1065, 0.0
    %v1089 = vrot.slane %v1068, 1
    %v1090 = vrot.slane %v1069, 1
    %v1091 = vsel %vm211, %v1089, %v1090
    %v1092 = vrot.slane %v1070, 1
    %v1093 = vsel %vm211, %v1090, %v1092
    %v1094 = vrot.slane %v1071, 1
    %v1095 = vsel %vm211, %v1092, %v1094
    %v1096 = vrot.slane %v1072, 1
    %v1097 = vsel %vm211, %v1094, %v1096
    %v1098 = vrot.slane %v1073, 1
    %v1099 = vsel %vm211, %v1096, %v1098
    %v1100 = vrot.slane %v1074, 1
    %v1101 = vsel %vm211, %v1098, %v1100
    %v1102 = vrot.slane %v1075, 1
    %v1103 = vsel %vm211, %v1100, %v1102
    %v1104 = vrot.slane %v1076, 1
    %v1105 = vsel %vm211, %v1102, %v1104
    %v1106 = vrot.slane %v1077, 1
    %v1107 = vsel %vm211, %v1104, %v1106
    %1108 = vrot.lane.b32.xlu0 %v1091, 32
    %v1109 = vpop.permute.xlu0 %1108
    %1110 = vrot.lane.b32.xlu0 %v1093, 32
    %v1111 = vpop.permute.xlu0 %1110
    %1112 = vrot.lane.b32.xlu0 %v1095, 32
    %v1113 = vpop.permute.xlu0 %1112
    %1114 = vrot.lane.b32.xlu0 %v1097, 32
    %v1115 = vpop.permute.xlu0 %1114
    %1116 = vrot.lane.b32.xlu0 %v1099, 32
    %v1117 = vpop.permute.xlu0 %1116
    %1118 = vrot.lane.b32.xlu0 %v1101, 32
    %v1119 = vpop.permute.xlu0 %1118
    %1120 = vrot.lane.b32.xlu0 %v1103, 32
    %v1121 = vpop.permute.xlu0 %1120
    %1122 = vrot.lane.b32.xlu0 %v1105, 32
    %v1123 = vpop.permute.xlu0 %1122
    %1124 = vrot.lane.b32.xlu0 %v1107, 32
    %v1125 = vpop.permute.xlu0 %1124
    %1126 = vrot.lane.b32.xlu0 %v1106, 32
    %v1127 = vpop.permute.xlu0 %1126
    %v1138 = vrot.slane %v1068, 2
    %v1139 = vrot.slane %v1069, 2
    %v1140 = vsel %vm316, %v1138, %v1139
    %v1141 = vrot.slane %v1070, 2
    %v1142 = vsel %vm316, %v1139, %v1141
    %v1143 = vrot.slane %v1071, 2
    %v1144 = vsel %vm316, %v1141, %v1143
    %v1145 = vrot.slane %v1072, 2
    %v1146 = vsel %vm316, %v1143, %v1145
    %v1147 = vrot.slane %v1073, 2
    %v1148 = vsel %vm316, %v1145, %v1147
    %v1149 = vrot.slane %v1074, 2
    %v1150 = vsel %vm316, %v1147, %v1149
    %v1151 = vrot.slane %v1075, 2
    %v1152 = vsel %vm316, %v1149, %v1151
    %v1153 = vrot.slane %v1076, 2
    %v1154 = vsel %vm316, %v1151, %v1153
    %v1155 = vrot.slane %v1077, 2
    %v1156 = vsel %vm316, %v1153, %v1155
    %1157 = vrot.lane.b32.xlu0 %v1140, 64
    %v1158 = vpop.permute.xlu0 %1157
    %1159 = vrot.lane.b32.xlu0 %v1142, 64
    %v1160 = vpop.permute.xlu0 %1159
    %1161 = vrot.lane.b32.xlu0 %v1144, 64
    %v1162 = vpop.permute.xlu0 %1161
    %1163 = vrot.lane.b32.xlu0 %v1146, 64
    %v1164 = vpop.permute.xlu0 %1163
    %1165 = vrot.lane.b32.xlu0 %v1148, 64
    %v1166 = vpop.permute.xlu0 %1165
    %1167 = vrot.lane.b32.xlu0 %v1150, 64
    %v1168 = vpop.permute.xlu0 %1167
    %1169 = vrot.lane.b32.xlu0 %v1152, 64
    %v1170 = vpop.permute.xlu0 %1169
    %1171 = vrot.lane.b32.xlu0 %v1154, 64
    %v1172 = vpop.permute.xlu0 %1171
    %1173 = vrot.lane.b32.xlu0 %v1156, 64
    %v1174 = vpop.permute.xlu0 %1173
    %1175 = vrot.lane.b32.xlu0 %v1155, 64
    %v1176 = vpop.permute.xlu0 %1175
    %v1188 = vrot.slane %v1068, 3
    %v1189 = vrot.slane %v1069, 3
    %v1190 = vsel %vm422, %v1188, %v1189
    %v1191 = vrot.slane %v1070, 3
    %v1192 = vsel %vm422, %v1189, %v1191
    %v1193 = vrot.slane %v1071, 3
    %v1194 = vsel %vm422, %v1191, %v1193
    %v1195 = vrot.slane %v1072, 3
    %v1196 = vsel %vm422, %v1193, %v1195
    %v1197 = vrot.slane %v1073, 3
    %v1198 = vsel %vm422, %v1195, %v1197
    %v1199 = vrot.slane %v1074, 3
    %v1200 = vsel %vm422, %v1197, %v1199
    %v1201 = vrot.slane %v1075, 3
    %v1202 = vsel %vm422, %v1199, %v1201
    %v1203 = vrot.slane %v1076, 3
    %v1204 = vsel %vm422, %v1201, %v1203
    %v1205 = vrot.slane %v1077, 3
    %v1206 = vsel %vm422, %v1203, %v1205
    %v1207 = vrot.slane %v1078, 3
    %v1208 = vsel %vm422, %v1205, %v1207
    %1209 = vrot.lane.b32.xlu0 %v1190, 96
    %v1210 = vpop.permute.xlu0 %1209
    %1211 = vrot.lane.b32.xlu0 %v1192, 96
    %v1212 = vpop.permute.xlu0 %1211
    %1213 = vrot.lane.b32.xlu0 %v1194, 96
    %v1214 = vpop.permute.xlu0 %1213
    %1215 = vrot.lane.b32.xlu0 %v1196, 96
    %v1216 = vpop.permute.xlu0 %1215
    %1217 = vrot.lane.b32.xlu0 %v1198, 96
    %v1218 = vpop.permute.xlu0 %1217
    %1219 = vrot.lane.b32.xlu0 %v1200, 96
    %v1220 = vpop.permute.xlu0 %1219
    %1221 = vrot.lane.b32.xlu0 %v1202, 96
    %v1222 = vpop.permute.xlu0 %1221
    %1223 = vrot.lane.b32.xlu0 %v1204, 96
    %v1224 = vpop.permute.xlu0 %1223
    %1225 = vrot.lane.b32.xlu0 %v1206, 96
    %v1226 = vpop.permute.xlu0 %1225
    %1227 = vrot.lane.b32.xlu0 %v1208, 96
    %v1228 = vpop.permute.xlu0 %1227
    %v1239 = vrot.slane %v1068, 4
    %v1240 = vrot.slane %v1069, 4
    %v1241 = vsel %vm529, %v1239, %v1240
    %v1242 = vrot.slane %v1070, 4
    %v1243 = vsel %vm529, %v1240, %v1242
    %v1244 = vrot.slane %v1071, 4
    %v1245 = vsel %vm529, %v1242, %v1244
    %v1246 = vrot.slane %v1072, 4
    %v1247 = vsel %vm529, %v1244, %v1246
    %v1248 = vrot.slane %v1073, 4
    %v1249 = vsel %vm529, %v1246, %v1248
    %v1250 = vrot.slane %v1074, 4
    %v1251 = vsel %vm529, %v1248, %v1250
    %v1252 = vrot.slane %v1075, 4
    %v1253 = vsel %vm529, %v1250, %v1252
    %v1254 = vrot.slane %v1076, 4
    %v1255 = vsel %vm529, %v1252, %v1254
    %v1256 = vrot.slane %v1077, 4
    %v1257 = vsel %vm529, %v1254, %v1256
    %v1258 = vrot.slane %v1078, 4
    %v1259 = vsel %vm529, %v1256, %v1258
    %vm1269 = vcmask 261120
    %v1270 = vsel %vm1269, %v1068, %v1109
    %v1271 = vsel %vm1269, %v1069, %v1111
    %v1272 = vsel %vm1269, %v1070, %v1113
    %v1273 = vsel %vm1269, %v1071, %v1115
    %v1274 = vsel %vm1269, %v1072, %v1117
    %v1275 = vsel %vm1269, %v1073, %v1119
    %v1276 = vsel %vm1269, %v1074, %v1121
    %v1277 = vsel %vm1269, %v1075, %v1123
    %v1278 = vsel %vm1269, %v1076, %v1125
    %v1279 = vsel %vm1269, %v1077, %v1127
    %vm1280 = vcmask 523264
    %v1281 = vsel %vm1280, %v1270, %v1158
    %v1282 = vsel %vm1280, %v1271, %v1160
    %v1283 = vsel %vm1280, %v1272, %v1162
    %v1284 = vsel %vm1280, %v1273, %v1164
    %v1285 = vsel %vm1280, %v1274, %v1166
    %v1286 = vsel %vm1280, %v1275, %v1168
    %v1287 = vsel %vm1280, %v1276, %v1170
    %v1288 = vsel %vm1280, %v1277, %v1172
    %v1289 = vsel %vm1280, %v1278, %v1174
    %v1290 = vsel %vm1280, %v1279, %v1176
    %vm1291 = vcmask 785408
    %v1292 = vsel %vm1291, %v1281, %v1210
    %v1293 = vsel %vm1291, %v1282, %v1212
    %v1294 = vsel %vm1291, %v1283, %v1214
    %v1295 = vsel %vm1291, %v1284, %v1216
    %v1296 = vsel %vm1291, %v1285, %v1218
    %v1297 = vsel %vm1291, %v1286, %v1220
    %v1298 = vsel %vm1291, %v1287, %v1222
    %v1299 = vsel %vm1291, %v1288, %v1224
    %v1300 = vsel %vm1291, %v1289, %v1226
    %v1301 = vsel %vm1291, %v1290, %v1228
    %v1302 = vld [vmem:[#allocation5] sm:$0xff]
    %v1303 = vld [vmem:[#allocation5 + $0x8] sm:$0xff]
    %v1304 = vld [vmem:[#allocation5 + $0x10] sm:$0xff]
    %v1305 = vld [vmem:[#allocation5 + $0x18] sm:$0xff]
    %v1306 = vld [vmem:[#allocation5 + $0x20] sm:$0x3f]
    %vm1307 = vcmask 637952
    %v1309 = vsel %vm1307, %v1302, 0
    %v1312 = vsel %vm1307, %v1303, 0
    %v1315 = vsel %vm1307, %v1304, 0
    %v1318 = vsel %vm1307, %v1305, 0
    %v1321 = vsel %vm1307, %v1306, 0
    %v1324 = vsel %vm316, %v1301, 0
    %v1326 = vsel %vm316, %v1259, 0
    %1328 = vmatprep.subr.mxu0 %v1241
    %1329 = vmatpush1.msra.mxu0 %v1292
    %1330 = vmatprep.subr.mxu0 %v1243
    %1331 = vmatpush1.msra.mxu0 %v1293
    %1332 = vmatprep.subr.mxu0 %v1245
    %1333 = vmatpush1.msra.mxu0 %v1294
    %1334 = vmatprep.subr.mxu0 %v1247
    %1335 = vmatpush1.msra.mxu0 %v1295
    %1336 = vmatprep.subr.mxu0 %v1249
    %1337 = vmatpush1.msra.mxu0 %v1296
    %1338 = vmatprep.subr.mxu0 %v1251
    %1339 = vmatpush1.msra.mxu0 %v1297
    %1340 = vmatprep.subr.mxu0 %v1253
    %1341 = vmatpush1.msra.mxu0 %v1298
    %1342 = vmatprep.subr.mxu0 %v1255
    %1343 = vmatpush1.msra.mxu0 %v1299
    %1344 = vmatprep.subr.mxu0 %v1257
    %1345 = vmatpush1.msra.mxu0 %v1300
    %1346 = vmatprep.subr.mxu0 %v1326
    %1347 = vmatpush1.msra.mxu0 %v1324
    %1348 = vmatprep.subr.mxu0 0.0
    %1349 = vmatpush1.msra.mxu0 0.0
    %1350 = vmatprep.subr.mxu0 0.0
    %1351 = vmatpush1.msra.mxu0 0.0
    %1352 = vmatprep.subr.mxu0 0.0
    %1353 = vmatpush1.msra.mxu0 0.0
    %1354 = vmatprep.subr.mxu0 0.0
    %1355 = vmatpush1.msra.mxu0 0.0
    %1356 = vmatprep.subr.mxu0 0.0
    %1357 = vmatpush1.msra.mxu0 0.0
    %1358 = vmatprep.subr.mxu0 0.0
    %1359 = vmatpush1.msra.mxu0 0.0
    %1360 = vmatprep.subr.mxu0 0.0
    %1361 = vmatpush1.msra.mxu0 0.0
    %1362 = vmatprep.subr.mxu0 0.0
    %1363 = vmatpush1.msra.mxu0 0.0
    %1364 = vmatprep.subr.mxu0 0.0
    %1365 = vmatpush1.msra.mxu0 0.0
    %1366 = vmatprep.subr.mxu0 0.0
    %1367 = vmatpush1.msra.mxu0 0.0
    %1368 = vmatprep.subr.mxu0 0.0
    %1369 = vmatpush1.msra.mxu0 0.0
    %1370 = vmatprep.subr.mxu0 0.0
    %1371 = vmatpush1.msra.mxu0 0.0
    %1372 = vmatprep.subr.mxu0 0.0
    %1373 = vmatpush1.msra.mxu0 0.0
    %1374 = vmatprep.subr.mxu0 0.0
    %1375 = vmatpush1.msra.mxu0 0.0
    %1376 = vmatprep.subr.mxu0 0.0
    %1377 = vmatpush1.msra.mxu0 0.0
    %1378 = vmatprep.subr.mxu0 0.0
    %1379 = vmatpush1.msra.mxu0 0.0
    %1380 = vmatprep.subr.mxu0 0.0
    %1381 = vmatpush1.msra.mxu0 0.0
    %1382 = vmatprep.subr.mxu0 0.0
    %1383 = vmatpush1.msra.mxu0 0.0
    %1384 = vmatprep.subr.mxu0 0.0
    %1385 = vmatpush1.msra.mxu0 0.0
    %1386 = vmatprep.subr.mxu0 0.0
    %1387 = vmatpush1.msra.mxu0 0.0
    %1388 = vmatprep.subr.mxu0 0.0
    %1389 = vmatpush1.msra.mxu0 0.0
    %1390 = vmatprep.subr.mxu0 0.0
    %1391 = vmatpush1.msra.mxu0 0.0
    %1392 = vmatprep.mubr.f32.mxu0 0.0
    %1393 = vmatmul.mubr.f32.gmra.mrb[0].mxu0 %v1309
    %v1394 = vpop.f32.mrb[0].mxu0
    %v1395 = vadd.f32 0.0, %v1394
    %v1396 = vpop.f32.mrb[0].mxu0
    %v1397 = vadd.f32 0.0, %v1396
    %1398 = vmatprep.mubr.f32.mxu0 0.0
    %1399 = vmatmul.mubr.f32.gmra.mrb[0].mxu0 %v1312
    %v1400 = vpop.f32.mrb[0].mxu0
    %v1401 = vadd.f32 0.0, %v1400
    %v1402 = vpop.f32.mrb[0].mxu0
    %v1403 = vadd.f32 0.0, %v1402
    %1404 = vmatprep.mubr.f32.mxu0 0.0
    %1405 = vmatmul.mubr.f32.gmra.mrb[0].mxu0 %v1315
    %v1406 = vpop.f32.mrb[0].mxu0
    %v1407 = vadd.f32 0.0, %v1406
    %v1408 = vpop.f32.mrb[0].mxu0
    %v1409 = vadd.f32 0.0, %v1408
    %1410 = vmatprep.mubr.f32.mxu0 0.0
    %1411 = vmatmul.mubr.f32.gmra.mrb[0].mxu0 %v1318
    %v1412 = vpop.f32.mrb[0].mxu0
    %v1413 = vadd.f32 0.0, %v1412
    %v1414 = vpop.f32.mrb[0].mxu0
    %v1415 = vadd.f32 0.0, %v1414
    %1416 = vmatprep.mubr.f32.mxu0 0.0
    %1417 = vmatmul.mubr.f32.gmra.mrb[0].mxu0 %v1321
    %v1418 = vpop.f32.mrb[0].mxu0
    %v1419 = vadd.f32 0.0, %v1418
    %v1420 = vpop.f32.mrb[0].mxu0
    %v1421 = vadd.f32 0.0, %v1420
    %1422 = vdwg.mxu0
    %v1423 = vld [vmem:[%s6] sm:$0xff]
    %v1424 = vld [vmem:[%s6 + $0x8] sm:$0xff]
    %v1425 = vld [vmem:[%s6 + $0x10] sm:$0xff]
    %v1426 = vld [vmem:[%s6 + $0x18] sm:$0xff]
    %v1427 = vld [vmem:[%s6 + $0x20] sm:$0xff]
    %v1428 = vld [vmem:[%s6 + $0x28] sm:$0xff]
    %v1429 = vld [vmem:[%s6 + $0x30] sm:$0xff]
    %v1430 = vld [vmem:[%s6 + $0x38] sm:$0xff]
    %v1431 = vld [vmem:[%s6 + $0x40] sm:$0xff]
    %v1432 = vld [vmem:[%s6 + $0x48] sm:$0xff]
    %v1433 = vld [vmem:[%s6 + $0x50] sm:$0xff]
    %v1434 = vld [vmem:[%s6 + $0x58] sm:$0xff]
    %v1435 = vld [vmem:[%s6 + $0x60] sm:$0xff]
    %v1436 = vld [vmem:[%s6 + $0x68] sm:$0xff]
    %v1437 = vld [vmem:[%s6 + $0x70] sm:$0xff]
    %v1438 = vld [vmem:[%s6 + $0x78] sm:$0xff]
    %v1439 = vld [vmem:[%s6 + $0x80] sm:$0xff]
    %v1440 = vld [vmem:[%s6 + $0x88] sm:$0xff]
    %v1441 = vld [vmem:[%s6 + $0x90] sm:$0xff]
    %v1442 = vld [vmem:[%s6 + $0x98] sm:$0xff]
    %v1443 = vld [vmem:[#allocation11] sm:$0x1]
    %v1445 = vlaneseq
    %v1446 = vshrl.u32 %v1445, 7
    %v1447 = vsub.s32 0, %v1446
    %v1448 = vrot.slane %v1443, %v1447
    %v1451 = vsel %vm1269, %v1397, 0
    %v1454 = vsel %vm1269, %v1403, 0
    %v1457 = vsel %vm1269, %v1409, 0
    %v1460 = vsel %vm1269, %v1415, 0
    %v1463 = vsel %vm1269, %v1421, 0
    %1465 = vmatprep.subr.mxu0 0.0
    %1466 = vmatpush1.msra.mxu0 %v1423
    %1467 = vmatprep.subr.mxu0 0.0
    %1468 = vmatpush1.msra.mxu0 %v1424
    %1469 = vmatprep.subr.mxu0 0.0
    %1470 = vmatpush1.msra.mxu0 %v1425
    %1471 = vmatprep.subr.mxu0 0.0
    %1472 = vmatpush1.msra.mxu0 %v1426
    %1473 = vmatprep.subr.mxu0 0.0
    %1474 = vmatpush1.msra.mxu0 %v1427
    %1475 = vmatprep.subr.mxu0 0.0
    %1476 = vmatpush1.msra.mxu0 %v1428
    %1477 = vmatprep.subr.mxu0 0.0
    %1478 = vmatpush1.msra.mxu0 %v1429
    %1479 = vmatprep.subr.mxu0 0.0
    %1480 = vmatpush1.msra.mxu0 %v1430
    %1481 = vmatprep.subr.mxu0 0.0
    %1482 = vmatpush1.msra.mxu0 %v1431
    %1483 = vmatprep.subr.mxu0 0.0
    %1484 = vmatpush1.msra.mxu0 %v1432
    %1485 = vmatprep.subr.mxu0 0.0
    %1486 = vmatpush1.msra.mxu0 %v1433
    %1487 = vmatprep.subr.mxu0 0.0
    %1488 = vmatpush1.msra.mxu0 %v1434
    %1489 = vmatprep.subr.mxu0 0.0
    %1490 = vmatpush1.msra.mxu0 %v1435
    %1491 = vmatprep.subr.mxu0 0.0
    %1492 = vmatpush1.msra.mxu0 %v1436
    %1493 = vmatprep.subr.mxu0 0.0
    %1494 = vmatpush1.msra.mxu0 %v1437
    %1495 = vmatprep.subr.mxu0 0.0
    %1496 = vmatpush1.msra.mxu0 %v1438
    %1497 = vmatprep.subr.mxu0 0.0
    %1498 = vmatpush1.msra.mxu0 %v1439
    %1499 = vmatprep.subr.mxu0 0.0
    %1500 = vmatpush1.msra.mxu0 %v1440
    %1501 = vmatprep.subr.mxu0 0.0
    %1502 = vmatpush1.msra.mxu0 %v1441
    %1503 = vmatprep.subr.mxu0 0.0
    %1504 = vmatpush1.msra.mxu0 %v1442
    %1505 = vmatprep.subr.mxu0 0.0
    %1506 = vmatpush1.msra.mxu0 0.0
    %1507 = vmatprep.subr.mxu0 0.0
    %1508 = vmatpush1.msra.mxu0 0.0
    %1509 = vmatprep.subr.mxu0 0.0
    %1510 = vmatpush1.msra.mxu0 0.0
    %1511 = vmatprep.subr.mxu0 0.0
    %1512 = vmatpush1.msra.mxu0 0.0
    %1513 = vmatprep.subr.mxu0 0.0
    %1514 = vmatpush1.msra.mxu0 0.0
    %1515 = vmatprep.subr.mxu0 0.0
    %1516 = vmatpush1.msra.mxu0 0.0
    %1517 = vmatprep.subr.mxu0 0.0
    %1518 = vmatpush1.msra.mxu0 0.0
    %1519 = vmatprep.subr.mxu0 0.0
    %1520 = vmatpush1.msra.mxu0 0.0
    %1521 = vmatprep.subr.mxu0 0.0
    %1522 = vmatpush1.msra.mxu0 0.0
    %1523 = vmatprep.subr.mxu0 0.0
    %1524 = vmatpush1.msra.mxu0 0.0
    %1525 = vmatprep.subr.mxu0 0.0
    %1526 = vmatpush1.msra.mxu0 0.0
    %1527 = vmatprep.subr.mxu0 0.0
    %1528 = vmatpush1.msra.mxu0 0.0
    %1529 = vmatprep.mubr.f32.mxu0 %v1451
    %1530 = vmatmul.mubr.f32.gmra.mrb[0].mxu0 %v1395
    %v1531 = vpop.f32.mrb[0].mxu0
    %v1532 = vadd.f32 %v1448, %v1531
    %v1533 = vpop.f32.mrb[0].mxu0
    %1534 = vmatprep.mubr.f32.mxu0 %v1454
    %1535 = vmatmul.mubr.f32.gmra.mrb[0].mxu0 %v1401
    %v1536 = vpop.f32.mrb[0].mxu0
    %v1537 = vadd.f32 %v1448, %v1536
    %v1538 = vpop.f32.mrb[0].mxu0
    %1539 = vmatprep.mubr.f32.mxu0 %v1457
    %1540 = vmatmul.mubr.f32.gmra.mrb[0].mxu0 %v1407
    %v1541 = vpop.f32.mrb[0].mxu0
    %v1542 = vadd.f32 %v1448, %v1541
    %v1543 = vpop.f32.mrb[0].mxu0
    %1544 = vmatprep.mubr.f32.mxu0 %v1460
    %1545 = vmatmul.mubr.f32.gmra.mrb[0].mxu0 %v1413
    %v1546 = vpop.f32.mrb[0].mxu0
    %v1547 = vadd.f32 %v1448, %v1546
    %v1548 = vpop.f32.mrb[0].mxu0
    %1549 = vmatprep.mubr.f32.mxu0 %v1463
    %1550 = vmatmul.mubr.f32.gmra.mrb[0].mxu0 %v1419
    %v1551 = vpop.f32.mrb[0].mxu0
    %v1552 = vadd.f32 %v1448, %v1551
    %v1553 = vpop.f32.mrb[0].mxu0
    %1554 = vdwg.mxu0
    %v1555 = vmax.f32 %v1532, 0.0
    %v1556 = vmax.f32 %v1537, 0.0
    %v1557 = vmax.f32 %v1542, 0.0
    %v1558 = vmax.f32 %v1547, 0.0
    %v1559 = vmax.f32 %v1552, 0.0
    %v1565 = vrot.slane %v1555, 1
    %v1566 = vrot.slane %v1556, 1
    %v1567 = vsel %vm211, %v1565, %v1566
    %v1568 = vrot.slane %v1557, 1
    %v1569 = vsel %vm211, %v1566, %v1568
    %v1570 = vrot.slane %v1558, 1
    %v1571 = vsel %vm211, %v1568, %v1570
    %v1572 = vrot.slane %v1559, 1
    %v1573 = vsel %vm211, %v1570, %v1572
    %1574 = vrot.lane.b32.xlu0 %v1567, 64
    %v1575 = vpop.permute.xlu0 %1574
    %1576 = vrot.lane.b32.xlu0 %v1569, 64
    %v1577 = vpop.permute.xlu0 %1576
    %1578 = vrot.lane.b32.xlu0 %v1571, 64
    %v1579 = vpop.permute.xlu0 %1578
    %1580 = vrot.lane.b32.xlu0 %v1573, 64
    %v1581 = vpop.permute.xlu0 %1580
    %1582 = vrot.lane.b32.xlu0 %v1572, 64
    %v1583 = vpop.permute.xlu0 %1582
    %v1589 = vrot.slane %v1555, 2
    %v1590 = vrot.slane %v1556, 2
    %v1591 = vsel %vm316, %v1589, %v1590
    %v1592 = vrot.slane %v1557, 2
    %v1593 = vsel %vm316, %v1590, %v1592
    %v1594 = vrot.slane %v1558, 2
    %v1595 = vsel %vm316, %v1592, %v1594
    %v1596 = vrot.slane %v1559, 2
    %v1597 = vsel %vm316, %v1594, %v1596
    %v1603 = vrot.slane %v1555, 3
    %v1604 = vrot.slane %v1556, 3
    %v1605 = vsel %vm422, %v1603, %v1604
    %v1606 = vrot.slane %v1557, 3
    %v1607 = vsel %vm422, %v1604, %v1606
    %v1608 = vrot.slane %v1558, 3
    %v1609 = vsel %vm422, %v1606, %v1608
    %v1610 = vrot.slane %v1559, 3
    %v1611 = vsel %vm422, %v1608, %v1610
    %1612 = vrot.lane.b32.xlu0 %v1605, 64
    %v1613 = vpop.permute.xlu0 %1612
    %1614 = vrot.lane.b32.xlu0 %v1607, 64
    %v1615 = vpop.permute.xlu0 %1614
    %1616 = vrot.lane.b32.xlu0 %v1609, 64
    %v1617 = vpop.permute.xlu0 %1616
    %1618 = vrot.lane.b32.xlu0 %v1611, 64
    %v1619 = vpop.permute.xlu0 %1618
    %1620 = vrot.lane.b32.xlu0 %v1610, 64
    %v1621 = vpop.permute.xlu0 %1620
    %v1627 = vrot.slane %v1555, 4
    %v1628 = vrot.slane %v1556, 4
    %v1629 = vsel %vm529, %v1627, %v1628
    %v1630 = vrot.slane %v1557, 4
    %v1631 = vsel %vm529, %v1628, %v1630
    %v1632 = vrot.slane %v1558, 4
    %v1633 = vsel %vm529, %v1630, %v1632
    %v1634 = vrot.slane %v1559, 4
    %v1635 = vsel %vm529, %v1632, %v1634
    %v1640 = vsel %vm1280, %v1555, %v1575
    %v1641 = vsel %vm1280, %v1556, %v1577
    %v1642 = vsel %vm1280, %v1557, %v1579
    %v1643 = vsel %vm1280, %v1558, %v1581
    %v1644 = vsel %vm1280, %v1559, %v1583
    %v1645 = vsel %vm1280, %v1591, %v1613
    %v1646 = vsel %vm1280, %v1593, %v1615
    %v1647 = vsel %vm1280, %v1595, %v1617
    %v1648 = vsel %vm1280, %v1597, %v1619
    %v1649 = vsel %vm1280, %v1596, %v1621
    %v1650 = vld [vmem:[#allocation7] sm:$0xff]
    %v1651 = vld [vmem:[#allocation7 + $0x8] sm:$0xff]
    %vm1652 = vcmask 277504
    %v1654 = vsel %vm1652, %v1650, 0
    %v1657 = vsel %vm1652, %v1651, 0
    %vm1659 = vcmask 1041408
    %v1661 = vsel %vm1659, %v1644, 0
    %v1664 = vsel %vm1659, %v1649, 0
    %v1666 = vsel %vm1659, %v1634, 0
    %1668 = vmatprep.subr.mxu0 %v1645
    %1669 = vmatpush1.msra.mxu0 %v1640
    %1670 = vmatprep.subr.mxu0 %v1646
    %1671 = vmatpush1.msra.mxu0 %v1641
    %1672 = vmatprep.subr.mxu0 %v1647
    %1673 = vmatpush1.msra.mxu0 %v1642
    %1674 = vmatprep.subr.mxu0 %v1648
    %1675 = vmatpush1.msra.mxu0 %v1643
    %1676 = vmatprep.subr.mxu0 %v1664
    %1677 = vmatpush1.msra.mxu0 %v1661
    %1678 = vmatprep.subr.mxu0 0.0
    %1679 = vmatpush1.msra.mxu0 0.0
    %1680 = vmatprep.subr.mxu0 0.0
    %1681 = vmatpush1.msra.mxu0 0.0
    %1682 = vmatprep.subr.mxu0 0.0
    %1683 = vmatpush1.msra.mxu0 0.0
    %1684 = vmatprep.subr.mxu0 0.0
    %1685 = vmatpush1.msra.mxu0 0.0
    %1686 = vmatprep.subr.mxu0 0.0
    %1687 = vmatpush1.msra.mxu0 0.0
    %1688 = vmatprep.subr.mxu0 0.0
    %1689 = vmatpush1.msra.mxu0 0.0
    %1690 = vmatprep.subr.mxu0 0.0
    %1691 = vmatpush1.msra.mxu0 0.0
    %1692 = vmatprep.subr.mxu0 0.0
    %1693 = vmatpush1.msra.mxu0 0.0
    %1694 = vmatprep.subr.mxu0 0.0
    %1695 = vmatpush1.msra.mxu0 0.0
    %1696 = vmatprep.subr.mxu0 0.0
    %1697 = vmatpush1.msra.mxu0 0.0
    %1698 = vmatprep.subr.mxu0 0.0
    %1699 = vmatpush1.msra.mxu0 0.0
    %1700 = vmatprep.subr.mxu0 0.0
    %1701 = vmatpush1.msra.mxu0 0.0
    %1702 = vmatprep.subr.mxu0 0.0
    %1703 = vmatpush1.msra.mxu0 0.0
    %1704 = vmatprep.subr.mxu0 0.0
    %1705 = vmatpush1.msra.mxu0 0.0
    %1706 = vmatprep.subr.mxu0 0.0
    %1707 = vmatpush1.msra.mxu0 0.0
    %1708 = vmatprep.subr.mxu0 0.0
    %1709 = vmatpush1.msra.mxu0 0.0
    %1710 = vmatprep.subr.mxu0 0.0
    %1711 = vmatpush1.msra.mxu0 0.0
    %1712 = vmatprep.subr.mxu0 0.0
    %1713 = vmatpush1.msra.mxu0 0.0
    %1714 = vmatprep.subr.mxu0 0.0
    %1715 = vmatpush1.msra.mxu0 0.0
    %1716 = vmatprep.subr.mxu0 0.0
    %1717 = vmatpush1.msra.mxu0 0.0
    %1718 = vmatprep.subr.mxu0 0.0
    %1719 = vmatpush1.msra.mxu0 0.0
    %1720 = vmatprep.subr.mxu0 0.0
    %1721 = vmatpush1.msra.mxu0 0.0
    %1722 = vmatprep.subr.mxu0 0.0
    %1723 = vmatpush1.msra.mxu0 0.0
    %1724 = vmatprep.subr.mxu0 0.0
    %1725 = vmatpush1.msra.mxu0 0.0
    %1726 = vmatprep.subr.mxu0 0.0
    %1727 = vmatpush1.msra.mxu0 0.0
    %1728 = vmatprep.subr.mxu0 0.0
    %1729 = vmatpush1.msra.mxu0 0.0
    %1730 = vmatprep.subr.mxu0 0.0
    %1731 = vmatpush1.msra.mxu0 0.0
    %1732 = vmatprep.mubr.f32.mxu0 0.0
    %1733 = vmatmul.mubr.f32.gmra.mrb[0].mxu0 %v1654
    %v1734 = vpop.f32.mrb[0].mxu0
    %v1735 = vadd.f32 0.0, %v1734
    %v1736 = vpop.f32.mrb[0].mxu0
    %v1737 = vadd.f32 0.0, %v1736
    %1738 = vmatprep.mubr.f32.mxu0 0.0
    %1739 = vmatmul.mubr.f32.gmra.mrb[0].mxu0 %v1657
    %v1740 = vpop.f32.mrb[0].mxu0
    %v1741 = vadd.f32 0.0, %v1740
    %v1742 = vpop.f32.mrb[0].mxu0
    %v1743 = vadd.f32 0.0, %v1742
    %1744 = vdwg.mxu0
    %1745 = vmatprep.subr.mxu0 0.0
    %1746 = vmatpush1.msra.mxu0 %v1629
    %1747 = vmatprep.subr.mxu0 0.0
    %1748 = vmatpush1.msra.mxu0 %v1631
    %1749 = vmatprep.subr.mxu0 0.0
    %1750 = vmatpush1.msra.mxu0 %v1633
    %1751 = vmatprep.subr.mxu0 0.0
    %1752 = vmatpush1.msra.mxu0 %v1635
    %1753 = vmatprep.subr.mxu0 0.0
    %1754 = vmatpush1.msra.mxu0 %v1666
    %1755 = vmatprep.subr.mxu0 0.0
    %1756 = vmatpush1.msra.mxu0 0.0
    %1757 = vmatprep.subr.mxu0 0.0
    %1758 = vmatpush1.msra.mxu0 0.0
    %1759 = vmatprep.subr.mxu0 0.0
    %1760 = vmatpush1.msra.mxu0 0.0
    %1761 = vmatprep.subr.mxu0 0.0
    %1762 = vmatpush1.msra.mxu0 0.0
    %1763 = vmatprep.subr.mxu0 0.0
    %1764 = vmatpush1.msra.mxu0 0.0
    %1765 = vmatprep.subr.mxu0 0.0
    %1766 = vmatpush1.msra.mxu0 0.0
    %1767 = vmatprep.subr.mxu0 0.0
    %1768 = vmatpush1.msra.mxu0 0.0
    %1769 = vmatprep.subr.mxu0 0.0
    %1770 = vmatpush1.msra.mxu0 0.0
    %1771 = vmatprep.subr.mxu0 0.0
    %1772 = vmatpush1.msra.mxu0 0.0
    %1773 = vmatprep.subr.mxu0 0.0
    %1774 = vmatpush1.msra.mxu0 0.0
    %1775 = vmatprep.subr.mxu0 0.0
    %1776 = vmatpush1.msra.mxu0 0.0
    %1777 = vmatprep.subr.mxu0 0.0
    %1778 = vmatpush1.msra.mxu0 0.0
    %1779 = vmatprep.subr.mxu0 0.0
    %1780 = vmatpush1.msra.mxu0 0.0
    %1781 = vmatprep.subr.mxu0 0.0
    %1782 = vmatpush1.msra.mxu0 0.0
    %1783 = vmatprep.subr.mxu0 0.0
    %1784 = vmatpush1.msra.mxu0 0.0
    %1785 = vmatprep.subr.mxu0 0.0
    %1786 = vmatpush1.msra.mxu0 0.0
    %1787 = vmatprep.subr.mxu0 0.0
    %1788 = vmatpush1.msra.mxu0 0.0
    %1789 = vmatprep.subr.mxu0 0.0
    %1790 = vmatpush1.msra.mxu0 0.0
    %1791 = vmatprep.subr.mxu0 0.0
    %1792 = vmatpush1.msra.mxu0 0.0
    %1793 = vmatprep.subr.mxu0 0.0
    %1794 = vmatpush1.msra.mxu0 0.0
    %1795 = vmatprep.subr.mxu0 0.0
    %1796 = vmatpush1.msra.mxu0 0.0
    %1797 = vmatprep.subr.mxu0 0.0
    %1798 = vmatpush1.msra.mxu0 0.0
    %1799 = vmatprep.subr.mxu0 0.0
    %1800 = vmatpush1.msra.mxu0 0.0
    %1801 = vmatprep.subr.mxu0 0.0
    %1802 = vmatpush1.msra.mxu0 0.0
    %1803 = vmatprep.subr.mxu0 0.0
    %1804 = vmatpush1.msra.mxu0 0.0
    %1805 = vmatprep.subr.mxu0 0.0
    %1806 = vmatpush1.msra.mxu0 0.0
    %1807 = vmatprep.subr.mxu0 0.0
    %1808 = vmatpush1.msra.mxu0 0.0
    %1809 = vmatprep.mubr.f32.mxu0 0.0
    %1810 = vmatmul.mubr.f32.gmra.mrb[0].mxu0 %v1654
    %v1811 = vpop.f32.mrb[0].mxu0
    %v1812 = vadd.f32 0.0, %v1811
    %v1813 = vpop.f32.mrb[0].mxu0
    %1814 = vmatprep.mubr.f32.mxu0 0.0
    %1815 = vmatmul.mubr.f32.gmra.mrb[0].mxu0 %v1657
    %v1816 = vpop.f32.mrb[0].mxu0
    %v1817 = vadd.f32 0.0, %v1816
    %v1818 = vpop.f32.mrb[0].mxu0
    %1819 = vdwg.mxu0
    %v1820 = vld [vmem:[#allocation13] sm:$0xff]
    %v1821 = vld [vmem:[#allocation13 + $0x8] sm:$0xff]
    %v1822 = vld [vmem:[#allocation13 + $0x10] sm:$0xff]
    %v1823 = vld [vmem:[#allocation13 + $0x18] sm:$0xff]
    %v1824 = vld [vmem:[#allocation13 + $0x20] sm:$0xff]
    %v1825 = vld [vmem:[#allocation13 + $0x28] sm:$0xff]
    %v1826 = vld [vmem:[#allocation13 + $0x30] sm:$0xff]
    %v1827 = vld [vmem:[#allocation13 + $0x38] sm:$0xff]
    %v1828 = vld [vmem:[#allocation13 + $0x40] sm:$0xff]
    %v1829 = vld [vmem:[#allocation13 + $0x48] sm:$0xff]
    %v1830 = vld [vmem:[#allocation13 + $0x50] sm:$0xff]
    %v1831 = vld [vmem:[#allocation13 + $0x58] sm:$0xff]
    %v1832 = vld [vmem:[#allocation13 + $0x60] sm:$0xff]
    %v1833 = vld [vmem:[#allocation13 + $0x68] sm:$0xff]
    %v1834 = vld [vmem:[#allocation13 + $0x70] sm:$0xff]
    %v1835 = vld [vmem:[#allocation13 + $0x78] sm:$0xff]
    %v1836 = vld [vmem:[#allocation13 + $0x80] sm:$0xff]
    %v1837 = vld [vmem:[#allocation13 + $0x88] sm:$0xff]
    %v1838 = vld [vmem:[#allocation13 + $0x90] sm:$0xff]
    %v1839 = vld [vmem:[#allocation13 + $0x98] sm:$0xff]
    %v1840 = vld [vmem:[#allocation13 + $0xa0] sm:$0xff]
    %v1841 = vld [vmem:[#allocation13 + $0xa8] sm:$0xff]
    %v1842 = vld [vmem:[#allocation13 + $0xb0] sm:$0xff]
    %v1843 = vld [vmem:[#allocation13 + $0xb8] sm:$0xff]
    %v1844 = vld [vmem:[#allocation13 + $0xc0] sm:$0xff]
    %v1845 = vld [vmem:[#allocation13 + $0xc8] sm:$0xff]
    %v1846 = vld [vmem:[#allocation13 + $0xd0] sm:$0xff]
    %v1847 = vld [vmem:[#allocation13 + $0xd8] sm:$0xff]
    %v1848 = vld [vmem:[#allocation13 + $0xe0] sm:$0xff]
    %v1849 = vld [vmem:[#allocation13 + $0xe8] sm:$0xff]
    %v1850 = vld [vmem:[#allocation13 + $0xf0] sm:$0xff]
    %v1851 = vld [vmem:[#allocation13 + $0xf8] sm:$0xff]
    %v1852 = vld [vmem:[#allocation13 + $0x100] sm:$0xff]
    %v1853 = vld [vmem:[#allocation13 + $0x108] sm:$0xff]
    %v1854 = vld [vmem:[#allocation13 + $0x110] sm:$0xff]
    %v1855 = vld [vmem:[#allocation13 + $0x118] sm:$0xff]
    %v1856 = vld [vmem:[#allocation13 + $0x120] sm:$0xff]
    %v1857 = vld [vmem:[#allocation13 + $0x128] sm:$0xff]
    %v1858 = vld [vmem:[#allocation13 + $0x130] sm:$0xff]
    %v1859 = vld [vmem:[#allocation13 + $0x138] sm:$0xff]
    %v1860 = vld [vmem:[#allocation14] sm:$0x1]
    %v1862 = vlaneseq
    %v1863 = vshrl.u32 %v1862, 7
    %v1864 = vsub.s32 0, %v1863
    %v1865 = vrot.slane %v1860, %v1864
    %v1868 = vsel %vm1280, %v1812, 0
    %v1871 = vsel %vm1280, %v1817, 0
    %1873 = vmatprep.subr.mxu0 0.0
    %1874 = vmatpush1.msra.mxu0 %v1820
    %1875 = vmatprep.subr.mxu0 0.0
    %1876 = vmatpush1.msra.mxu0 %v1821
    %1877 = vmatprep.subr.mxu0 0.0
    %1878 = vmatpush1.msra.mxu0 %v1822
    %1879 = vmatprep.subr.mxu0 0.0
    %1880 = vmatpush1.msra.mxu0 %v1823
    %1881 = vmatprep.subr.mxu0 0.0
    %1882 = vmatpush1.msra.mxu0 %v1824
    %1883 = vmatprep.subr.mxu0 0.0
    %1884 = vmatpush1.msra.mxu0 %v1825
    %1885 = vmatprep.subr.mxu0 0.0
    %1886 = vmatpush1.msra.mxu0 %v1826
    %1887 = vmatprep.subr.mxu0 0.0
    %1888 = vmatpush1.msra.mxu0 %v1827
    %1889 = vmatprep.subr.mxu0 0.0
    %1890 = vmatpush1.msra.mxu0 %v1828
    %1891 = vmatprep.subr.mxu0 0.0
    %1892 = vmatpush1.msra.mxu0 %v1829
    %1893 = vmatprep.subr.mxu0 0.0
    %1894 = vmatpush1.msra.mxu0 %v1830
    %1895 = vmatprep.subr.mxu0 0.0
    %1896 = vmatpush1.msra.mxu0 %v1831
    %1897 = vmatprep.subr.mxu0 0.0
    %1898 = vmatpush1.msra.mxu0 %v1832
    %1899 = vmatprep.subr.mxu0 0.0
    %1900 = vmatpush1.msra.mxu0 %v1833
    %1901 = vmatprep.subr.mxu0 0.0
    %1902 = vmatpush1.msra.mxu0 %v1834
    %1903 = vmatprep.subr.mxu0 0.0
    %1904 = vmatpush1.msra.mxu0 %v1835
    %1905 = vmatprep.subr.mxu0 0.0
    %1906 = vmatpush1.msra.mxu0 %v1836
    %1907 = vmatprep.subr.mxu0 0.0
    %1908 = vmatpush1.msra.mxu0 %v1837
    %1909 = vmatprep.subr.mxu0 0.0
    %1910 = vmatpush1.msra.mxu0 %v1838
    %1911 = vmatprep.subr.mxu0 0.0
    %1912 = vmatpush1.msra.mxu0 %v1839
    %1913 = vmatprep.subr.mxu0 0.0
    %1914 = vmatpush1.msra.mxu0 %v1840
    %1915 = vmatprep.subr.mxu0 0.0
    %1916 = vmatpush1.msra.mxu0 %v1841
    %1917 = vmatprep.subr.mxu0 0.0
    %1918 = vmatpush1.msra.mxu0 %v1842
    %1919 = vmatprep.subr.mxu0 0.0
    %1920 = vmatpush1.msra.mxu0 %v1843
    %1921 = vmatprep.subr.mxu0 0.0
    %1922 = vmatpush1.msra.mxu0 %v1844
    %1923 = vmatprep.subr.mxu0 0.0
    %1924 = vmatpush1.msra.mxu0 %v1845
    %1925 = vmatprep.subr.mxu0 0.0
    %1926 = vmatpush1.msra.mxu0 %v1846
    %1927 = vmatprep.subr.mxu0 0.0
    %1928 = vmatpush1.msra.mxu0 %v1847
    %1929 = vmatprep.subr.mxu0 0.0
    %1930 = vmatpush1.msra.mxu0 %v1848
    %1931 = vmatprep.subr.mxu0 0.0
    %1932 = vmatpush1.msra.mxu0 %v1849
    %1933 = vmatprep.subr.mxu0 0.0
    %1934 = vmatpush1.msra.mxu0 %v1850
    %1935 = vmatprep.subr.mxu0 0.0
    %1936 = vmatpush1.msra.mxu0 %v1851
    %1937 = vmatprep.mubr.f32.mxu0 %v1737
    %1938 = vmatmul.mubr.f32.gmra.mrb[0].mxu0 %v1735
    %v1939 = vpop.f32.mrb[0].mxu0
    %v1940 = vadd.f32 %v1865, %v1939
    %v1941 = vpop.f32.mrb[0].mxu0
    %1942 = vmatprep.mubr.f32.mxu0 %v1743
    %1943 = vmatmul.mubr.f32.gmra.mrb[0].mxu0 %v1741
    %v1944 = vpop.f32.mrb[0].mxu0
    %v1945 = vadd.f32 %v1865, %v1944
    %v1946 = vpop.f32.mrb[0].mxu0
    %1947 = vdwg.mxu0
    %1948 = vmatprep.subr.mxu0 0.0
    %1949 = vmatpush1.msra.mxu0 %v1852
    %1950 = vmatprep.subr.mxu0 0.0
    %1951 = vmatpush1.msra.mxu0 %v1853
    %1952 = vmatprep.subr.mxu0 0.0
    %1953 = vmatpush1.msra.mxu0 %v1854
    %1954 = vmatprep.subr.mxu0 0.0
    %1955 = vmatpush1.msra.mxu0 %v1855
    %1956 = vmatprep.subr.mxu0 0.0
    %1957 = vmatpush1.msra.mxu0 %v1856
    %1958 = vmatprep.subr.mxu0 0.0
    %1959 = vmatpush1.msra.mxu0 %v1857
    %1960 = vmatprep.subr.mxu0 0.0
    %1961 = vmatpush1.msra.mxu0 %v1858
    %1962 = vmatprep.subr.mxu0 0.0
    %1963 = vmatpush1.msra.mxu0 %v1859
    %1964 = vmatprep.subr.mxu0 0.0
    %1965 = vmatpush1.msra.mxu0 0.0
    %1966 = vmatprep.subr.mxu0 0.0
    %1967 = vmatpush1.msra.mxu0 0.0
    %1968 = vmatprep.subr.mxu0 0.0
    %1969 = vmatpush1.msra.mxu0 0.0
    %1970 = vmatprep.subr.mxu0 0.0
    %1971 = vmatpush1.msra.mxu0 0.0
    %1972 = vmatprep.subr.mxu0 0.0
    %1973 = vmatpush1.msra.mxu0 0.0
    %1974 = vmatprep.subr.mxu0 0.0
    %1975 = vmatpush1.msra.mxu0 0.0
    %1976 = vmatprep.subr.mxu0 0.0
    %1977 = vmatpush1.msra.mxu0 0.0
    %1978 = vmatprep.subr.mxu0 0.0
    %1979 = vmatpush1.msra.mxu0 0.0
    %1980 = vmatprep.subr.mxu0 0.0
    %1981 = vmatpush1.msra.mxu0 0.0
    %1982 = vmatprep.subr.mxu0 0.0
    %1983 = vmatpush1.msra.mxu0 0.0
    %1984 = vmatprep.subr.mxu0 0.0
    %1985 = vmatpush1.msra.mxu0 0.0
    %1986 = vmatprep.subr.mxu0 0.0
    %1987 = vmatpush1.msra.mxu0 0.0
    %1988 = vmatprep.subr.mxu0 0.0
    %1989 = vmatpush1.msra.mxu0 0.0
    %1990 = vmatprep.subr.mxu0 0.0
    %1991 = vmatpush1.msra.mxu0 0.0
    %1992 = vmatprep.subr.mxu0 0.0
    %1993 = vmatpush1.msra.mxu0 0.0
    %1994 = vmatprep.subr.mxu0 0.0
    %1995 = vmatpush1.msra.mxu0 0.0
    %1996 = vmatprep.subr.mxu0 0.0
    %1997 = vmatpush1.msra.mxu0 0.0
    %1998 = vmatprep.subr.mxu0 0.0
    %1999 = vmatpush1.msra.mxu0 0.0
    %2000 = vmatprep.subr.mxu0 0.0
    %2001 = vmatpush1.msra.mxu0 0.0
    %2002 = vmatprep.subr.mxu0 0.0
    %2003 = vmatpush1.msra.mxu0 0.0
    %2004 = vmatprep.subr.mxu0 0.0
    %2005 = vmatpush1.msra.mxu0 0.0
    %2006 = vmatprep.subr.mxu0 0.0
    %2007 = vmatpush1.msra.mxu0 0.0
    %2008 = vmatprep.subr.mxu0 0.0
    %2009 = vmatpush1.msra.mxu0 0.0
    %2010 = vmatprep.subr.mxu0 0.0
    %2011 = vmatpush1.msra.mxu0 0.0
    %2012 = vmatprep.mubr.f32.mxu0 0.0
    %2013 = vmatmul.mubr.f32.gmra.mrb[0].mxu0 %v1868
    %v2014 = vpop.f32.mrb[0].mxu0
    %v2015 = vadd.f32 %v1940, %v2014
    %v2016 = vpop.f32.mrb[0].mxu0
    %2017 = vmatprep.mubr.f32.mxu0 0.0
    %2018 = vmatmul.mubr.f32.gmra.mrb[0].mxu0 %v1871
    %v2019 = vpop.f32.mrb[0].mxu0
    %v2020 = vadd.f32 %v1945, %v2019
    %v2021 = vpop.f32.mrb[0].mxu0
    %2022 = vdwg.mxu0
    %v2023 = vmax.f32 %v2015, 0.0
    %v2024 = vmax.f32 %v2020, 0.0
    %v2026 = vrot.slane %v2023, 2
    %v2028 = vrot.slane %v2023, 4
    %v2030 = vrot.slane %v2023, 6
    %v2033 = vrot.slane %v2024, 2
    %v2035 = vrot.slane %v2024, 4
    %v2037 = vrot.slane %v2024, 6
    %v2039 = vld [vmem:[#allocation16] sm:$0xff]
    %v2040 = vld [vmem:[#allocation16 + $0x8] sm:$0xff]
    %v2041 = vld [vmem:[#allocation16 + $0x10] sm:$0xff]
    %v2042 = vld [vmem:[#allocation16 + $0x18] sm:$0xff]
    %v2043 = vld [vmem:[#allocation16 + $0x20] sm:$0xff]
    %v2044 = vld [vmem:[#allocation16 + $0x28] sm:$0xff]
    %v2045 = vld [vmem:[#allocation16 + $0x30] sm:$0xff]
    %v2046 = vld [vmem:[#allocation16 + $0x38] sm:$0xff]
    %v2047 = vld [vmem:[#allocation16 + $0x40] sm:$0xff]
    %v2048 = vld [vmem:[#allocation16 + $0x48] sm:$0xff]
    %v2049 = vld [vmem:[#allocation16 + $0x50] sm:$0xff]
    %v2050 = vld [vmem:[#allocation16 + $0x58] sm:$0xff]
    %v2051 = vld [vmem:[#allocation16 + $0x60] sm:$0xff]
    %v2052 = vld [vmem:[#allocation16 + $0x68] sm:$0xff]
    %v2053 = vld [vmem:[#allocation16 + $0x70] sm:$0xff]
    %v2054 = vld [vmem:[#allocation16 + $0x78] sm:$0xff]
    %v2055 = vld [vmem:[#allocation16 + $0x80] sm:$0xff]
    %v2056 = vld [vmem:[#allocation16 + $0x88] sm:$0xff]
    %v2057 = vld [vmem:[#allocation16 + $0x90] sm:$0xff]
    %v2058 = vld [vmem:[#allocation16 + $0x98] sm:$0xff]
    %v2059 = vld [vmem:[#allocation16 + $0xa0] sm:$0xff]
    %v2060 = vld [vmem:[#allocation16 + $0xa8] sm:$0xff]
    %v2061 = vld [vmem:[#allocation16 + $0xb0] sm:$0xff]
    %v2062 = vld [vmem:[#allocation16 + $0xb8] sm:$0xff]
    %v2063 = vld [vmem:[#allocation16 + $0xc0] sm:$0xff]
    %v2064 = vld [vmem:[#allocation16 + $0xc8] sm:$0xff]
    %v2065 = vld [vmem:[#allocation16 + $0xd0] sm:$0xff]
    %v2066 = vld [vmem:[#allocation16 + $0xd8] sm:$0xff]
    %v2067 = vld [vmem:[#allocation16 + $0xe0] sm:$0xff]
    %v2068 = vld [vmem:[#allocation16 + $0xe8] sm:$0xff]
    %v2069 = vld [vmem:[#allocation16 + $0xf0] sm:$0xff]
    %v2070 = vld [vmem:[#allocation16 + $0xf8] sm:$0xff]
    %v2071 = vld [vmem:[#allocation16 + $0x100] sm:$0xff]
    %v2072 = vld [vmem:[#allocation16 + $0x108] sm:$0xff]
    %v2073 = vld [vmem:[#allocation16 + $0x110] sm:$0xff]
    %v2074 = vld [vmem:[#allocation16 + $0x118] sm:$0xff]
    %v2075 = vld [vmem:[#allocation16 + $0x120] sm:$0xff]
    %v2076 = vld [vmem:[#allocation16 + $0x128] sm:$0xff]
    %v2077 = vld [vmem:[#allocation16 + $0x130] sm:$0xff]
    %v2078 = vld [vmem:[#allocation16 + $0x138] sm:$0xff]
    %v2079 = vld [vmem:[#allocation16 + $0x140] sm:$0xff]
    %v2080 = vld [vmem:[#allocation16 + $0x148] sm:$0xff]
    %v2081 = vld [vmem:[#allocation16 + $0x150] sm:$0xff]
    %v2082 = vld [vmem:[#allocation16 + $0x158] sm:$0xff]
    %v2083 = vld [vmem:[#allocation16 + $0x160] sm:$0xff]
    %v2084 = vld [vmem:[#allocation16 + $0x168] sm:$0xff]
    %v2085 = vld [vmem:[#allocation16 + $0x170] sm:$0xff]
    %v2086 = vld [vmem:[#allocation16 + $0x178] sm:$0xff]
    %v2087 = vld [vmem:[#allocation16 + $0x180] sm:$0xff]
    %v2088 = vld [vmem:[#allocation16 + $0x188] sm:$0xff]
    %v2089 = vld [vmem:[#allocation16 + $0x190] sm:$0xff]
    %v2090 = vld [vmem:[#allocation16 + $0x198] sm:$0xff]
    %v2091 = vld [vmem:[#allocation16 + $0x1a0] sm:$0xff]
    %v2092 = vld [vmem:[#allocation16 + $0x1a8] sm:$0xff]
    %v2093 = vld [vmem:[#allocation16 + $0x1b0] sm:$0xff]
    %v2094 = vld [vmem:[#allocation16 + $0x1b8] sm:$0xff]
    %v2095 = vld [vmem:[#allocation16 + $0x1c0] sm:$0xff]
    %v2096 = vld [vmem:[#allocation16 + $0x1c8] sm:$0xff]
    %v2097 = vld [vmem:[#allocation16 + $0x1d0] sm:$0xff]
    %v2098 = vld [vmem:[#allocation16 + $0x1d8] sm:$0xff]
    %v2099 = vld [vmem:[#allocation16 + $0x1e0] sm:$0xff]
    %v2100 = vld [vmem:[#allocation16 + $0x1e8] sm:$0xff]
    %v2101 = vld [vmem:[#allocation16 + $0x1f0] sm:$0xff]
    %v2102 = vld [vmem:[#allocation16 + $0x1f8] sm:$0xff]
    %v2103 = vld [vmem:[#allocation16 + $0x200] sm:$0xff]
    %v2104 = vld [vmem:[#allocation16 + $0x208] sm:$0xff]
    %v2105 = vld [vmem:[#allocation16 + $0x210] sm:$0xff]
    %v2106 = vld [vmem:[#allocation16 + $0x218] sm:$0xff]
    %v2107 = vld [vmem:[#allocation16 + $0x220] sm:$0xff]
    %v2108 = vld [vmem:[#allocation16 + $0x228] sm:$0xff]
    %v2109 = vld [vmem:[#allocation16 + $0x230] sm:$0xff]
    %v2110 = vld [vmem:[#allocation16 + $0x238] sm:$0xff]
    %v2111 = vld [vmem:[#allocation16 + $0x240] sm:$0xff]
    %v2112 = vld [vmem:[#allocation16 + $0x248] sm:$0xff]
    %v2113 = vld [vmem:[#allocation16 + $0x250] sm:$0xff]
    %v2114 = vld [vmem:[#allocation16 + $0x258] sm:$0xff]
    %v2115 = vld [vmem:[#allocation16 + $0x260] sm:$0xff]
    %v2116 = vld [vmem:[#allocation16 + $0x268] sm:$0xff]
    %v2117 = vld [vmem:[#allocation16 + $0x270] sm:$0xff]
    %v2118 = vld [vmem:[#allocation16 + $0x278] sm:$0xff]
    %v2119 = vld [vmem:[#allocation16 + $0x280] sm:$0xff]
    %v2120 = vld [vmem:[#allocation16 + $0x288] sm:$0xff]
    %v2121 = vld [vmem:[#allocation16 + $0x290] sm:$0xff]
    %v2122 = vld [vmem:[#allocation16 + $0x298] sm:$0xff]
    %v2123 = vld [vmem:[#allocation16 + $0x2a0] sm:$0xff]
    %v2124 = vld [vmem:[#allocation16 + $0x2a8] sm:$0xff]
    %v2125 = vld [vmem:[#allocation16 + $0x2b0] sm:$0xff]
    %v2126 = vld [vmem:[#allocation16 + $0x2b8] sm:$0xff]
    %v2127 = vld [vmem:[#allocation16 + $0x2c0] sm:$0xff]
    %v2128 = vld [vmem:[#allocation16 + $0x2c8] sm:$0xff]
    %v2129 = vld [vmem:[#allocation16 + $0x2d0] sm:$0xff]
    %v2130 = vld [vmem:[#allocation16 + $0x2d8] sm:$0xff]
    %v2131 = vld [vmem:[#allocation16 + $0x2e0] sm:$0xff]
    %v2132 = vld [vmem:[#allocation16 + $0x2e8] sm:$0xff]
    %v2133 = vld [vmem:[#allocation16 + $0x2f0] sm:$0xff]
    %v2134 = vld [vmem:[#allocation16 + $0x2f8] sm:$0xff]
    %v2135 = vld [vmem:[#allocation16 + $0x300] sm:$0xff]
    %v2136 = vld [vmem:[#allocation16 + $0x308] sm:$0xff]
    %v2137 = vld [vmem:[#allocation16 + $0x310] sm:$0xff]
    %v2138 = vld [vmem:[#allocation16 + $0x318] sm:$0xff]
    %v2139 = vld [vmem:[#allocation16 + $0x320] sm:$0xff]
    %v2140 = vld [vmem:[#allocation16 + $0x328] sm:$0xff]
    %v2141 = vld [vmem:[#allocation16 + $0x330] sm:$0xff]
    %v2142 = vld [vmem:[#allocation16 + $0x338] sm:$0xff]
    %v2143 = vld [vmem:[#allocation16 + $0x340] sm:$0xff]
    %v2144 = vld [vmem:[#allocation16 + $0x348] sm:$0xff]
    %v2145 = vld [vmem:[#allocation16 + $0x350] sm:$0xff]
    %v2146 = vld [vmem:[#allocation16 + $0x358] sm:$0xff]
    %v2147 = vld [vmem:[#allocation16 + $0x360] sm:$0xff]
    %v2148 = vld [vmem:[#allocation16 + $0x368] sm:$0xff]
    %v2149 = vld [vmem:[#allocation16 + $0x370] sm:$0xff]
    %v2150 = vld [vmem:[#allocation16 + $0x378] sm:$0xff]
    %v2151 = vld [vmem:[#allocation16 + $0x380] sm:$0xff]
    %v2152 = vld [vmem:[#allocation16 + $0x388] sm:$0xff]
    %v2153 = vld [vmem:[#allocation16 + $0x390] sm:$0xff]
    %v2154 = vld [vmem:[#allocation16 + $0x398] sm:$0xff]
    %v2155 = vld [vmem:[#allocation16 + $0x3a0] sm:$0xff]
    %v2156 = vld [vmem:[#allocation16 + $0x3a8] sm:$0xff]
    %v2157 = vld [vmem:[#allocation16 + $0x3b0] sm:$0xff]
    %v2158 = vld [vmem:[#allocation16 + $0x3b8] sm:$0xff]
    %v2159 = vld [vmem:[#allocation16 + $0x3c0] sm:$0xff]
    %v2160 = vld [vmem:[#allocation16 + $0x3c8] sm:$0xff]
    %v2161 = vld [vmem:[#allocation16 + $0x3d0] sm:$0xff]
    %v2162 = vld [vmem:[#allocation16 + $0x3d8] sm:$0xff]
    %v2163 = vld [vmem:[#allocation16 + $0x3e0] sm:$0xff]
    %v2164 = vld [vmem:[#allocation16 + $0x3e8] sm:$0xff]
    %v2165 = vld [vmem:[#allocation16 + $0x3f0] sm:$0xff]
    %v2166 = vld [vmem:[#allocation16 + $0x3f8] sm:$0xff]
    %v2167 = vld [vmem:[#allocation16 + $0x400] sm:$0xff]
    %v2168 = vld [vmem:[#allocation16 + $0x408] sm:$0xff]
    %v2169 = vld [vmem:[#allocation16 + $0x410] sm:$0xff]
    %v2170 = vld [vmem:[#allocation16 + $0x418] sm:$0xff]
    %v2171 = vld [vmem:[#allocation16 + $0x420] sm:$0xff]
    %v2172 = vld [vmem:[#allocation16 + $0x428] sm:$0xff]
    %v2173 = vld [vmem:[#allocation16 + $0x430] sm:$0xff]
    %v2174 = vld [vmem:[#allocation16 + $0x438] sm:$0xff]
    %v2175 = vld [vmem:[#allocation16 + $0x440] sm:$0xff]
    %v2176 = vld [vmem:[#allocation16 + $0x448] sm:$0xff]
    %v2177 = vld [vmem:[#allocation16 + $0x450] sm:$0xff]
    %v2178 = vld [vmem:[#allocation16 + $0x458] sm:$0xff]
    %v2179 = vld [vmem:[#allocation16 + $0x460] sm:$0xff]
    %v2180 = vld [vmem:[#allocation16 + $0x468] sm:$0xff]
    %v2181 = vld [vmem:[#allocation16 + $0x470] sm:$0xff]
    %v2182 = vld [vmem:[#allocation16 + $0x478] sm:$0xff]
    %v2183 = vld [vmem:[#allocation16 + $0x480] sm:$0xff]
    %v2184 = vld [vmem:[#allocation16 + $0x488] sm:$0xff]
    %v2185 = vld [vmem:[#allocation16 + $0x490] sm:$0xff]
    %v2186 = vld [vmem:[#allocation16 + $0x498] sm:$0xff]
    %v2187 = vld [vmem:[#allocation16 + $0x4a0] sm:$0xff]
    %v2188 = vld [vmem:[#allocation16 + $0x4a8] sm:$0xff]
    %v2189 = vld [vmem:[#allocation16 + $0x4b0] sm:$0xff]
    %v2190 = vld [vmem:[#allocation16 + $0x4b8] sm:$0xff]
    %v2191 = vld [vmem:[#allocation16 + $0x4c0] sm:$0xff]
    %v2192 = vld [vmem:[#allocation16 + $0x4c8] sm:$0xff]
    %v2193 = vld [vmem:[#allocation16 + $0x4d0] sm:$0xff]
    %v2194 = vld [vmem:[#allocation16 + $0x4d8] sm:$0xff]
    %v2195 = vld [vmem:[#allocation16 + $0x4e0] sm:$0xff]
    %v2196 = vld [vmem:[#allocation16 + $0x4e8] sm:$0xff]
    %v2197 = vld [vmem:[#allocation16 + $0x4f0] sm:$0xff]
    %v2198 = vld [vmem:[#allocation16 + $0x4f8] sm:$0xff]
    %v2199 = vld [vmem:[#allocation16 + $0x500] sm:$0xff]
    %v2200 = vld [vmem:[#allocation16 + $0x508] sm:$0xff]
    %v2201 = vld [vmem:[#allocation16 + $0x510] sm:$0xff]
    %v2202 = vld [vmem:[#allocation16 + $0x518] sm:$0xff]
    %v2203 = vld [vmem:[#allocation16 + $0x520] sm:$0xff]
    %v2204 = vld [vmem:[#allocation16 + $0x528] sm:$0xff]
    %v2205 = vld [vmem:[#allocation16 + $0x530] sm:$0xff]
    %v2206 = vld [vmem:[#allocation16 + $0x538] sm:$0xff]
    %v2207 = vld [vmem:[#allocation16 + $0x540] sm:$0xff]
    %v2208 = vld [vmem:[#allocation16 + $0x548] sm:$0xff]
    %v2209 = vld [vmem:[#allocation16 + $0x550] sm:$0xff]
    %v2210 = vld [vmem:[#allocation16 + $0x558] sm:$0xff]
    %v2211 = vld [vmem:[#allocation16 + $0x560] sm:$0xff]
    %v2212 = vld [vmem:[#allocation16 + $0x568] sm:$0xff]
    %v2213 = vld [vmem:[#allocation16 + $0x570] sm:$0xff]
    %v2214 = vld [vmem:[#allocation16 + $0x578] sm:$0xff]
    %v2215 = vld [vmem:[#allocation16 + $0x580] sm:$0xff]
    %v2216 = vld [vmem:[#allocation16 + $0x588] sm:$0xff]
    %v2217 = vld [vmem:[#allocation16 + $0x590] sm:$0xff]
    %v2218 = vld [vmem:[#allocation16 + $0x598] sm:$0xff]
    %v2219 = vld [vmem:[#allocation16 + $0x5a0] sm:$0xff]
    %v2220 = vld [vmem:[#allocation16 + $0x5a8] sm:$0xff]
    %v2221 = vld [vmem:[#allocation16 + $0x5b0] sm:$0xff]
    %v2222 = vld [vmem:[#allocation16 + $0x5b8] sm:$0xff]
    %v2223 = vld [vmem:[#allocation16 + $0x5c0] sm:$0xff]
    %v2224 = vld [vmem:[#allocation16 + $0x5c8] sm:$0xff]
    %v2225 = vld [vmem:[#allocation16 + $0x5d0] sm:$0xff]
    %v2226 = vld [vmem:[#allocation16 + $0x5d8] sm:$0xff]
    %v2227 = vld [vmem:[#allocation16 + $0x5e0] sm:$0xff]
    %v2228 = vld [vmem:[#allocation16 + $0x5e8] sm:$0xff]
    %v2229 = vld [vmem:[#allocation16 + $0x5f0] sm:$0xff]
    %v2230 = vld [vmem:[#allocation16 + $0x5f8] sm:$0xff]
    %v2231 = vld [vmem:[#allocation16 + $0x600] sm:$0xff]
    %v2232 = vld [vmem:[#allocation16 + $0x608] sm:$0xff]
    %v2233 = vld [vmem:[#allocation16 + $0x610] sm:$0xff]
    %v2234 = vld [vmem:[#allocation16 + $0x618] sm:$0xff]
    %v2235 = vld [vmem:[#allocation16 + $0x620] sm:$0xff]
    %v2236 = vld [vmem:[#allocation16 + $0x628] sm:$0xff]
    %v2237 = vld [vmem:[#allocation16 + $0x630] sm:$0xff]
    %v2238 = vld [vmem:[#allocation16 + $0x638] sm:$0xff]
    %v2239 = vld [vmem:[#allocation16 + $0x640] sm:$0xff]
    %v2240 = vld [vmem:[#allocation16 + $0x648] sm:$0xff]
    %v2241 = vld [vmem:[#allocation16 + $0x650] sm:$0xff]
    %v2242 = vld [vmem:[#allocation16 + $0x658] sm:$0xff]
    %v2243 = vld [vmem:[#allocation16 + $0x660] sm:$0xff]
    %v2244 = vld [vmem:[#allocation16 + $0x668] sm:$0xff]
    %v2245 = vld [vmem:[#allocation16 + $0x670] sm:$0xff]
    %v2246 = vld [vmem:[#allocation16 + $0x678] sm:$0xff]
    %v2247 = vld [vmem:[#allocation16 + $0x680] sm:$0xff]
    %v2248 = vld [vmem:[#allocation16 + $0x688] sm:$0xff]
    %v2249 = vld [vmem:[#allocation16 + $0x690] sm:$0xff]
    %v2250 = vld [vmem:[#allocation16 + $0x698] sm:$0xff]
    %v2251 = vld [vmem:[#allocation16 + $0x6a0] sm:$0xff]
    %v2252 = vld [vmem:[#allocation16 + $0x6a8] sm:$0xff]
    %v2253 = vld [vmem:[#allocation16 + $0x6b0] sm:$0xff]
    %v2254 = vld [vmem:[#allocation16 + $0x6b8] sm:$0xff]
    %v2255 = vld [vmem:[#allocation16 + $0x6c0] sm:$0xff]
    %v2256 = vld [vmem:[#allocation16 + $0x6c8] sm:$0xff]
    %v2257 = vld [vmem:[#allocation16 + $0x6d0] sm:$0xff]
    %v2258 = vld [vmem:[#allocation16 + $0x6d8] sm:$0xff]
    %v2259 = vld [vmem:[#allocation16 + $0x6e0] sm:$0xff]
    %v2260 = vld [vmem:[#allocation16 + $0x6e8] sm:$0xff]
    %v2261 = vld [vmem:[#allocation16 + $0x6f0] sm:$0xff]
    %v2262 = vld [vmem:[#allocation16 + $0x6f8] sm:$0xff]
    %v2263 = vld [vmem:[#allocation16 + $0x700] sm:$0xff]
    %v2264 = vld [vmem:[#allocation16 + $0x708] sm:$0xff]
    %v2265 = vld [vmem:[#allocation16 + $0x710] sm:$0xff]
    %v2266 = vld [vmem:[#allocation16 + $0x718] sm:$0xff]
    %v2267 = vld [vmem:[#allocation16 + $0x720] sm:$0xff]
    %v2268 = vld [vmem:[#allocation16 + $0x728] sm:$0xff]
    %v2269 = vld [vmem:[#allocation16 + $0x730] sm:$0xff]
    %v2270 = vld [vmem:[#allocation16 + $0x738] sm:$0xff]
    %v2271 = vld [vmem:[#allocation16 + $0x740] sm:$0xff]
    %v2272 = vld [vmem:[#allocation16 + $0x748] sm:$0xff]
    %v2273 = vld [vmem:[#allocation16 + $0x750] sm:$0xff]
    %v2274 = vld [vmem:[#allocation16 + $0x758] sm:$0xff]
    %v2275 = vld [vmem:[#allocation16 + $0x760] sm:$0xff]
    %v2276 = vld [vmem:[#allocation16 + $0x768] sm:$0xff]
    %v2277 = vld [vmem:[#allocation16 + $0x770] sm:$0xff]
    %v2278 = vld [vmem:[#allocation16 + $0x778] sm:$0xff]
    %v2279 = vld [vmem:[#allocation16 + $0x780] sm:$0xff]
    %v2280 = vld [vmem:[#allocation16 + $0x788] sm:$0xff]
    %v2281 = vld [vmem:[#allocation16 + $0x790] sm:$0xff]
    %v2282 = vld [vmem:[#allocation16 + $0x798] sm:$0xff]
    %v2283 = vld [vmem:[#allocation16 + $0x7a0] sm:$0xff]
    %v2284 = vld [vmem:[#allocation16 + $0x7a8] sm:$0xff]
    %v2285 = vld [vmem:[#allocation16 + $0x7b0] sm:$0xff]
    %v2286 = vld [vmem:[#allocation16 + $0x7b8] sm:$0xff]
    %v2287 = vld [vmem:[#allocation16 + $0x7c0] sm:$0xff]
    %v2288 = vld [vmem:[#allocation16 + $0x7c8] sm:$0xff]
    %v2289 = vld [vmem:[#allocation16 + $0x7d0] sm:$0xff]
    %v2290 = vld [vmem:[#allocation16 + $0x7d8] sm:$0xff]
    %v2291 = vld [vmem:[#allocation16 + $0x7e0] sm:$0xff]
    %v2292 = vld [vmem:[#allocation16 + $0x7e8] sm:$0xff]
    %v2293 = vld [vmem:[#allocation16 + $0x7f0] sm:$0xff]
    %v2294 = vld [vmem:[#allocation16 + $0x7f8] sm:$0xff]
    %v2295 = vld [vmem:[#allocation16 + $0x800] sm:$0xff]
    %v2296 = vld [vmem:[#allocation16 + $0x808] sm:$0xff]
    %v2297 = vld [vmem:[#allocation16 + $0x810] sm:$0xff]
    %v2298 = vld [vmem:[#allocation16 + $0x818] sm:$0xff]
    %v2299 = vld [vmem:[#allocation16 + $0x820] sm:$0xff]
    %v2300 = vld [vmem:[#allocation16 + $0x828] sm:$0xff]
    %v2301 = vld [vmem:[#allocation16 + $0x830] sm:$0xff]
    %v2302 = vld [vmem:[#allocation16 + $0x838] sm:$0xff]
    %v2303 = vld [vmem:[#allocation16 + $0x840] sm:$0xff]
    %v2304 = vld [vmem:[#allocation16 + $0x848] sm:$0xff]
    %v2305 = vld [vmem:[#allocation16 + $0x850] sm:$0xff]
    %v2306 = vld [vmem:[#allocation16 + $0x858] sm:$0xff]
    %v2307 = vld [vmem:[#allocation16 + $0x860] sm:$0xff]
    %v2308 = vld [vmem:[#allocation16 + $0x868] sm:$0xff]
    %v2309 = vld [vmem:[#allocation16 + $0x870] sm:$0xff]
    %v2310 = vld [vmem:[#allocation16 + $0x878] sm:$0xff]
    %v2311 = vld [vmem:[#allocation16 + $0x880] sm:$0xff]
    %v2312 = vld [vmem:[#allocation16 + $0x888] sm:$0xff]
    %v2313 = vld [vmem:[#allocation16 + $0x890] sm:$0xff]
    %v2314 = vld [vmem:[#allocation16 + $0x898] sm:$0xff]
    %v2315 = vld [vmem:[#allocation16 + $0x8a0] sm:$0xff]
    %v2316 = vld [vmem:[#allocation16 + $0x8a8] sm:$0xff]
    %v2317 = vld [vmem:[#allocation16 + $0x8b0] sm:$0xff]
    %v2318 = vld [vmem:[#allocation16 + $0x8b8] sm:$0xff]
    %v2319 = vld [vmem:[#allocation16 + $0x8c0] sm:$0xff]
    %v2320 = vld [vmem:[#allocation16 + $0x8c8] sm:$0xff]
    %v2321 = vld [vmem:[#allocation16 + $0x8d0] sm:$0xff]
    %v2322 = vld [vmem:[#allocation16 + $0x8d8] sm:$0xff]
    %v2323 = vld [vmem:[#allocation16 + $0x8e0] sm:$0xff]
    %v2324 = vld [vmem:[#allocation16 + $0x8e8] sm:$0xff]
    %v2325 = vld [vmem:[#allocation16 + $0x8f0] sm:$0xff]
    %v2326 = vld [vmem:[#allocation16 + $0x8f8] sm:$0xff]
    %v2327 = vld [vmem:[#allocation16 + $0x900] sm:$0xff]
    %v2328 = vld [vmem:[#allocation16 + $0x908] sm:$0xff]
    %v2329 = vld [vmem:[#allocation16 + $0x910] sm:$0xff]
    %v2330 = vld [vmem:[#allocation16 + $0x918] sm:$0xff]
    %v2331 = vld [vmem:[#allocation16 + $0x920] sm:$0xff]
    %v2332 = vld [vmem:[#allocation16 + $0x928] sm:$0xff]
    %v2333 = vld [vmem:[#allocation16 + $0x930] sm:$0xff]
    %v2334 = vld [vmem:[#allocation16 + $0x938] sm:$0xff]
    %v2335 = vld [vmem:[#allocation16 + $0x940] sm:$0xff]
    %v2336 = vld [vmem:[#allocation16 + $0x948] sm:$0xff]
    %v2337 = vld [vmem:[#allocation16 + $0x950] sm:$0xff]
    %v2338 = vld [vmem:[#allocation16 + $0x958] sm:$0xff]
    %v2339 = vld [vmem:[#allocation16 + $0x960] sm:$0xff]
    %v2340 = vld [vmem:[#allocation16 + $0x968] sm:$0xff]
    %v2341 = vld [vmem:[#allocation16 + $0x970] sm:$0xff]
    %v2342 = vld [vmem:[#allocation16 + $0x978] sm:$0xff]
    %v2343 = vld [vmem:[#allocation16 + $0x980] sm:$0xff]
    %v2344 = vld [vmem:[#allocation16 + $0x988] sm:$0xff]
    %v2345 = vld [vmem:[#allocation16 + $0x990] sm:$0xff]
    %v2346 = vld [vmem:[#allocation16 + $0x998] sm:$0xff]
    %v2347 = vld [vmem:[#allocation16 + $0x9a0] sm:$0xff]
    %v2348 = vld [vmem:[#allocation16 + $0x9a8] sm:$0xff]
    %v2349 = vld [vmem:[#allocation16 + $0x9b0] sm:$0xff]
    %v2350 = vld [vmem:[#allocation16 + $0x9b8] sm:$0xff]
    %v2351 = vld [vmem:[#allocation16 + $0x9c0] sm:$0xff]
    %v2352 = vld [vmem:[#allocation16 + $0x9c8] sm:$0xff]
    %v2353 = vld [vmem:[#allocation16 + $0x9d0] sm:$0xff]
    %v2354 = vld [vmem:[#allocation16 + $0x9d8] sm:$0xff]
    %v2355 = vld [vmem:[#allocation16 + $0x9e0] sm:$0xff]
    %v2356 = vld [vmem:[#allocation16 + $0x9e8] sm:$0xff]
    %v2357 = vld [vmem:[#allocation16 + $0x9f0] sm:$0xff]
    %v2358 = vld [vmem:[#allocation16 + $0x9f8] sm:$0xff]
    %v2359 = vld [vmem:[#allocation16 + $0xa00] sm:$0xff]
    %v2360 = vld [vmem:[#allocation16 + $0xa08] sm:$0xff]
    %v2361 = vld [vmem:[#allocation16 + $0xa10] sm:$0xff]
    %v2362 = vld [vmem:[#allocation16 + $0xa18] sm:$0xff]
    %v2363 = vld [vmem:[#allocation16 + $0xa20] sm:$0xff]
    %v2364 = vld [vmem:[#allocation16 + $0xa28] sm:$0xff]
    %v2365 = vld [vmem:[#allocation16 + $0xa30] sm:$0xff]
    %v2366 = vld [vmem:[#allocation16 + $0xa38] sm:$0xff]
    %v2367 = vld [vmem:[#allocation16 + $0xa40] sm:$0xff]
    %v2368 = vld [vmem:[#allocation16 + $0xa48] sm:$0xff]
    %v2369 = vld [vmem:[#allocation16 + $0xa50] sm:$0xff]
    %v2370 = vld [vmem:[#allocation16 + $0xa58] sm:$0xff]
    %v2371 = vld [vmem:[#allocation16 + $0xa60] sm:$0xff]
    %v2372 = vld [vmem:[#allocation16 + $0xa68] sm:$0xff]
    %v2373 = vld [vmem:[#allocation16 + $0xa70] sm:$0xff]
    %v2374 = vld [vmem:[#allocation16 + $0xa78] sm:$0xff]
    %v2375 = vld [vmem:[#allocation16 + $0xa80] sm:$0xff]
    %v2376 = vld [vmem:[#allocation16 + $0xa88] sm:$0xff]
    %v2377 = vld [vmem:[#allocation16 + $0xa90] sm:$0xff]
    %v2378 = vld [vmem:[#allocation16 + $0xa98] sm:$0xff]
    %v2379 = vld [vmem:[#allocation16 + $0xaa0] sm:$0xff]
    %v2380 = vld [vmem:[#allocation16 + $0xaa8] sm:$0xff]
    %v2381 = vld [vmem:[#allocation16 + $0xab0] sm:$0xff]
    %v2382 = vld [vmem:[#allocation16 + $0xab8] sm:$0xff]
    %v2383 = vld [vmem:[#allocation16 + $0xac0] sm:$0xff]
    %v2384 = vld [vmem:[#allocation16 + $0xac8] sm:$0xff]
    %v2385 = vld [vmem:[#allocation16 + $0xad0] sm:$0xff]
    %v2386 = vld [vmem:[#allocation16 + $0xad8] sm:$0xff]
    %v2387 = vld [vmem:[#allocation16 + $0xae0] sm:$0xff]
    %v2388 = vld [vmem:[#allocation16 + $0xae8] sm:$0xff]
    %v2389 = vld [vmem:[#allocation16 + $0xaf0] sm:$0xff]
    %v2390 = vld [vmem:[#allocation16 + $0xaf8] sm:$0xff]
    %v2391 = vld [vmem:[#allocation16 + $0xb00] sm:$0xff]
    %v2392 = vld [vmem:[#allocation16 + $0xb08] sm:$0xff]
    %v2393 = vld [vmem:[#allocation16 + $0xb10] sm:$0xff]
    %v2394 = vld [vmem:[#allocation16 + $0xb18] sm:$0xff]
    %v2395 = vld [vmem:[#allocation16 + $0xb20] sm:$0xff]
    %v2396 = vld [vmem:[#allocation16 + $0xb28] sm:$0xff]
    %v2397 = vld [vmem:[#allocation16 + $0xb30] sm:$0xff]
    %v2398 = vld [vmem:[#allocation16 + $0xb38] sm:$0xff]
    %v2399 = vld [vmem:[#allocation16 + $0xb40] sm:$0xff]
    %v2400 = vld [vmem:[#allocation16 + $0xb48] sm:$0xff]
    %v2401 = vld [vmem:[#allocation16 + $0xb50] sm:$0xff]
    %v2402 = vld [vmem:[#allocation16 + $0xb58] sm:$0xff]
    %v2403 = vld [vmem:[#allocation16 + $0xb60] sm:$0xff]
    %v2404 = vld [vmem:[#allocation16 + $0xb68] sm:$0xff]
    %v2405 = vld [vmem:[#allocation16 + $0xb70] sm:$0xff]
    %v2406 = vld [vmem:[#allocation16 + $0xb78] sm:$0xff]
    %v2407 = vld [vmem:[#allocation16 + $0xb80] sm:$0xff]
    %v2408 = vld [vmem:[#allocation16 + $0xb88] sm:$0xff]
    %v2409 = vld [vmem:[#allocation16 + $0xb90] sm:$0xff]
    %v2410 = vld [vmem:[#allocation16 + $0xb98] sm:$0xff]
    %v2411 = vld [vmem:[#allocation16 + $0xba0] sm:$0xff]
    %v2412 = vld [vmem:[#allocation16 + $0xba8] sm:$0xff]
    %v2413 = vld [vmem:[#allocation16 + $0xbb0] sm:$0xff]
    %v2414 = vld [vmem:[#allocation16 + $0xbb8] sm:$0xff]
    %v2415 = vld [vmem:[#allocation16 + $0xbc0] sm:$0xff]
    %v2416 = vld [vmem:[#allocation16 + $0xbc8] sm:$0xff]
    %v2417 = vld [vmem:[#allocation16 + $0xbd0] sm:$0xff]
    %v2418 = vld [vmem:[#allocation16 + $0xbd8] sm:$0xff]
    %v2419 = vld [vmem:[#allocation16 + $0xbe0] sm:$0xff]
    %v2420 = vld [vmem:[#allocation16 + $0xbe8] sm:$0xff]
    %v2421 = vld [vmem:[#allocation16 + $0xbf0] sm:$0xff]
    %v2422 = vld [vmem:[#allocation16 + $0xbf8] sm:$0xff]
    %v2423 = vld [vmem:[#allocation16 + $0xc00] sm:$0xff]
    %v2424 = vld [vmem:[#allocation16 + $0xc08] sm:$0xff]
    %v2425 = vld [vmem:[#allocation16 + $0xc10] sm:$0xff]
    %v2426 = vld [vmem:[#allocation16 + $0xc18] sm:$0xff]
    %v2427 = vld [vmem:[#allocation16 + $0xc20] sm:$0xff]
    %v2428 = vld [vmem:[#allocation16 + $0xc28] sm:$0xff]
    %v2429 = vld [vmem:[#allocation16 + $0xc30] sm:$0xff]
    %v2430 = vld [vmem:[#allocation16 + $0xc38] sm:$0xff]
    %v2431 = vld [vmem:[#allocation16 + $0xc40] sm:$0xff]
    %v2432 = vld [vmem:[#allocation16 + $0xc48] sm:$0xff]
    %v2433 = vld [vmem:[#allocation16 + $0xc50] sm:$0xff]
    %v2434 = vld [vmem:[#allocation16 + $0xc58] sm:$0xff]
    %v2435 = vld [vmem:[#allocation16 + $0xc60] sm:$0xff]
    %v2436 = vld [vmem:[#allocation16 + $0xc68] sm:$0xff]
    %v2437 = vld [vmem:[#allocation16 + $0xc70] sm:$0xff]
    %v2438 = vld [vmem:[#allocation16 + $0xc78] sm:$0xff]
    %v2439 = vld [vmem:[#allocation16 + $0xc80] sm:$0xff]
    %v2440 = vld [vmem:[#allocation16 + $0xc88] sm:$0xff]
    %v2441 = vld [vmem:[#allocation16 + $0xc90] sm:$0xff]
    %v2442 = vld [vmem:[#allocation16 + $0xc98] sm:$0xff]
    %v2443 = vld [vmem:[#allocation16 + $0xca0] sm:$0xff]
    %v2444 = vld [vmem:[#allocation16 + $0xca8] sm:$0xff]
    %v2445 = vld [vmem:[#allocation16 + $0xcb0] sm:$0xff]
    %v2446 = vld [vmem:[#allocation16 + $0xcb8] sm:$0xff]
    %v2447 = vld [vmem:[#allocation16 + $0xcc0] sm:$0xff]
    %v2448 = vld [vmem:[#allocation16 + $0xcc8] sm:$0xff]
    %v2449 = vld [vmem:[#allocation16 + $0xcd0] sm:$0xff]
    %v2450 = vld [vmem:[#allocation16 + $0xcd8] sm:$0xff]
    %v2451 = vld [vmem:[#allocation16 + $0xce0] sm:$0xff]
    %v2452 = vld [vmem:[#allocation16 + $0xce8] sm:$0xff]
    %v2453 = vld [vmem:[#allocation16 + $0xcf0] sm:$0xff]
    %v2454 = vld [vmem:[#allocation16 + $0xcf8] sm:$0xff]
    %v2455 = vld [vmem:[#allocation16 + $0xd00] sm:$0xff]
    %v2456 = vld [vmem:[#allocation16 + $0xd08] sm:$0xff]
    %v2457 = vld [vmem:[#allocation16 + $0xd10] sm:$0xff]
    %v2458 = vld [vmem:[#allocation16 + $0xd18] sm:$0xff]
    %v2459 = vld [vmem:[#allocation16 + $0xd20] sm:$0xff]
    %v2460 = vld [vmem:[#allocation16 + $0xd28] sm:$0xff]
    %v2461 = vld [vmem:[#allocation16 + $0xd30] sm:$0xff]
    %v2462 = vld [vmem:[#allocation16 + $0xd38] sm:$0xff]
    %v2463 = vld [vmem:[#allocation16 + $0xd40] sm:$0xff]
    %v2464 = vld [vmem:[#allocation16 + $0xd48] sm:$0xff]
    %v2465 = vld [vmem:[#allocation16 + $0xd50] sm:$0xff]
    %v2466 = vld [vmem:[#allocation16 + $0xd58] sm:$0xff]
    %v2467 = vld [vmem:[#allocation16 + $0xd60] sm:$0xff]
    %v2468 = vld [vmem:[#allocation16 + $0xd68] sm:$0xff]
    %v2469 = vld [vmem:[#allocation16 + $0xd70] sm:$0xff]
    %v2470 = vld [vmem:[#allocation16 + $0xd78] sm:$0xff]
    %v2471 = vld [vmem:[#allocation16 + $0xd80] sm:$0xff]
    %v2472 = vld [vmem:[#allocation16 + $0xd88] sm:$0xff]
    %v2473 = vld [vmem:[#allocation16 + $0xd90] sm:$0xff]
    %v2474 = vld [vmem:[#allocation16 + $0xd98] sm:$0xff]
    %v2475 = vld [vmem:[#allocation16 + $0xda0] sm:$0xff]
    %v2476 = vld [vmem:[#allocation16 + $0xda8] sm:$0xff]
    %v2477 = vld [vmem:[#allocation16 + $0xdb0] sm:$0xff]
    %v2478 = vld [vmem:[#allocation16 + $0xdb8] sm:$0xff]
    %v2479 = vld [vmem:[#allocation16 + $0xdc0] sm:$0xff]
    %v2480 = vld [vmem:[#allocation16 + $0xdc8] sm:$0xff]
    %v2481 = vld [vmem:[#allocation16 + $0xdd0] sm:$0xff]
    %v2482 = vld [vmem:[#allocation16 + $0xdd8] sm:$0xff]
    %v2483 = vld [vmem:[#allocation16 + $0xde0] sm:$0xff]
    %v2484 = vld [vmem:[#allocation16 + $0xde8] sm:$0xff]
    %v2485 = vld [vmem:[#allocation16 + $0xdf0] sm:$0xff]
    %v2486 = vld [vmem:[#allocation16 + $0xdf8] sm:$0xff]
    %v2487 = vld [vmem:[#allocation16 + $0xe00] sm:$0xff]
    %v2488 = vld [vmem:[#allocation16 + $0xe08] sm:$0xff]
    %v2489 = vld [vmem:[#allocation16 + $0xe10] sm:$0xff]
    %v2490 = vld [vmem:[#allocation16 + $0xe18] sm:$0xff]
    %v2491 = vld [vmem:[#allocation16 + $0xe20] sm:$0xff]
    %v2492 = vld [vmem:[#allocation16 + $0xe28] sm:$0xff]
    %v2493 = vld [vmem:[#allocation16 + $0xe30] sm:$0xff]
    %v2494 = vld [vmem:[#allocation16 + $0xe38] sm:$0xff]
    %v2495 = vld [vmem:[#allocation16 + $0xe40] sm:$0xff]
    %v2496 = vld [vmem:[#allocation16 + $0xe48] sm:$0xff]
    %v2497 = vld [vmem:[#allocation16 + $0xe50] sm:$0xff]
    %v2498 = vld [vmem:[#allocation16 + $0xe58] sm:$0xff]
    %v2499 = vld [vmem:[#allocation16 + $0xe60] sm:$0xff]
    %v2500 = vld [vmem:[#allocation16 + $0xe68] sm:$0xff]
    %v2501 = vld [vmem:[#allocation16 + $0xe70] sm:$0xff]
    %v2502 = vld [vmem:[#allocation16 + $0xe78] sm:$0xff]
    %v2503 = vld [vmem:[#allocation16 + $0xe80] sm:$0xff]
    %v2504 = vld [vmem:[#allocation16 + $0xe88] sm:$0xff]
    %v2505 = vld [vmem:[#allocation16 + $0xe90] sm:$0xff]
    %v2506 = vld [vmem:[#allocation16 + $0xe98] sm:$0xff]
    %v2507 = vld [vmem:[#allocation16 + $0xea0] sm:$0xff]
    %v2508 = vld [vmem:[#allocation16 + $0xea8] sm:$0xff]
    %v2509 = vld [vmem:[#allocation16 + $0xeb0] sm:$0xff]
    %v2510 = vld [vmem:[#allocation16 + $0xeb8] sm:$0xff]
    %v2511 = vld [vmem:[#allocation16 + $0xec0] sm:$0xff]
    %v2512 = vld [vmem:[#allocation16 + $0xec8] sm:$0xff]
    %v2513 = vld [vmem:[#allocation16 + $0xed0] sm:$0xff]
    %v2514 = vld [vmem:[#allocation16 + $0xed8] sm:$0xff]
    %v2515 = vld [vmem:[#allocation16 + $0xee0] sm:$0xff]
    %v2516 = vld [vmem:[#allocation16 + $0xee8] sm:$0xff]
    %v2517 = vld [vmem:[#allocation16 + $0xef0] sm:$0xff]
    %v2518 = vld [vmem:[#allocation16 + $0xef8] sm:$0xff]
    %v2519 = vld [vmem:[#allocation16 + $0xf00] sm:$0xff]
    %v2520 = vld [vmem:[#allocation16 + $0xf08] sm:$0xff]
    %v2521 = vld [vmem:[#allocation16 + $0xf10] sm:$0xff]
    %v2522 = vld [vmem:[#allocation16 + $0xf18] sm:$0xff]
    %v2523 = vld [vmem:[#allocation16 + $0xf20] sm:$0xff]
    %v2524 = vld [vmem:[#allocation16 + $0xf28] sm:$0xff]
    %v2525 = vld [vmem:[#allocation16 + $0xf30] sm:$0xff]
    %v2526 = vld [vmem:[#allocation16 + $0xf38] sm:$0xff]
    %v2527 = vld [vmem:[#allocation16 + $0xf40] sm:$0xff]
    %v2528 = vld [vmem:[#allocation16 + $0xf48] sm:$0xff]
    %v2529 = vld [vmem:[#allocation16 + $0xf50] sm:$0xff]
    %v2530 = vld [vmem:[#allocation16 + $0xf58] sm:$0xff]
    %v2531 = vld [vmem:[#allocation16 + $0xf60] sm:$0xff]
    %v2532 = vld [vmem:[#allocation16 + $0xf68] sm:$0xff]
    %v2533 = vld [vmem:[#allocation16 + $0xf70] sm:$0xff]
    %v2534 = vld [vmem:[#allocation16 + $0xf78] sm:$0xff]
    %v2535 = vld [vmem:[#allocation16 + $0xf80] sm:$0xff]
    %v2536 = vld [vmem:[#allocation16 + $0xf88] sm:$0xff]
    %v2537 = vld [vmem:[#allocation16 + $0xf90] sm:$0xff]
    %v2538 = vld [vmem:[#allocation16 + $0xf98] sm:$0xff]
    %v2539 = vld [vmem:[#allocation16 + $0xfa0] sm:$0xff]
    %v2540 = vld [vmem:[#allocation16 + $0xfa8] sm:$0xff]
    %v2541 = vld [vmem:[#allocation16 + $0xfb0] sm:$0xff]
    %v2542 = vld [vmem:[#allocation16 + $0xfb8] sm:$0xff]
    %v2543 = vld [vmem:[#allocation16 + $0xfc0] sm:$0xff]
    %v2544 = vld [vmem:[#allocation16 + $0xfc8] sm:$0xff]
    %v2545 = vld [vmem:[#allocation16 + $0xfd0] sm:$0xff]
    %v2546 = vld [vmem:[#allocation16 + $0xfd8] sm:$0xff]
    %v2547 = vld [vmem:[#allocation16 + $0xfe0] sm:$0xff]
    %v2548 = vld [vmem:[#allocation16 + $0xfe8] sm:$0xff]
    %v2549 = vld [vmem:[#allocation16 + $0xff0] sm:$0xff]
    %v2550 = vld [vmem:[#allocation16 + $0xff8] sm:$0xff]
    %v2551 = vld [vmem:[#allocation17] sm:$0xf]
    %v2553 = vlaneseq
    %v2554 = vshrl.u32 %v2553, 7
    %v2555 = vsub.s32 0, %v2554
    %v2556 = vrot.slane %v2551, %v2555
    %v2557 = vlaneseq
    %v2558 = vshrl.u32 %v2557, 7
    %v2559 = vsub.s32 1, %v2558
    %v2560 = vrot.slane %v2551, %v2559
    %v2561 = vlaneseq
    %v2562 = vshrl.u32 %v2561, 7
    %v2563 = vsub.s32 2, %v2562
    %v2564 = vrot.slane %v2551, %v2563
    %v2565 = vlaneseq
    %v2566 = vshrl.u32 %v2565, 7
    %v2567 = vsub.s32 3, %v2566
    %v2568 = vrot.slane %v2551, %v2567
    %2573 = vmatprep.subr.mxu0 %v2040
    %2574 = vmatpush1.msra.mxu0 %v2039
    %2575 = vmatprep.subr.mxu0 %v2044
    %2576 = vmatpush1.msra.mxu0 %v2043
    %2577 = vmatprep.subr.mxu0 %v2048
    %2578 = vmatpush1.msra.mxu0 %v2047
    %2579 = vmatprep.subr.mxu0 %v2052
    %2580 = vmatpush1.msra.mxu0 %v2051
    %2581 = vmatprep.subr.mxu0 %v2056
    %2582 = vmatpush1.msra.mxu0 %v2055
    %2583 = vmatprep.subr.mxu0 %v2060
    %2584 = vmatpush1.msra.mxu0 %v2059
    %2585 = vmatprep.subr.mxu0 %v2064
    %2586 = vmatpush1.msra.mxu0 %v2063
    %2587 = vmatprep.subr.mxu0 %v2068
    %2588 = vmatpush1.msra.mxu0 %v2067
    %2589 = vmatprep.subr.mxu0 %v2072
    %2590 = vmatpush1.msra.mxu0 %v2071
    %2591 = vmatprep.subr.mxu0 %v2076
    %2592 = vmatpush1.msra.mxu0 %v2075
    %2593 = vmatprep.subr.mxu0 %v2080
    %2594 = vmatpush1.msra.mxu0 %v2079
    %2595 = vmatprep.subr.mxu0 %v2084
    %2596 = vmatpush1.msra.mxu0 %v2083
    %2597 = vmatprep.subr.mxu0 %v2088
    %2598 = vmatpush1.msra.mxu0 %v2087
    %2599 = vmatprep.subr.mxu0 %v2092
    %2600 = vmatpush1.msra.mxu0 %v2091
    %2601 = vmatprep.subr.mxu0 %v2096
    %2602 = vmatpush1.msra.mxu0 %v2095
    %2603 = vmatprep.subr.mxu0 %v2100
    %2604 = vmatpush1.msra.mxu0 %v2099
    %2605 = vmatprep.subr.mxu0 %v2104
    %2606 = vmatpush1.msra.mxu0 %v2103
    %2607 = vmatprep.subr.mxu0 %v2108
    %2608 = vmatpush1.msra.mxu0 %v2107
    %2609 = vmatprep.subr.mxu0 %v2112
    %2610 = vmatpush1.msra.mxu0 %v2111
    %2611 = vmatprep.subr.mxu0 %v2116
    %2612 = vmatpush1.msra.mxu0 %v2115
    %2613 = vmatprep.subr.mxu0 %v2120
    %2614 = vmatpush1.msra.mxu0 %v2119
    %2615 = vmatprep.subr.mxu0 %v2124
    %2616 = vmatpush1.msra.mxu0 %v2123
    %2617 = vmatprep.subr.mxu0 %v2128
    %2618 = vmatpush1.msra.mxu0 %v2127
    %2619 = vmatprep.subr.mxu0 %v2132
    %2620 = vmatpush1.msra.mxu0 %v2131
    %2621 = vmatprep.subr.mxu0 %v2136
    %2622 = vmatpush1.msra.mxu0 %v2135
    %2623 = vmatprep.subr.mxu0 %v2140
    %2624 = vmatpush1.msra.mxu0 %v2139
    %2625 = vmatprep.subr.mxu0 %v2144
    %2626 = vmatpush1.msra.mxu0 %v2143
    %2627 = vmatprep.subr.mxu0 %v2148
    %2628 = vmatpush1.msra.mxu0 %v2147
    %2629 = vmatprep.subr.mxu0 %v2152
    %2630 = vmatpush1.msra.mxu0 %v2151
    %2631 = vmatprep.subr.mxu0 %v2156
    %2632 = vmatpush1.msra.mxu0 %v2155
    %2633 = vmatprep.subr.mxu0 %v2160
    %2634 = vmatpush1.msra.mxu0 %v2159
    %2635 = vmatprep.subr.mxu0 %v2164
    %2636 = vmatpush1.msra.mxu0 %v2163
    %2637 = vmatprep.mubr.f32.mxu0 %v2026
    %2638 = vmatmul.mubr.f32.gmra.mrb[0].mxu0 %v2023
    %v2639 = vpop.f32.mrb[0].mxu0
    %v2640 = vadd.f32 %v2556, %v2639
    %v2641 = vpop.f32.mrb[0].mxu0
    %v2642 = vadd.f32 %v2560, %v2641
    %2643 = vdwg.mxu0
    %2644 = vmatprep.subr.mxu0 %v2168
    %2645 = vmatpush1.msra.mxu0 %v2167
    %2646 = vmatprep.subr.mxu0 %v2172
    %2647 = vmatpush1.msra.mxu0 %v2171
    %2648 = vmatprep.subr.mxu0 %v2176
    %2649 = vmatpush1.msra.mxu0 %v2175
    %2650 = vmatprep.subr.mxu0 %v2180
    %2651 = vmatpush1.msra.mxu0 %v2179
    %2652 = vmatprep.subr.mxu0 %v2184
    %2653 = vmatpush1.msra.mxu0 %v2183
    %2654 = vmatprep.subr.mxu0 %v2188
    %2655 = vmatpush1.msra.mxu0 %v2187
    %2656 = vmatprep.subr.mxu0 %v2192
    %2657 = vmatpush1.msra.mxu0 %v2191
    %2658 = vmatprep.subr.mxu0 %v2196
    %2659 = vmatpush1.msra.mxu0 %v2195
    %2660 = vmatprep.subr.mxu0 %v2200
    %2661 = vmatpush1.msra.mxu0 %v2199
    %2662 = vmatprep.subr.mxu0 %v2204
    %2663 = vmatpush1.msra.mxu0 %v2203
    %2664 = vmatprep.subr.mxu0 %v2208
    %2665 = vmatpush1.msra.mxu0 %v2207
    %2666 = vmatprep.subr.mxu0 %v2212
    %2667 = vmatpush1.msra.mxu0 %v2211
    %2668 = vmatprep.subr.mxu0 %v2216
    %2669 = vmatpush1.msra.mxu0 %v2215
    %2670 = vmatprep.subr.mxu0 %v2220
    %2671 = vmatpush1.msra.mxu0 %v2219
    %2672 = vmatprep.subr.mxu0 %v2224
    %2673 = vmatpush1.msra.mxu0 %v2223
    %2674 = vmatprep.subr.mxu0 %v2228
    %2675 = vmatpush1.msra.mxu0 %v2227
    %2676 = vmatprep.subr.mxu0 %v2232
    %2677 = vmatpush1.msra.mxu0 %v2231
    %2678 = vmatprep.subr.mxu0 %v2236
    %2679 = vmatpush1.msra.mxu0 %v2235
    %2680 = vmatprep.subr.mxu0 %v2240
    %2681 = vmatpush1.msra.mxu0 %v2239
    %2682 = vmatprep.subr.mxu0 %v2244
    %2683 = vmatpush1.msra.mxu0 %v2243
    %2684 = vmatprep.subr.mxu0 %v2248
    %2685 = vmatpush1.msra.mxu0 %v2247
    %2686 = vmatprep.subr.mxu0 %v2252
    %2687 = vmatpush1.msra.mxu0 %v2251
    %2688 = vmatprep.subr.mxu0 %v2256
    %2689 = vmatpush1.msra.mxu0 %v2255
    %2690 = vmatprep.subr.mxu0 %v2260
    %2691 = vmatpush1.msra.mxu0 %v2259
    %2692 = vmatprep.subr.mxu0 %v2264
    %2693 = vmatpush1.msra.mxu0 %v2263
    %2694 = vmatprep.subr.mxu0 %v2268
    %2695 = vmatpush1.msra.mxu0 %v2267
    %2696 = vmatprep.subr.mxu0 %v2272
    %2697 = vmatpush1.msra.mxu0 %v2271
    %2698 = vmatprep.subr.mxu0 %v2276
    %2699 = vmatpush1.msra.mxu0 %v2275
    %2700 = vmatprep.subr.mxu0 %v2280
    %2701 = vmatpush1.msra.mxu0 %v2279
    %2702 = vmatprep.subr.mxu0 %v2284
    %2703 = vmatpush1.msra.mxu0 %v2283
    %2704 = vmatprep.subr.mxu0 %v2288
    %2705 = vmatpush1.msra.mxu0 %v2287
    %2706 = vmatprep.subr.mxu0 %v2292
    %2707 = vmatpush1.msra.mxu0 %v2291
    %2708 = vmatprep.mubr.f32.mxu0 %v2030
    %2709 = vmatmul.mubr.f32.gmra.mrb[0].mxu0 %v2028
    %v2710 = vpop.f32.mrb[0].mxu0
    %v2711 = vadd.f32 %v2640, %v2710
    %v2712 = vpop.f32.mrb[0].mxu0
    %v2713 = vadd.f32 %v2642, %v2712
    %2714 = vdwg.mxu0
    %2715 = vmatprep.subr.mxu0 %v2296
    %2716 = vmatpush1.msra.mxu0 %v2295
    %2717 = vmatprep.subr.mxu0 %v2300
    %2718 = vmatpush1.msra.mxu0 %v2299
    %2719 = vmatprep.subr.mxu0 %v2304
    %2720 = vmatpush1.msra.mxu0 %v2303
    %2721 = vmatprep.subr.mxu0 %v2308
    %2722 = vmatpush1.msra.mxu0 %v2307
    %2723 = vmatprep.subr.mxu0 %v2312
    %2724 = vmatpush1.msra.mxu0 %v2311
    %2725 = vmatprep.subr.mxu0 %v2316
    %2726 = vmatpush1.msra.mxu0 %v2315
    %2727 = vmatprep.subr.mxu0 %v2320
    %2728 = vmatpush1.msra.mxu0 %v2319
    %2729 = vmatprep.subr.mxu0 %v2324
    %2730 = vmatpush1.msra.mxu0 %v2323
    %2731 = vmatprep.subr.mxu0 %v2328
    %2732 = vmatpush1.msra.mxu0 %v2327
    %2733 = vmatprep.subr.mxu0 %v2332
    %2734 = vmatpush1.msra.mxu0 %v2331
    %2735 = vmatprep.subr.mxu0 %v2336
    %2736 = vmatpush1.msra.mxu0 %v2335
    %2737 = vmatprep.subr.mxu0 %v2340
    %2738 = vmatpush1.msra.mxu0 %v2339
    %2739 = vmatprep.subr.mxu0 %v2344
    %2740 = vmatpush1.msra.mxu0 %v2343
    %2741 = vmatprep.subr.mxu0 %v2348
    %2742 = vmatpush1.msra.mxu0 %v2347
    %2743 = vmatprep.subr.mxu0 %v2352
    %2744 = vmatpush1.msra.mxu0 %v2351
    %2745 = vmatprep.subr.mxu0 %v2356
    %2746 = vmatpush1.msra.mxu0 %v2355
    %2747 = vmatprep.subr.mxu0 %v2360
    %2748 = vmatpush1.msra.mxu0 %v2359
    %2749 = vmatprep.subr.mxu0 %v2364
    %2750 = vmatpush1.msra.mxu0 %v2363
    %2751 = vmatprep.subr.mxu0 %v2368
    %2752 = vmatpush1.msra.mxu0 %v2367
    %2753 = vmatprep.subr.mxu0 %v2372
    %2754 = vmatpush1.msra.mxu0 %v2371
    %2755 = vmatprep.subr.mxu0 %v2376
    %2756 = vmatpush1.msra.mxu0 %v2375
    %2757 = vmatprep.subr.mxu0 %v2380
    %2758 = vmatpush1.msra.mxu0 %v2379
    %2759 = vmatprep.subr.mxu0 %v2384
    %2760 = vmatpush1.msra.mxu0 %v2383
    %2761 = vmatprep.subr.mxu0 %v2388
    %2762 = vmatpush1.msra.mxu0 %v2387
    %2763 = vmatprep.subr.mxu0 %v2392
    %2764 = vmatpush1.msra.mxu0 %v2391
    %2765 = vmatprep.subr.mxu0 %v2396
    %2766 = vmatpush1.msra.mxu0 %v2395
    %2767 = vmatprep.subr.mxu0 %v2400
    %2768 = vmatpush1.msra.mxu0 %v2399
    %2769 = vmatprep.subr.mxu0 %v2404
    %2770 = vmatpush1.msra.mxu0 %v2403
    %2771 = vmatprep.subr.mxu0 %v2408
    %2772 = vmatpush1.msra.mxu0 %v2407
    %2773 = vmatprep.subr.mxu0 %v2412
    %2774 = vmatpush1.msra.mxu0 %v2411
    %2775 = vmatprep.subr.mxu0 %v2416
    %2776 = vmatpush1.msra.mxu0 %v2415
    %2777 = vmatprep.subr.mxu0 %v2420
    %2778 = vmatpush1.msra.mxu0 %v2419
    %2779 = vmatprep.mubr.f32.mxu0 %v2033
    %2780 = vmatmul.mubr.f32.gmra.mrb[0].mxu0 %v2024
    %v2781 = vpop.f32.mrb[0].mxu0
    %v2782 = vadd.f32 %v2711, %v2781
    %v2783 = vpop.f32.mrb[0].mxu0
    %v2784 = vadd.f32 %v2713, %v2783
    %2785 = vdwg.mxu0
    %2786 = vmatprep.subr.mxu0 %v2424
    %2787 = vmatpush1.msra.mxu0 %v2423
    %2788 = vmatprep.subr.mxu0 %v2428
    %2789 = vmatpush1.msra.mxu0 %v2427
    %2790 = vmatprep.subr.mxu0 %v2432
    %2791 = vmatpush1.msra.mxu0 %v2431
    %2792 = vmatprep.subr.mxu0 %v2436
    %2793 = vmatpush1.msra.mxu0 %v2435
    %2794 = vmatprep.subr.mxu0 %v2440
    %2795 = vmatpush1.msra.mxu0 %v2439
    %2796 = vmatprep.subr.mxu0 %v2444
    %2797 = vmatpush1.msra.mxu0 %v2443
    %2798 = vmatprep.subr.mxu0 %v2448
    %2799 = vmatpush1.msra.mxu0 %v2447
    %2800 = vmatprep.subr.mxu0 %v2452
    %2801 = vmatpush1.msra.mxu0 %v2451
    %2802 = vmatprep.subr.mxu0 %v2456
    %2803 = vmatpush1.msra.mxu0 %v2455
    %2804 = vmatprep.subr.mxu0 %v2460
    %2805 = vmatpush1.msra.mxu0 %v2459
    %2806 = vmatprep.subr.mxu0 %v2464
    %2807 = vmatpush1.msra.mxu0 %v2463
    %2808 = vmatprep.subr.mxu0 %v2468
    %2809 = vmatpush1.msra.mxu0 %v2467
    %2810 = vmatprep.subr.mxu0 %v2472
    %2811 = vmatpush1.msra.mxu0 %v2471
    %2812 = vmatprep.subr.mxu0 %v2476
    %2813 = vmatpush1.msra.mxu0 %v2475
    %2814 = vmatprep.subr.mxu0 %v2480
    %2815 = vmatpush1.msra.mxu0 %v2479
    %2816 = vmatprep.subr.mxu0 %v2484
    %2817 = vmatpush1.msra.mxu0 %v2483
    %2818 = vmatprep.subr.mxu0 %v2488
    %2819 = vmatpush1.msra.mxu0 %v2487
    %2820 = vmatprep.subr.mxu0 %v2492
    %2821 = vmatpush1.msra.mxu0 %v2491
    %2822 = vmatprep.subr.mxu0 %v2496
    %2823 = vmatpush1.msra.mxu0 %v2495
    %2824 = vmatprep.subr.mxu0 %v2500
    %2825 = vmatpush1.msra.mxu0 %v2499
    %2826 = vmatprep.subr.mxu0 %v2504
    %2827 = vmatpush1.msra.mxu0 %v2503
    %2828 = vmatprep.subr.mxu0 %v2508
    %2829 = vmatpush1.msra.mxu0 %v2507
    %2830 = vmatprep.subr.mxu0 %v2512
    %2831 = vmatpush1.msra.mxu0 %v2511
    %2832 = vmatprep.subr.mxu0 %v2516
    %2833 = vmatpush1.msra.mxu0 %v2515
    %2834 = vmatprep.subr.mxu0 %v2520
    %2835 = vmatpush1.msra.mxu0 %v2519
    %2836 = vmatprep.subr.mxu0 %v2524
    %2837 = vmatpush1.msra.mxu0 %v2523
    %2838 = vmatprep.subr.mxu0 %v2528
    %2839 = vmatpush1.msra.mxu0 %v2527
    %2840 = vmatprep.subr.mxu0 %v2532
    %2841 = vmatpush1.msra.mxu0 %v2531
    %2842 = vmatprep.subr.mxu0 %v2536
    %2843 = vmatpush1.msra.mxu0 %v2535
    %2844 = vmatprep.subr.mxu0 %v2540
    %2845 = vmatpush1.msra.mxu0 %v2539
    %2846 = vmatprep.subr.mxu0 %v2544
    %2847 = vmatpush1.msra.mxu0 %v2543
    %2848 = vmatprep.subr.mxu0 %v2548
    %2849 = vmatpush1.msra.mxu0 %v2547
    %2850 = vmatprep.mubr.f32.mxu0 %v2037
    %2851 = vmatmul.mubr.f32.gmra.mrb[0].mxu0 %v2035
    %v2852 = vpop.f32.mrb[0].mxu0
    %v2853 = vadd.f32 %v2782, %v2852
    %v2854 = vpop.f32.mrb[0].mxu0
    %v2855 = vadd.f32 %v2784, %v2854
    %2856 = vdwg.mxu0
    %2857 = vmatprep.subr.mxu0 %v2042
    %2858 = vmatpush1.msra.mxu0 %v2041
    %2859 = vmatprep.subr.mxu0 %v2046
    %2860 = vmatpush1.msra.mxu0 %v2045
    %2861 = vmatprep.subr.mxu0 %v2050
    %2862 = vmatpush1.msra.mxu0 %v2049
    %2863 = vmatprep.subr.mxu0 %v2054
    %2864 = vmatpush1.msra.mxu0 %v2053
    %2865 = vmatprep.subr.mxu0 %v2058
    %2866 = vmatpush1.msra.mxu0 %v2057
    %2867 = vmatprep.subr.mxu0 %v2062
    %2868 = vmatpush1.msra.mxu0 %v2061
    %2869 = vmatprep.subr.mxu0 %v2066
    %2870 = vmatpush1.msra.mxu0 %v2065
    %2871 = vmatprep.subr.mxu0 %v2070
    %2872 = vmatpush1.msra.mxu0 %v2069
    %2873 = vmatprep.subr.mxu0 %v2074
    %2874 = vmatpush1.msra.mxu0 %v2073
    %2875 = vmatprep.subr.mxu0 %v2078
    %2876 = vmatpush1.msra.mxu0 %v2077
    %2877 = vmatprep.subr.mxu0 %v2082
    %2878 = vmatpush1.msra.mxu0 %v2081
    %2879 = vmatprep.subr.mxu0 %v2086
    %2880 = vmatpush1.msra.mxu0 %v2085
    %2881 = vmatprep.subr.mxu0 %v2090
    %2882 = vmatpush1.msra.mxu0 %v2089
    %2883 = vmatprep.subr.mxu0 %v2094
    %2884 = vmatpush1.msra.mxu0 %v2093
    %2885 = vmatprep.subr.mxu0 %v2098
    %2886 = vmatpush1.msra.mxu0 %v2097
    %2887 = vmatprep.subr.mxu0 %v2102
    %2888 = vmatpush1.msra.mxu0 %v2101
    %2889 = vmatprep.subr.mxu0 %v2106
    %2890 = vmatpush1.msra.mxu0 %v2105
    %2891 = vmatprep.subr.mxu0 %v2110
    %2892 = vmatpush1.msra.mxu0 %v2109
    %2893 = vmatprep.subr.mxu0 %v2114
    %2894 = vmatpush1.msra.mxu0 %v2113
    %2895 = vmatprep.subr.mxu0 %v2118
    %2896 = vmatpush1.msra.mxu0 %v2117
    %2897 = vmatprep.subr.mxu0 %v2122
    %2898 = vmatpush1.msra.mxu0 %v2121
    %2899 = vmatprep.subr.mxu0 %v2126
    %2900 = vmatpush1.msra.mxu0 %v2125
    %2901 = vmatprep.subr.mxu0 %v2130
    %2902 = vmatpush1.msra.mxu0 %v2129
    %2903 = vmatprep.subr.mxu0 %v2134
    %2904 = vmatpush1.msra.mxu0 %v2133
    %2905 = vmatprep.subr.mxu0 %v2138
    %2906 = vmatpush1.msra.mxu0 %v2137
    %2907 = vmatprep.subr.mxu0 %v2142
    %2908 = vmatpush1.msra.mxu0 %v2141
    %2909 = vmatprep.subr.mxu0 %v2146
    %2910 = vmatpush1.msra.mxu0 %v2145
    %2911 = vmatprep.subr.mxu0 %v2150
    %2912 = vmatpush1.msra.mxu0 %v2149
    %2913 = vmatprep.subr.mxu0 %v2154
    %2914 = vmatpush1.msra.mxu0 %v2153
    %2915 = vmatprep.subr.mxu0 %v2158
    %2916 = vmatpush1.msra.mxu0 %v2157
    %2917 = vmatprep.subr.mxu0 %v2162
    %2918 = vmatpush1.msra.mxu0 %v2161
    %2919 = vmatprep.subr.mxu0 %v2166
    %2920 = vmatpush1.msra.mxu0 %v2165
    %2921 = vmatprep.mubr.f32.mxu0 %v2026
    %2922 = vmatmul.mubr.f32.gmra.mrb[0].mxu0 %v2023
    %v2923 = vpop.f32.mrb[0].mxu0
    %v2924 = vadd.f32 %v2564, %v2923
    %v2925 = vpop.f32.mrb[0].mxu0
    %v2926 = vadd.f32 %v2568, %v2925
    %2927 = vdwg.mxu0
    %2928 = vmatprep.subr.mxu0 %v2170
    %2929 = vmatpush1.msra.mxu0 %v2169
    %2930 = vmatprep.subr.mxu0 %v2174
    %2931 = vmatpush1.msra.mxu0 %v2173
    %2932 = vmatprep.subr.mxu0 %v2178
    %2933 = vmatpush1.msra.mxu0 %v2177
    %2934 = vmatprep.subr.mxu0 %v2182
    %2935 = vmatpush1.msra.mxu0 %v2181
    %2936 = vmatprep.subr.mxu0 %v2186
    %2937 = vmatpush1.msra.mxu0 %v2185
    %2938 = vmatprep.subr.mxu0 %v2190
    %2939 = vmatpush1.msra.mxu0 %v2189
    %2940 = vmatprep.subr.mxu0 %v2194
    %2941 = vmatpush1.msra.mxu0 %v2193
    %2942 = vmatprep.subr.mxu0 %v2198
    %2943 = vmatpush1.msra.mxu0 %v2197
    %2944 = vmatprep.subr.mxu0 %v2202
    %2945 = vmatpush1.msra.mxu0 %v2201
    %2946 = vmatprep.subr.mxu0 %v2206
    %2947 = vmatpush1.msra.mxu0 %v2205
    %2948 = vmatprep.subr.mxu0 %v2210
    %2949 = vmatpush1.msra.mxu0 %v2209
    %2950 = vmatprep.subr.mxu0 %v2214
    %2951 = vmatpush1.msra.mxu0 %v2213
    %2952 = vmatprep.subr.mxu0 %v2218
    %2953 = vmatpush1.msra.mxu0 %v2217
    %2954 = vmatprep.subr.mxu0 %v2222
    %2955 = vmatpush1.msra.mxu0 %v2221
    %2956 = vmatprep.subr.mxu0 %v2226
    %2957 = vmatpush1.msra.mxu0 %v2225
    %2958 = vmatprep.subr.mxu0 %v2230
    %2959 = vmatpush1.msra.mxu0 %v2229
    %2960 = vmatprep.subr.mxu0 %v2234
    %2961 = vmatpush1.msra.mxu0 %v2233
    %2962 = vmatprep.subr.mxu0 %v2238
    %2963 = vmatpush1.msra.mxu0 %v2237
    %2964 = vmatprep.subr.mxu0 %v2242
    %2965 = vmatpush1.msra.mxu0 %v2241
    %2966 = vmatprep.subr.mxu0 %v2246
    %2967 = vmatpush1.msra.mxu0 %v2245
    %2968 = vmatprep.subr.mxu0 %v2250
    %2969 = vmatpush1.msra.mxu0 %v2249
    %2970 = vmatprep.subr.mxu0 %v2254
    %2971 = vmatpush1.msra.mxu0 %v2253
    %2972 = vmatprep.subr.mxu0 %v2258
    %2973 = vmatpush1.msra.mxu0 %v2257
    %2974 = vmatprep.subr.mxu0 %v2262
    %2975 = vmatpush1.msra.mxu0 %v2261
    %2976 = vmatprep.subr.mxu0 %v2266
    %2977 = vmatpush1.msra.mxu0 %v2265
    %2978 = vmatprep.subr.mxu0 %v2270
    %2979 = vmatpush1.msra.mxu0 %v2269
    %2980 = vmatprep.subr.mxu0 %v2274
    %2981 = vmatpush1.msra.mxu0 %v2273
    %2982 = vmatprep.subr.mxu0 %v2278
    %2983 = vmatpush1.msra.mxu0 %v2277
    %2984 = vmatprep.subr.mxu0 %v2282
    %2985 = vmatpush1.msra.mxu0 %v2281
    %2986 = vmatprep.subr.mxu0 %v2286
    %2987 = vmatpush1.msra.mxu0 %v2285
    %2988 = vmatprep.subr.mxu0 %v2290
    %2989 = vmatpush1.msra.mxu0 %v2289
    %2990 = vmatprep.subr.mxu0 %v2294
    %2991 = vmatpush1.msra.mxu0 %v2293
    %2992 = vmatprep.mubr.f32.mxu0 %v2030
    %2993 = vmatmul.mubr.f32.gmra.mrb[0].mxu0 %v2028
    %v2994 = vpop.f32.mrb[0].mxu0
    %v2995 = vadd.f32 %v2924, %v2994
    %v2996 = vpop.f32.mrb[0].mxu0
    %v2997 = vadd.f32 %v2926, %v2996
    %2998 = vdwg.mxu0
    %2999 = vmatprep.subr.mxu0 %v2298
    %3000 = vmatpush1.msra.mxu0 %v2297
    %3001 = vmatprep.subr.mxu0 %v2302
    %3002 = vmatpush1.msra.mxu0 %v2301
    %3003 = vmatprep.subr.mxu0 %v2306
    %3004 = vmatpush1.msra.mxu0 %v2305
    %3005 = vmatprep.subr.mxu0 %v2310
    %3006 = vmatpush1.msra.mxu0 %v2309
    %3007 = vmatprep.subr.mxu0 %v2314
    %3008 = vmatpush1.msra.mxu0 %v2313
    %3009 = vmatprep.subr.mxu0 %v2318
    %3010 = vmatpush1.msra.mxu0 %v2317
    %3011 = vmatprep.subr.mxu0 %v2322
    %3012 = vmatpush1.msra.mxu0 %v2321
    %3013 = vmatprep.subr.mxu0 %v2326
    %3014 = vmatpush1.msra.mxu0 %v2325
    %3015 = vmatprep.subr.mxu0 %v2330
    %3016 = vmatpush1.msra.mxu0 %v2329
    %3017 = vmatprep.subr.mxu0 %v2334
    %3018 = vmatpush1.msra.mxu0 %v2333
    %3019 = vmatprep.subr.mxu0 %v2338
    %3020 = vmatpush1.msra.mxu0 %v2337
    %3021 = vmatprep.subr.mxu0 %v2342
    %3022 = vmatpush1.msra.mxu0 %v2341
    %3023 = vmatprep.subr.mxu0 %v2346
    %3024 = vmatpush1.msra.mxu0 %v2345
    %3025 = vmatprep.subr.mxu0 %v2350
    %3026 = vmatpush1.msra.mxu0 %v2349
    %3027 = vmatprep.subr.mxu0 %v2354
    %3028 = vmatpush1.msra.mxu0 %v2353
    %3029 = vmatprep.subr.mxu0 %v2358
    %3030 = vmatpush1.msra.mxu0 %v2357
    %3031 = vmatprep.subr.mxu0 %v2362
    %3032 = vmatpush1.msra.mxu0 %v2361
    %3033 = vmatprep.subr.mxu0 %v2366
    %3034 = vmatpush1.msra.mxu0 %v2365
    %3035 = vmatprep.subr.mxu0 %v2370
    %3036 = vmatpush1.msra.mxu0 %v2369
    %3037 = vmatprep.subr.mxu0 %v2374
    %3038 = vmatpush1.msra.mxu0 %v2373
    %3039 = vmatprep.subr.mxu0 %v2378
    %3040 = vmatpush1.msra.mxu0 %v2377
    %3041 = vmatprep.subr.mxu0 %v2382
    %3042 = vmatpush1.msra.mxu0 %v2381
    %3043 = vmatprep.subr.mxu0 %v2386
    %3044 = vmatpush1.msra.mxu0 %v2385
    %3045 = vmatprep.subr.mxu0 %v2390
    %3046 = vmatpush1.msra.mxu0 %v2389
    %3047 = vmatprep.subr.mxu0 %v2394
    %3048 = vmatpush1.msra.mxu0 %v2393
    %3049 = vmatprep.subr.mxu0 %v2398
    %3050 = vmatpush1.msra.mxu0 %v2397
    %3051 = vmatprep.subr.mxu0 %v2402
    %3052 = vmatpush1.msra.mxu0 %v2401
    %3053 = vmatprep.subr.mxu0 %v2406
    %3054 = vmatpush1.msra.mxu0 %v2405
    %3055 = vmatprep.subr.mxu0 %v2410
    %3056 = vmatpush1.msra.mxu0 %v2409
    %3057 = vmatprep.subr.mxu0 %v2414
    %3058 = vmatpush1.msra.mxu0 %v2413
    %3059 = vmatprep.subr.mxu0 %v2418
    %3060 = vmatpush1.msra.mxu0 %v2417
    %3061 = vmatprep.subr.mxu0 %v2422
    %3062 = vmatpush1.msra.mxu0 %v2421
    %3063 = vmatprep.mubr.f32.mxu0 %v2033
    %3064 = vmatmul.mubr.f32.gmra.mrb[0].mxu0 %v2024
    %v3065 = vpop.f32.mrb[0].mxu0
    %v3066 = vadd.f32 %v2995, %v3065
    %v3067 = vpop.f32.mrb[0].mxu0
    %v3068 = vadd.f32 %v2997, %v3067
    %3069 = vdwg.mxu0
    %3070 = vmatprep.subr.mxu0 %v2426
    %3071 = vmatpush1.msra.mxu0 %v2425
    %3072 = vmatprep.subr.mxu0 %v2430
    %3073 = vmatpush1.msra.mxu0 %v2429
    %3074 = vmatprep.subr.mxu0 %v2434
    %3075 = vmatpush1.msra.mxu0 %v2433
    %3076 = vmatprep.subr.mxu0 %v2438
    %3077 = vmatpush1.msra.mxu0 %v2437
    %3078 = vmatprep.subr.mxu0 %v2442
    %3079 = vmatpush1.msra.mxu0 %v2441
    %3080 = vmatprep.subr.mxu0 %v2446
    %3081 = vmatpush1.msra.mxu0 %v2445
    %3082 = vmatprep.subr.mxu0 %v2450
    %3083 = vmatpush1.msra.mxu0 %v2449
    %3084 = vmatprep.subr.mxu0 %v2454
    %3085 = vmatpush1.msra.mxu0 %v2453
    %3086 = vmatprep.subr.mxu0 %v2458
    %3087 = vmatpush1.msra.mxu0 %v2457
    %3088 = vmatprep.subr.mxu0 %v2462
    %3089 = vmatpush1.msra.mxu0 %v2461
    %3090 = vmatprep.subr.mxu0 %v2466
    %3091 = vmatpush1.msra.mxu0 %v2465
    %3092 = vmatprep.subr.mxu0 %v2470
    %3093 = vmatpush1.msra.mxu0 %v2469
    %3094 = vmatprep.subr.mxu0 %v2474
    %3095 = vmatpush1.msra.mxu0 %v2473
    %3096 = vmatprep.subr.mxu0 %v2478
    %3097 = vmatpush1.msra.mxu0 %v2477
    %3098 = vmatprep.subr.mxu0 %v2482
    %3099 = vmatpush1.msra.mxu0 %v2481
    %3100 = vmatprep.subr.mxu0 %v2486
    %3101 = vmatpush1.msra.mxu0 %v2485
    %3102 = vmatprep.subr.mxu0 %v2490
    %3103 = vmatpush1.msra.mxu0 %v2489
    %3104 = vmatprep.subr.mxu0 %v2494
    %3105 = vmatpush1.msra.mxu0 %v2493
    %3106 = vmatprep.subr.mxu0 %v2498
    %3107 = vmatpush1.msra.mxu0 %v2497
    %3108 = vmatprep.subr.mxu0 %v2502
    %3109 = vmatpush1.msra.mxu0 %v2501
    %3110 = vmatprep.subr.mxu0 %v2506
    %3111 = vmatpush1.msra.mxu0 %v2505
    %3112 = vmatprep.subr.mxu0 %v2510
    %3113 = vmatpush1.msra.mxu0 %v2509
    %3114 = vmatprep.subr.mxu0 %v2514
    %3115 = vmatpush1.msra.mxu0 %v2513
    %3116 = vmatprep.subr.mxu0 %v2518
    %3117 = vmatpush1.msra.mxu0 %v2517
    %3118 = vmatprep.subr.mxu0 %v2522
    %3119 = vmatpush1.msra.mxu0 %v2521
    %3120 = vmatprep.subr.mxu0 %v2526
    %3121 = vmatpush1.msra.mxu0 %v2525
    %3122 = vmatprep.subr.mxu0 %v2530
    %3123 = vmatpush1.msra.mxu0 %v2529
    %3124 = vmatprep.subr.mxu0 %v2534
    %3125 = vmatpush1.msra.mxu0 %v2533
    %3126 = vmatprep.subr.mxu0 %v2538
    %3127 = vmatpush1.msra.mxu0 %v2537
    %3128 = vmatprep.subr.mxu0 %v2542
    %3129 = vmatpush1.msra.mxu0 %v2541
    %3130 = vmatprep.subr.mxu0 %v2546
    %3131 = vmatpush1.msra.mxu0 %v2545
    %3132 = vmatprep.subr.mxu0 %v2550
    %3133 = vmatpush1.msra.mxu0 %v2549
    %3134 = vmatprep.mubr.f32.mxu0 %v2037
    %3135 = vmatmul.mubr.f32.gmra.mrb[0].mxu0 %v2035
    %v3136 = vpop.f32.mrb[0].mxu0
    %v3137 = vadd.f32 %v3066, %v3136
    %v3138 = vpop.f32.mrb[0].mxu0
    %v3139 = vadd.f32 %v3068, %v3138
    %3140 = vdwg.mxu0
    %v3145 = vcombine.low %v2853, %v2855
    %v3146 = vcombine.low %v3137, %v3139
    %v3148 = vunpack.c.l.s4 1983009808
    %v3149 = vunpack.c.0.s8 %v3148
    %v3150 = vlaneseq
    %v3151 = vshrl.u32 %v3150, 7
    %v3152 = vsub.s32 %v3149, %v3151
    %v3153 = vrot.slane %v3145, %v3152
    %v3155 = vunpack.c.l.s4 1983009808
    %v3156 = vunpack.c.0.s8 %v3155
    %v3157 = vlaneseq
    %v3158 = vshrl.u32 %v3157, 7
    %v3159 = vsub.s32 %v3156, %v3158
    %v3160 = vrot.slane %v3146, %v3159
    %v3161 = vcombine.low %v3153, %v3160
    %3163 = vst [vmem:[#allocation19] sm:$0xff] %v3161
    // Predicated region
    $region90: #{_lambda_.1} parent=1 // pred_check
      _
    $region91: #{_lambda_.1} parent=1 // pred_check_branch
      %3165 = sbr.rel (0) target = $region93
    $region92: #{_lambda_.1} parent=1 // pred_region
      %s3167 = ssub.s32 128, 128
      %3168 = vsyncadd [#allocation4], %s3167
      %s3170 = sshll.u32 [#allocation19], 4
      %s3171 = int_to_ptr.vmem [resolvable:$true] %s3170
      %3173 = dma.vmem_to_hbm [thread:$0]  %s3171, 128, %s12, [#allocation4]
    $region93: #{_lambda_.1} parent=1 // pred_fallthru
      _
    // Predicated region
    $region94: #{_lambda_.1} parent=1 // pred_check
      _
    $region95: #{_lambda_.1} parent=1 // pred_check_branch
      %3175 = sbr.rel (0) target = $region97
    $region96: #{_lambda_.1} parent=1 // pred_region
      %3176 = dma.done [#allocation4], 128
    $region97: #{_lambda_.1} parent=1 // pred_fallthru
      _
    %3177 = vsyncpa [#allocation3], 1
    %3178 = vsyncpa [#allocation6], 1
    %3179 = vsyncpa [#allocation9], 1
    %3180 = vsyncpa [#allocation12], 1
    %3181 = vsyncpa [#allocation15], 1
    %3182 = vsyncpa [#allocation18], 1
    %3183 = vsyncpa [#allocation4], 1

</llo_original>
